<compile_context>
chip_gen: v6e
topology: v6e:2x2x1
jax: 0.10.0
libtpu: 0.0.40
codegen_flags: <defaults>
</compile_context>

<pallas_src>
import numpy as np
import jax
import jax.numpy as jnp
from jax.experimental import pallas as pl
from jax.experimental.pallas import tpu as pltpu

# ----------------------------- constants -----------------------------------
SAMPLE_RATE = 24000
N_FFT = 1024
HOP = 256                        # N_FFT == 4 * HOP (slab decomposition relies on this)
N_SLABS = N_FFT // HOP           # 4
N_MELS = 100
N_FREQ = N_FFT // 2 + 1          # 513
NF_K = 512                       # kept frequency bins 1..512 (DC dropped, filter row is 0)
N_MELS_PAD = 128                 # 100 -> 128 (zero filters => zero contribution)
CLIP_VAL = 1e-7                  # vocos safe_log clip value
TM_MAX = 512                     # frames per tile (raised per perf review)


# ----------------------------- constant tables ------------------------------
def _hann_window(n):
    # torch.hann_window(periodic=True)
    i = np.arange(n, dtype=np.float64)
    return 0.5 * (1.0 - np.cos(2.0 * np.pi * i / n))


def _dft_matrices():
    """Un-windowed rDFT cos / -sin matrices, shape (N_FFT, N_FREQ), f32."""
    n = np.arange(N_FFT, dtype=np.float64)[:, None]
    k = np.arange(N_FREQ, dtype=np.float64)[None, :]
    ang = 2.0 * np.pi * n * k / N_FFT
    return np.cos(ang).astype(np.float32), (-np.sin(ang)).astype(np.float32)


def _mel_fbank():
    # torchaudio melscale_fbanks: htk mel scale, norm=None, f_min=0, f_max=sr/2
    def hz_to_mel(f):
        return 2595.0 * np.log10(1.0 + f / 700.0)

    def mel_to_hz(m):
        return 700.0 * (10.0 ** (m / 2595.0) - 1.0)

    all_freqs = np.linspace(0.0, SAMPLE_RATE / 2.0, N_FREQ)
    m_pts = np.linspace(hz_to_mel(0.0), hz_to_mel(SAMPLE_RATE / 2.0), N_MELS + 2)
    f_pts = mel_to_hz(m_pts)
    f_diff = f_pts[1:] - f_pts[:-1]
    slopes = f_pts[None, :] - all_freqs[:, None]          # (n_freq, n_mels+2)
    down = -slopes[:, :-2] / f_diff[:-1]
    up = slopes[:, 2:] / f_diff[1:]
    return np.maximum(0.0, np.minimum(down, up)).astype(np.float32)  # (513, 100)


def _kernel_tables():
    win = _hann_window(N_FFT)                              # (1024,) f64
    cos_m, sin_m = _dft_matrices()                         # (1024, 513) f32
    fb = _mel_fbank()                                      # (513, 100)  f32
    # For htk mel, f_min=0, norm=None the DC (bin 0) filter row is exactly
    # zero, so dropping bin 0 is numerically identical and leaves exactly 512
    # frequency columns (lane / MXU aligned).  Keep this assert (guards any
    # future fbank config change).
    assert float(np.abs(fb[0]).max()) == 0.0
    # Fused, window-folded RHS: [1024, 512 cos | 512 (-sin)].
    wcs = np.concatenate([win[:, None] * cos_m[:, 1:N_FREQ],
                          win[:, None] * sin_m[:, 1:N_FREQ]], axis=1)
    fb_pad = np.zeros((NF_K, N_MELS_PAD), np.float32)
    fb_pad[:, :N_MELS] = fb[1:N_FREQ]
    return (jnp.asarray(wcs, dtype=jnp.bfloat16),          # (1024, 1024) bf16
            jnp.asarray(fb_pad, dtype=jnp.bfloat16))       # (512, 128)  bf16


# --------------------- feature probe: single-buffered constants -------------
_SINGLE_BUF_OK = None


def _probe_kernel(x_ref, o_ref):
    o_ref[...] = x_ref[...] + 1.0


def _single_buffer_ok():
    """Can grid-invariant operands be single-buffered (pl.Buffered(1))?

    Saves the duplicate VMEM buffer for the constant DFT / mel tables
    (~2.1 MiB, most relevant on v7x's 64 MiB VMEM).  Falls back to default
    double buffering if this JAX/Mosaic build rejects buffer_count=1.
    """
    global _SINGLE_BUF_OK
    if _SINGLE_BUF_OK is None:
        try:
            with jax.ensure_compile_time_eval():
                fn = pl.pallas_call(
                    _probe_kernel,
                    out_shape=jax.ShapeDtypeStruct((8, 128), jnp.float32),
                    grid=(2,),
                    in_specs=[pl.BlockSpec((8, 128), lambda i: (0, 0),
                                           pipeline_mode=pl.Buffered(1))],
                    out_specs=pl.BlockSpec((8, 128), lambda i: (0, 0)),
                )
                jax.block_until_ready(fn(jnp.ones((8, 128), jnp.float32)))
            _SINGLE_BUF_OK = True
        except Exception:   # any failure -> plain double buffering
            _SINGLE_BUF_OK = False
    return _SINGLE_BUF_OK


# ----------------------------- wrapper helpers -------------------------------
def _round_up(x, m):
    return ((x + m - 1) // m) * m


def _pick_tm(n_frames, batch):
    # Keep >= 2 grid steps so the "parallel" grid axis can shard across both
    # v7x TensorCores even for batch == 1.
    target = n_frames if batch >= 2 else -(-n_frames // 2)
    return max(16, min(TM_MAX, _round_up(target, 16)))


def _frame(y):
    """Reference-only framing: y (B, L) f32 -> (B * n_frames, N_FFT)."""
    b, length = y.shape
    padded = jnp.pad(y, ((0, 0), (N_FFT // 2, N_FFT // 2)), mode="reflect")
    n_frames = 1 + length // HOP                    # center=True
    idx = np.arange(n_frames)[:, None] * HOP + np.arange(N_FFT)[None, :]
    frames = padded[:, idx]                         # (B, n_frames, N_FFT)
    return frames.reshape(b * n_frames, N_FFT), n_frames


# ----------------------------- main entry point ------------------------------
def mel_spec_reconstruction_loss(y_hat, y):
    """y_hat, y: (B, L) float32 waveforms. Returns the scalar L1 mel loss."""
    y_hat = y_hat.astype(jnp.float32)
    y = y.astype(jnp.float32)
    b, length = y.shape
    n_frames = 1 + length // HOP                    # center=True frame count

    tm = _pick_tm(n_frames, b)                      # frames per tile (mult of 16)
    n_tiles = -(-n_frames // tm)                    # tiles per batch element
    rows_chunk = tm + 8                             # tile needs chunk rows [0, tm+3]; pad to 8
    n_rows = n_tiles * tm + 8                       # padded-waveform rows covering all chunks
    t_tiles = b * n_tiles

    def make_chunks(w):
        # reflect pad (matches torch.stft center=True), zero-pad tail, view as
        # rows of HOP samples, and duplicate only the 4 overlap rows per tile
        # (~1.03x data) -- the 4x frame expansion happens inside the kernel.
        padded = jnp.pad(w, ((0, 0), (N_FFT // 2, N_FFT // 2)), mode="reflect")
        extra = n_rows * HOP - padded.shape[1]
        assert extra >= 0
        padded = jnp.pad(padded, ((0, 0), (0, extra)))
        rows = padded.reshape(b, n_rows, HOP)
        idx = np.arange(n_tiles)[:, None] * tm + np.arange(rows_chunk)[None, :]
        return rows[:, idx, :]                      # (B, n_tiles, rows_chunk, HOP)

    chunks = jnp.stack([make_chunks(y), make_chunks(y_hat)], axis=0)
    chunks = chunks.reshape(2, t_tiles, rows_chunk, HOP)   # f32; bf16 cast in-kernel

    wcs, fbank = _kernel_tables()

    # ----------------------------- kernel -----------------------------------
    def kernel(c_ref, wcs_ref, fb_ref, out_ref):
        # In-kernel framing + rDFT as 4 accumulating slab matmuls:
        # frames[:, r*HOP:(r+1)*HOP] == chunk rows r .. r+tm-1   (N_FFT = 4*HOP)
        reim = None
        for r in range(N_SLABS):
            lhs = c_ref[:, 0, pl.ds(r, tm), :]                 # (2, tm, HOP) f32
            lhs = lhs.reshape(2 * tm, HOP).astype(jnp.bfloat16)  # free leading-dim merge
            part = jnp.dot(lhs, wcs_ref[pl.ds(r * HOP, HOP), :],
                           preferred_element_type=jnp.float32)   # (2*tm, 2*NF_K)
            reim = part if reim is None else reim + part
        re = reim[:, :NF_K]
        im = reim[:, NF_K:]
        mag = jnp.sqrt(re * re + im * im)                        # power=1 magnitude
        mel = jnp.dot(mag.astype(jnp.bfloat16), fb_ref[...],
                      preferred_element_type=jnp.float32)        # (2*tm, 128)
        logmel = jnp.log(jnp.maximum(mel, CLIP_VAL))             # safe_log
        diff = jnp.abs(logmel[:tm] - logmel[tm:])                # (tm, 128)
        if n_frames % tm:
            # Mask frame rows past the true frame count (padded frames overlap
            # real samples now that framing is in-kernel, so they must be zeroed).
            tile = pl.program_id(0) % n_tiles
            valid = jnp.minimum(n_frames - tile * tm, tm)
            row_ids = jax.lax.broadcasted_iota(jnp.int32, diff.shape, 0)
            diff = jnp.where(row_ids < valid, diff, 0.0)
        # Lane-dense partial sum for this grid step; scalar reduction in wrapper.
        out_ref[...] = diff.reshape(-1, 8, N_MELS_PAD).sum(axis=0)[None]

    # Grid-invariant tables: single-buffer when supported, else default 2x.
    const_kw = {"pipeline_mode": pl.Buffered(1)} if _single_buffer_ok() else {}
    wcs_spec = pl.BlockSpec((N_FFT, 2 * NF_K), lambda i: (0, 0), **const_kw)
    fb_spec = pl.BlockSpec((NF_K, N_MELS_PAD), lambda i: (0, 0), **const_kw)

    partials = pl.pallas_call(
        kernel,
        out_shape=jax.ShapeDtypeStruct((t_tiles, 8, N_MELS_PAD), jnp.float32),
        grid_spec=pltpu.PrefetchScalarGridSpec(
            num_scalar_prefetch=0,
            grid=(t_tiles,),
            in_specs=[
                pl.BlockSpec((2, 1, rows_chunk, HOP), lambda i: (0, i, 0, 0)),
                wcs_spec,
                fb_spec,
            ],
            out_specs=pl.BlockSpec((1, 8, N_MELS_PAD), lambda i: (i, 0, 0)),
        ),
        compiler_params=pltpu.CompilerParams(
            dimension_semantics=("parallel",),      # no carried accumulator
            vmem_limit_bytes=32 * 1024 * 1024),
    )(chunks, wcs, fbank)

    n_elems = b * n_frames * N_MELS   # true (unpadded) mel-spec element count
    return jnp.sum(partials) / n_elems


# ----------------------------- pure-JAX reference ---------------------------
def _reference_loss(y_hat, y):
    window = jnp.asarray(_hann_window(N_FFT).astype(np.float32))
    cos_m, sin_m = _dft_matrices()
    cos_m = jnp.asarray(cos_m)
    sin_m = jnp.asarray(sin_m)
    fbank = jnp.asarray(_mel_fbank())

    def log_mel(w):
        frames, _ = _frame(w.astype(jnp.float32))
        xw = frames * window[None, :]
        re = jnp.dot(xw, cos_m, precision=jax.lax.Precision.HIGHEST)
        im = jnp.dot(xw, sin_m, precision=jax.lax.Precision.HIGHEST)
        mag = jnp.sqrt(re * re + im * im)
        mel = jnp.dot(mag, fbank, precision=jax.lax.Precision.HIGHEST)
        return jnp.log(jnp.maximum(mel, CLIP_VAL))

    return jnp.mean(jnp.abs(log_mel(y) - log_mel(y_hat)))


# ----------------------------- main ------------------------------------------
if __name__ == "__main__":
    key = jax.random.PRNGKey(0)
    k1, k2 = jax.random.split(key)
    B, L = 2, 4096                     # small waveforms (L must exceed n_fft//2)
    y_hat = jax.random.normal(k1, (B, L), dtype=jnp.float32) * 0.1
    y = jax.random.normal(k2, (B, L), dtype=jnp.float32) * 0.1

    _single_buffer_ok()                # prime the feature probe outside jit

    loss_fn = jax.jit(mel_spec_reconstruction_loss)
    loss = jax.block_until_ready(loss_fn(y_hat, y))

    ref = jax.block_until_ready(_reference_loss(y_hat, y))
    np.testing.assert_allclose(np.asarray(loss), np.asarray(ref),
                               rtol=2e-2, atol=5e-3)

    print("KERNEL_OK")
</pallas_src>

<mosaic_0001>
module attributes {stable_mosaic.version = 11 : i64} {
  func.func @_probe_kernel(%arg0: i32, %arg1: memref<8x128xf32, #tpu.memory_space<vmem>>, %arg2: memref<8x128xf32, #tpu.memory_space<vmem>>) attributes {dimension_semantics = [#tpu.dimension_semantics<arbitrary>], iteration_bounds = array<i64: 2>, scalar_prefetch = 0 : i64, scratch_operands = 0 : i64, tpu.core_type = #tpu.core_type<tc>, window_params = [{pipeline_mode = #tpu.pipeline_mode<synchronous>, transform_indices = @transform_0, window_bounds = array<i64: 8, 128>}, {pipeline_mode = #tpu.pipeline_mode<synchronous>, transform_indices = @transform_1, window_bounds = array<i64: 8, 128>}]} {
    %c0 = arith.constant 0 : index
    %c0_0 = arith.constant 0 : index
    %0 = vector.load %arg1[%c0, %c0_0] : memref<8x128xf32, #tpu.memory_space<vmem>>, vector<8x128xf32>
    %cst = arith.constant 1.000000e+00 : f32
    %1 = vector.broadcast %cst : f32 to vector<8x128xf32>
    %2 = arith.addf %0, %1 : vector<8x128xf32>
    %c0_1 = arith.constant 0 : index
    %c0_2 = arith.constant 0 : index
    %3 = vector.load %arg2[%c0_1, %c0_2] : memref<8x128xf32, #tpu.memory_space<vmem>>, vector<8x128xf32>
    tpu.vector_store %arg2[%c0_1, %c0_2], %2 {strides = array<i32>} : memref<8x128xf32, #tpu.memory_space<vmem>>, vector<8x128xf32>,
    return
  }
  func.func @transform_0(%arg0: i32) -> (i32, i32) {
    %c0_i32 = arith.constant 0 : i32
    %c0_i32_0 = arith.constant 0 : i32
    %c0_i32_1 = arith.constant 0 : i32
    return %c0_i32, %c0_i32_0 : i32, i32
  }
  func.func @transform_1(%arg0: i32) -> (i32, i32) {
    %c0_i32 = arith.constant 0 : i32
    %c0_i32_0 = arith.constant 0 : i32
    %c0_i32_1 = arith.constant 0 : i32
    return %c0_i32, %c0_i32_0 : i32, i32
  }
}

module attributes {stable_mosaic.version = 11 : i64} {
  func.func @kernel(%arg0: i32, %arg1: memref<2x1x40x256xf32, #tpu.memory_space<vmem>>, %arg2: memref<1024x1024xbf16, #tpu.memory_space<vmem>>, %arg3: memref<512x128xbf16, #tpu.memory_space<vmem>>, %arg4: memref<1x8x128xf32, #tpu.memory_space<vmem>>) attributes {dimension_semantics = [#tpu.dimension_semantics<parallel>], iteration_bounds = array<i64: 2>, scalar_prefetch = 0 : i64, scratch_operands = 0 : i64, tpu.core_type = #tpu.core_type<tc>, window_params = [{transform_indices = @transform_0, window_bounds = array<i64: 2, 1, 40, 256>}, {pipeline_mode = #tpu.pipeline_mode<synchronous>, transform_indices = @transform_1, window_bounds = array<i64: 1024, 1024>}, {pipeline_mode = #tpu.pipeline_mode<synchronous>, transform_indices = @transform_2, window_bounds = array<i64: 512, 128>}, {transform_indices = @transform_3, window_bounds = array<i64: 1, 8, 128>}]} {
    %c0 = arith.constant 0 : index
    %c0_0 = arith.constant 0 : index
    %c0_1 = arith.constant 0 : index
    %c0_2 = arith.constant 0 : index
    %0 = vector.load %arg1[%c0, %c0_0, %c0_1, %c0_2] : memref<2x1x40x256xf32, #tpu.memory_space<vmem>>, vector<2x1x32x256xf32>
    %1 = vector.shape_cast %0 : vector<2x1x32x256xf32> to vector<2x32x256xf32>
    %2 = vector.shape_cast %1 : vector<2x32x256xf32> to vector<64x256xf32>
    %3 = arith.truncf %2 : vector<64x256xf32> to vector<64x256xbf16>
    %c0_3 = arith.constant 0 : index
    %c0_4 = arith.constant 0 : index
    %4 = vector.load %arg2[%c0_3, %c0_4] : memref<1024x1024xbf16, #tpu.memory_space<vmem>>, vector<256x1024xbf16>
    %cst = arith.constant dense<0.000000e+00> : vector<64x1024xf32>
    %5 = tpu.matmul %3, %4, %cst {dimension_numbers = #tpu.dot_dimension_numbers<[1], [0], [0], [1], [0, 0, 1, 1], [], []>} : vector<64x256xbf16>, vector<256x1024xbf16>, vector<64x1024xf32> -> vector<64x1024xf32>
    %c0_5 = arith.constant 0 : index
    %c0_6 = arith.constant 0 : index
    %c1 = arith.constant 1 : index
    %c0_7 = arith.constant 0 : index
    %6 = vector.load %arg1[%c0_5, %c0_6, %c1, %c0_7] : memref<2x1x40x256xf32, #tpu.memory_space<vmem>>, vector<2x1x32x256xf32>
    %7 = vector.shape_cast %6 : vector<2x1x32x256xf32> to vector<2x32x256xf32>
    %8 = vector.shape_cast %7 : vector<2x32x256xf32> to vector<64x256xf32>
    %9 = arith.truncf %8 : vector<64x256xf32> to vector<64x256xbf16>
    %c256 = arith.constant 256 : index
    %c0_8 = arith.constant 0 : index
    %10 = vector.load %arg2[%c256, %c0_8] : memref<1024x1024xbf16, #tpu.memory_space<vmem>>, vector<256x1024xbf16>
    %cst_9 = arith.constant dense<0.000000e+00> : vector<64x1024xf32>
    %11 = tpu.matmul %9, %10, %cst_9 {dimension_numbers = #tpu.dot_dimension_numbers<[1], [0], [0], [1], [0, 0, 1, 1], [], []>} : vector<64x256xbf16>, vector<256x1024xbf16>, vector<64x1024xf32> -> vector<64x1024xf32>
    %12 = arith.addf %5, %11 : vector<64x1024xf32>
    %c0_10 = arith.constant 0 : index
    %c0_11 = arith.constant 0 : index
    %c2 = arith.constant 2 : index
    %c0_12 = arith.constant 0 : index
    %13 = vector.load %arg1[%c0_10, %c0_11, %c2, %c0_12] : memref<2x1x40x256xf32, #tpu.memory_space<vmem>>, vector<2x1x32x256xf32>
    %14 = vector.shape_cast %13 : vector<2x1x32x256xf32> to vector<2x32x256xf32>
    %15 = vector.shape_cast %14 : vector<2x32x256xf32> to vector<64x256xf32>
    %16 = arith.truncf %15 : vector<64x256xf32> to vector<64x256xbf16>
    %c512 = arith.constant 512 : index
    %c0_13 = arith.constant 0 : index
    %17 = vector.load %arg2[%c512, %c0_13] : memref<1024x1024xbf16, #tpu.memory_space<vmem>>, vector<256x1024xbf16>
    %cst_14 = arith.constant dense<0.000000e+00> : vector<64x1024xf32>
    %18 = tpu.matmul %16, %17, %cst_14 {dimension_numbers = #tpu.dot_dimension_numbers<[1], [0], [0], [1], [0, 0, 1, 1], [], []>} : vector<64x256xbf16>, vector<256x1024xbf16>, vector<64x1024xf32> -> vector<64x1024xf32>
    %19 = arith.addf %12, %18 : vector<64x1024xf32>
    %c0_15 = arith.constant 0 : index
    %c0_16 = arith.constant 0 : index
    %c3 = arith.constant 3 : index
    %c0_17 = arith.constant 0 : index
    %20 = vector.load %arg1[%c0_15, %c0_16, %c3, %c0_17] : memref<2x1x40x256xf32, #tpu.memory_space<vmem>>, vector<2x1x32x256xf32>
    %21 = vector.shape_cast %20 : vector<2x1x32x256xf32> to vector<2x32x256xf32>
    %22 = vector.shape_cast %21 : vector<2x32x256xf32> to vector<64x256xf32>
    %23 = arith.truncf %22 : vector<64x256xf32> to vector<64x256xbf16>
    %c768 = arith.constant 768 : index
    %c0_18 = arith.constant 0 : index
    %24 = vector.load %arg2[%c768, %c0_18] : memref<1024x1024xbf16, #tpu.memory_space<vmem>>, vector<256x1024xbf16>
    %cst_19 = arith.constant dense<0.000000e+00> : vector<64x1024xf32>
    %25 = tpu.matmul %23, %24, %cst_19 {dimension_numbers = #tpu.dot_dimension_numbers<[1], [0], [0], [1], [0, 0, 1, 1], [], []>} : vector<64x256xbf16>, vector<256x1024xbf16>, vector<64x1024xf32> -> vector<64x1024xf32>
    %26 = arith.addf %19, %25 : vector<64x1024xf32>
    %27 = vector.extract_strided_slice %26 {offsets = [0, 0], sizes = [64, 512], strides = [1, 1]} : vector<64x1024xf32> to vector<64x512xf32>
    %28 = vector.extract_strided_slice %26 {offsets = [0, 512], sizes = [64, 512], strides = [1, 1]} : vector<64x1024xf32> to vector<64x512xf32>
    %29 = arith.mulf %27, %27 : vector<64x512xf32>
    %30 = arith.mulf %28, %28 : vector<64x512xf32>
    %31 = arith.addf %29, %30 : vector<64x512xf32>
    %32 = math.sqrt %31 : vector<64x512xf32>
    %33 = arith.truncf %32 : vector<64x512xf32> to vector<64x512xbf16>
    %c0_20 = arith.constant 0 : index
    %c0_21 = arith.constant 0 : index
    %34 = vector.load %arg3[%c0_20, %c0_21] : memref<512x128xbf16, #tpu.memory_space<vmem>>, vector<512x128xbf16>
    %cst_22 = arith.constant dense<0.000000e+00> : vector<64x128xf32>
    %35 = tpu.matmul %33, %34, %cst_22 {dimension_numbers = #tpu.dot_dimension_numbers<[1], [0], [0], [1], [0, 0, 1, 1], [], []>} : vector<64x512xbf16>, vector<512x128xbf16>, vector<64x128xf32> -> vector<64x128xf32>
    %cst_23 = arith.constant 1.000000e-07 : f32
    %36 = vector.broadcast %cst_23 : f32 to vector<64x128xf32>
    %37 = arith.maximumf %35, %36 : vector<64x128xf32>
    %38 = math.log %37 : vector<64x128xf32>
    %39 = vector.extract_strided_slice %38 {offsets = [0, 0], sizes = [32, 128], strides = [1, 1]} : vector<64x128xf32> to vector<32x128xf32>
    %40 = vector.extract_strided_slice %38 {offsets = [32, 0], sizes = [32, 128], strides = [1, 1]} : vector<64x128xf32> to vector<32x128xf32>
    %41 = arith.subf %39, %40 : vector<32x128xf32>
    %42 = math.absf %41 : vector<32x128xf32>
    %c1_i32 = arith.constant 1 : i32
    %c0_i32 = arith.constant 0 : i32
    %43 = arith.cmpi eq, %c1_i32, %c0_i32 : i32
    %c1_i32_24 = arith.constant 1 : i32
    %44 = arith.select %43, %c1_i32_24, %c1_i32 : i32
    %45 = arith.remsi %arg0, %44 : i32
    %c0_i32_25 = arith.constant 0 : i32
    %46 = arith.cmpi ne, %45, %c0_i32_25 : i32
    %c0_i32_26 = arith.constant 0 : i32
    %47 = arith.cmpi slt, %45, %c0_i32_26 : i32
    %c0_i32_27 = arith.constant 0 : i32
    %48 = arith.cmpi slt, %44, %c0_i32_27 : i32
    %49 = arith.xori %47, %48 : i1
    %50 = arith.andi %49, %46 : i1
    %51 = arith.addi %45, %44 : i32
    %52 = arith.select %50, %51, %45 : i32
    %c32_i32 = arith.constant 32 : i32
    %53 = arith.muli %52, %c32_i32 : i32
    %c17_i32 = arith.constant 17 : i32
    %54 = arith.subi %c17_i32, %53 : i32
    %c32_i32_28 = arith.constant 32 : i32
    %55 = arith.minsi %54, %c32_i32_28 : i32
    %56 = tpu.iota {dimensions = array<i32: 0>} : vector<32x128xi32>
    %57 = vector.broadcast %55 : i32 to vector<32x128xi32>
    %58 = arith.cmpi slt, %56, %57 : vector<32x128xi32>
    %cst_29 = arith.constant 0.000000e+00 : f32
    %59 = vector.broadcast %cst_29 : f32 to vector<32x128xf32>
    %60 = arith.select %58, %42, %59 : vector<32x128xi1>, vector<32x128xf32>
    %61 = vector.shape_cast %60 : vector<32x128xf32> to vector<4x8x128xf32>
    %cst_30 = arith.constant dense<0.000000e+00> : vector<8x128xf32>
    %62 = vector.multi_reduction <add>, %61, %cst_30 [0] : vector<4x8x128xf32> to vector<8x128xf32>
    %63 = vector.shape_cast %62 : vector<8x128xf32> to vector<1x8x128xf32>
    %c0_31 = arith.constant 0 : index
    %c0_32 = arith.constant 0 : index
    %c0_33 = arith.constant 0 : index
    %64 = vector.load %arg4[%c0_31, %c0_32, %c0_33] : memref<1x8x128xf32, #tpu.memory_space<vmem>>, vector<1x8x128xf32>
    tpu.vector_store %arg4[%c0_31, %c0_32, %c0_33], %63 {strides = array<i32>} : memref<1x8x128xf32, #tpu.memory_space<vmem>>, vector<1x8x128xf32>,
    return
  }
  func.func @transform_0(%arg0: i32) -> (i32, i32, i32, i32) {
    %c0_i32 = arith.constant 0 : i32
    %c0_i32_0 = arith.constant 0 : i32
    %c0_i32_1 = arith.constant 0 : i32
    %c0_i32_2 = arith.constant 0 : i32
    return %c0_i32, %arg0, %c0_i32_0, %c0_i32_1 : i32, i32, i32, i32
  }
  func.func @transform_1(%arg0: i32) -> (i32, i32) {
    %c0_i32 = arith.constant 0 : i32
    %c0_i32_0 = arith.constant 0 : i32
    %c0_i32_1 = arith.constant 0 : i32
    return %c0_i32, %c0_i32_0 : i32, i32
  }
  func.func @transform_2(%arg0: i32) -> (i32, i32) {
    %c0_i32 = arith.constant 0 : i32
    %c0_i32_0 = arith.constant 0 : i32
    %c0_i32_1 = arith.constant 0 : i32
    return %c0_i32, %c0_i32_0 : i32, i32
  }
  func.func @transform_3(%arg0: i32) -> (i32, i32, i32) {
    %c0_i32 = arith.constant 0 : i32
    %c0_i32_0 = arith.constant 0 : i32
    %c0_i32_1 = arith.constant 0 : i32
    return %arg0, %c0_i32, %c0_i32_0 : i32, i32, i32
  }
}

</mosaic_0001>

<llo_original>
// kernel: tpu_custom_call.1
$region0: #{tpu_custom_call.1}
  #allocation0 [shape = 'u32[]', space=smem, size = 0x4, offset = 0x4, fixed_abs, tag = 'smem constant byte address 0x4 - core index']
  #allocation1 [shape = 'u32[144,128]{1,0:T(1,128)}', space=vmem, size = 0x12000, scoped, tag = 'internal scratch']
  %s0 = inlined_call_operand.hbm [shape: f32[8,128], index: 0, kind: input, shape index: {}]
  %s1 = inlined_call_operand.hbm [shape: f32[8,128], index: 1, kind: output, shape index: {}]
  %s2 = sld [smem:[#allocation0]]
  $region41: #{tpu_custom_call.1} parent=0
    _
  %s4 = ssub.s32 1, %s2
  %s5 = scalar_select 0, %s4, %s2
  $region1: #{tpu_custom_call.1} parent=0
    #allocation2 [shape = 'u8[4096]{0}', space=vmem, size = 0x1000, scoped, tag = 'input window, operand 0, single buffered']
    #allocation3 [shape = 's32[2]{0}', space=sflag, size = 0x8, scoped, tag = 'scoped memory for tpu_custom_call.1']
    #allocation4 [shape = 's32[2]{0}', space=sflag, size = 0x8, scoped, tag = 'scoped memory for tpu_custom_call.1']
    #allocation5 [shape = 'u8[4096]{0}', space=vmem, size = 0x1000, scoped, tag = 'output window, operand 0, single buffered']
    %6 = vsyncpa [#allocation3], 0
    %7 = vsyncpa [#allocation4], 0
    loop: start=0, step=1, limit=4
    $region2: #{tpu_custom_call.1} parent=1 // loop_pre_header
      _
    $region3: #{tpu_custom_call.1} parent=1 // loop_header
      %s9 = sphi 0, %s13
      %p10 = scmp.ge.s32.totalorder %s9, 4
      %s17 = sphi 0, %s17
      %s19 = sphi 0, %s17
      %s20 = sphi 0, %s19
      %s34 = sphi 0, %s20
      %s38 = sphi 0, %s38
      %s40 = sphi 0, %s38
      %s41 = sphi 0, %s40
      %s55 = sphi 0, %s41
    $region4: #{tpu_custom_call.1} parent=1 // loop_header_branch
      %12 = sbr.rel (%p10) target = $region8
    $region5: #{tpu_custom_call.1} parent=1 // loop_body
      %s14 = ssub.s32 %s9, 1
      %s15 = ssub.s32 %s9, 2
      %s16 = sadd.s32 %s9, 1
      %s18 = sadd.s32 %s17, 1
      %p21 = scmp.eq.s32.totalorder %s9, 1
      %p22 = scmp.ne.s32.totalorder %s17, %s19
      %p23 = scmp.eq.s32.totalorder %s9, 0
      %p24 = por %p22, %p23
      %p25 = scmp.ne.s32.totalorder %s17, %s19
      %p26 = scmp.eq.s32.totalorder %s14, 1
      %p27 = por %p25, %p26
      %p28 = scmp.ne.s32.totalorder %s19, %s20
      %p29 = scmp.eq.s32.totalorder %s14, 0
      %p30 = por %p28, %p29
      %p31 = scmp.ne.s32.totalorder %s19, %s20
      %p32 = scmp.eq.s32.totalorder %s15, 1
      %p33 = por %p31, %p32
      %p35 = scmp.ne.s32.totalorder %s20, %s34
      %p36 = scmp.eq.s32.totalorder %s15, 0
      %p37 = por %p35, %p36
      %s39 = sadd.s32 %s38, 1
      %p42 = scmp.eq.s32.totalorder %s9, 1
      %p43 = scmp.ne.s32.totalorder %s38, %s40
      %p44 = scmp.eq.s32.totalorder %s9, 0
      %p45 = por %p43, %p44
      %p46 = scmp.ne.s32.totalorder %s38, %s40
      %p47 = scmp.eq.s32.totalorder %s14, 1
      %p48 = por %p46, %p47
      %p49 = scmp.ne.s32.totalorder %s40, %s41
      %p50 = scmp.eq.s32.totalorder %s14, 0
      %p51 = por %p49, %p50
      %p52 = scmp.ne.s32.totalorder %s40, %s41
      %p53 = scmp.eq.s32.totalorder %s15, 1
      %p54 = por %p52, %p53
      %p56 = scmp.ne.s32.totalorder %s41, %s55
      %p57 = scmp.eq.s32.totalorder %s15, 0
      %p58 = por %p56, %p57
      %p59 = scmp.le.s32.totalorder 1, %s9
      %p60 = scmp.lt.s32.totalorder %s9, 3
      %p61 = pnand %p59, %p60
      %p62 = pneg %p61
      // Predicated region
      $region9: #{tpu_custom_call.1} parent=5 // pred_check
        _
      $region10: #{tpu_custom_call.1} parent=5 // pred_check_branch
        %64 = sbr.rel (%p61) target = $region12
      $region11: #{tpu_custom_call.1} parent=5 // pred_region
        %s65 = ssub.s32 %s9, 1
        // Predicated region
        $region13: #{tpu_custom_call.1} parent=11 // pred_check
          %p66 = pneg %p30
        $region14: #{tpu_custom_call.1} parent=11 // pred_check_branch
          %68 = sbr.rel (%p66) target = $region16
        $region15: #{tpu_custom_call.1} parent=11 // pred_region
          %s70 = ssub.s32 128, 128
          %71 = vsyncadd [#allocation3], %s70
          %s73 = sshll.u32 [#allocation2], 4
          %s74 = int_to_ptr.vmem [resolvable:$true] %s73
          %76 = dma.hbm_to_vmem [thread:$0]  %s0, 128, %s74, [#allocation3]
        $region16: #{tpu_custom_call.1} parent=11 // pred_fallthru
          _
      $region12: #{tpu_custom_call.1} parent=5 // pred_fallthru
        _
      %p77 = scmp.lt.s32.totalorder %s9, 2
      // Predicated region
      $region17: #{tpu_custom_call.1} parent=5 // pred_check
        %p78 = pneg %p77
      $region18: #{tpu_custom_call.1} parent=5 // pred_check_branch
        %80 = sbr.rel (%p78) target = $region20
      $region19: #{tpu_custom_call.1} parent=5 // pred_region
        _
      $region20: #{tpu_custom_call.1} parent=5 // pred_fallthru
        _
      %p81 = scmp.le.s32.totalorder 1, %s9
      %p82 = scmp.lt.s32.totalorder %s9, 3
      %p83 = pnand %p81, %p82
      %p84 = pneg %p83
      // Predicated region
      $region21: #{tpu_custom_call.1} parent=5 // pred_check
        _
      $region22: #{tpu_custom_call.1} parent=5 // pred_check_branch
        %86 = sbr.rel (%p83) target = $region24
      $region23: #{tpu_custom_call.1} parent=5 // pred_region
        %s87 = ssub.s32 %s9, 1
        // Predicated region
        $region25: #{tpu_custom_call.1} parent=23 // pred_check
          %p88 = pneg %p30
        $region26: #{tpu_custom_call.1} parent=23 // pred_check_branch
          %90 = sbr.rel (%p88) target = $region28
        $region27: #{tpu_custom_call.1} parent=23 // pred_region
          %91 = dma.done [#allocation3], 128
        $region28: #{tpu_custom_call.1} parent=23 // pred_fallthru
          _
        %p92 = pneg %p30
        %p93 = pneg %p27
        %p94 = pneg %p51
        %p95 = pneg %p48
        %v96 = vld [vmem:[#allocation2] sm:$0xff]
        %v97 = vadd.f32 %v96, 1.0
        %98 = vst [vmem:[#allocation5] sm:$0xff] %v97
        // Predicated region
        $region29: #{tpu_custom_call.1} parent=23 // pred_check
          %p99 = pneg %p48
        $region30: #{tpu_custom_call.1} parent=23 // pred_check_branch
          %101 = sbr.rel (%p99) target = $region32
        $region31: #{tpu_custom_call.1} parent=23 // pred_region
          %s103 = ssub.s32 128, 128
          %104 = vsyncadd [#allocation4], %s103
          %s106 = sshll.u32 [#allocation5], 4
          %s107 = int_to_ptr.vmem [resolvable:$true] %s106
          %109 = dma.vmem_to_hbm [thread:$0]  %s107, 128, %s1, [#allocation4]
        $region32: #{tpu_custom_call.1} parent=23 // pred_fallthru
          _
        // Predicated region
        $region33: #{tpu_custom_call.1} parent=23 // pred_check
          %p110 = pneg %p48
        $region34: #{tpu_custom_call.1} parent=23 // pred_check_branch
          %112 = sbr.rel (%p110) target = $region36
        $region35: #{tpu_custom_call.1} parent=23 // pred_region
          %113 = dma.done [#allocation4], 128
        $region36: #{tpu_custom_call.1} parent=23 // pred_fallthru
          _
      $region24: #{tpu_custom_call.1} parent=5 // pred_fallthru
        _
      %p114 = scmp.le.s32.totalorder 2, %s9
      // Predicated region
      $region37: #{tpu_custom_call.1} parent=5 // pred_check
        %p115 = pneg %p114
      $region38: #{tpu_custom_call.1} parent=5 // pred_check_branch
        %117 = sbr.rel (%p115) target = $region40
      $region39: #{tpu_custom_call.1} parent=5 // pred_region
        %s118 = ssub.s32 %s9, 2
      $region40: #{tpu_custom_call.1} parent=5 // pred_fallthru
        _
    $region6: #{tpu_custom_call.1} parent=1 // loop_footer
      %s13 = sadd.s32 1, %s9
    $region7: #{tpu_custom_call.1} parent=1 // loop_footer_branch
      %8 = sbr.rel target = $region3
    $region8: #{tpu_custom_call.1} parent=1 // loop_exit
      _
    %119 = vsyncpa [#allocation3], 1
    %s120 = scalar_lea.sflag [#allocation3], 1
    %121 = vsyncpa %s120, 1
    %122 = vsyncpa [#allocation4], 1
    %s123 = scalar_lea.sflag [#allocation4], 1
    %124 = vsyncpa %s123, 1

// kernel: mel_spec_reconstruction_loss.1
$region0: #{mel_spec_reconstruction_loss.1}
  #allocation0 [shape = 'u32[]', space=smem, size = 0x4, offset = 0x4, fixed_abs, tag = 'smem constant byte address 0x4 - core index']
  #allocation1 [shape = 'u32[144,128]{1,0:T(1,128)}', space=vmem, size = 0x12000, scoped, tag = 'internal scratch']
  %s0 = inlined_call_operand.vmem [shape: f32[2,2,40,256], index: 0, kind: input, shape index: {}]
  %s1 = inlined_call_operand.hbm [shape: bf16[1024,1024], index: 1, kind: input, shape index: {}]
  %s2 = inlined_call_operand.hbm [shape: bf16[512,128], index: 2, kind: input, shape index: {}]
  %s3 = inlined_call_operand.vmem [shape: f32[2,8,128], index: 3, kind: output, shape index: {}]
  %s4 = sld [smem:[#allocation0]]
  $region76: #{mel_spec_reconstruction_loss.1} parent=0
    _
  %s6 = ssub.s32 1, %s4
  %s7 = scalar_select 0, %s6, %s4
  $region1: #{mel_spec_reconstruction_loss.1} parent=0
    #allocation2 [shape = 'u8[163840]{0}', space=vmem, size = 0x28000, scoped, tag = 'input window, operand 0']
    #allocation3 [shape = 'u8[2097152]{0}', space=vmem, size = 0x200000, scoped, tag = 'input window, operand 1, single buffered']
    #allocation4 [shape = 's32[2]{0}', space=sflag, size = 0x8, scoped, tag = 'scoped memory for mel_spec_reconstruction_loss.1']
    #allocation5 [shape = 'u8[131072]{0}', space=vmem, size = 0x20000, scoped, tag = 'input window, operand 2, single buffered']
    #allocation6 [shape = 's32[1]{0}', space=sflag, size = 0x4, scoped, tag = 'scoped memory for mel_spec_reconstruction_loss.1']
    %8 = vsyncpa [#allocation4], 0
    %9 = vsyncpa [#allocation6], 0
    loop: start=0, step=1, limit=4
    $region2: #{mel_spec_reconstruction_loss.1} parent=1 // loop_pre_header
      _
    $region3: #{mel_spec_reconstruction_loss.1} parent=1 // loop_header
      %s11 = sphi 0, %s15
      %p12 = scmp.ge.s32.totalorder %s11, 4
      %s21 = sphi 0, %s23
      %s24 = sphi 0, %s21
      %s25 = sphi 0, %s24
      %s41 = sphi 0, %s25
      %s45 = sphi 0, %s45
      %s47 = sphi 0, %s45
      %s48 = sphi 0, %s47
      %s62 = sphi 0, %s48
      %s66 = sphi 0, %s66
      %s68 = sphi 0, %s66
      %s69 = sphi 0, %s68
      %s83 = sphi 0, %s69
      %s89 = sphi 0, %s91
      %s92 = sphi 0, %s89
      %s93 = sphi 0, %s92
      %s109 = sphi 0, %s93
    $region4: #{mel_spec_reconstruction_loss.1} parent=1 // loop_header_branch
      %14 = sbr.rel (%p12) target = $region8
    $region5: #{mel_spec_reconstruction_loss.1} parent=1 // loop_body
      %s16 = ssub.s32 %s11, 1
      %s17 = ssub.s32 %s11, 2
      %s18 = sadd.s32 %s11, 1
      %s19 = ssub.s32 %s11, %s18
      %p20 = scmp.eq.s32.totalorder %s19, 0
      %s22 = sadd.s32 %s21, 1
      %s23 = scalar_select %p20, %s21, %s22
      %p26 = pneg %p20
      %p27 = scmp.eq.s32.totalorder %s11, 1
      %p28 = por %p26, %p27
      %p29 = scmp.ne.s32.totalorder %s21, %s24
      %p30 = scmp.eq.s32.totalorder %s11, 0
      %p31 = por %p29, %p30
      %p32 = scmp.ne.s32.totalorder %s21, %s24
      %p33 = scmp.eq.s32.totalorder %s16, 1
      %p34 = por %p32, %p33
      %p35 = scmp.ne.s32.totalorder %s24, %s25
      %p36 = scmp.eq.s32.totalorder %s16, 0
      %p37 = por %p35, %p36
      %p38 = scmp.ne.s32.totalorder %s24, %s25
      %p39 = scmp.eq.s32.totalorder %s17, 1
      %p40 = por %p38, %p39
      %p42 = scmp.ne.s32.totalorder %s25, %s41
      %p43 = scmp.eq.s32.totalorder %s17, 0
      %p44 = por %p42, %p43
      %s46 = sadd.s32 %s45, 1
      %p49 = scmp.eq.s32.totalorder %s11, 1
      %p50 = scmp.ne.s32.totalorder %s45, %s47
      %p51 = scmp.eq.s32.totalorder %s11, 0
      %p52 = por %p50, %p51
      %p53 = scmp.ne.s32.totalorder %s45, %s47
      %p54 = scmp.eq.s32.totalorder %s16, 1
      %p55 = por %p53, %p54
      %p56 = scmp.ne.s32.totalorder %s47, %s48
      %p57 = scmp.eq.s32.totalorder %s16, 0
      %p58 = por %p56, %p57
      %p59 = scmp.ne.s32.totalorder %s47, %s48
      %p60 = scmp.eq.s32.totalorder %s17, 1
      %p61 = por %p59, %p60
      %p63 = scmp.ne.s32.totalorder %s48, %s62
      %p64 = scmp.eq.s32.totalorder %s17, 0
      %p65 = por %p63, %p64
      %s67 = sadd.s32 %s66, 1
      %p70 = scmp.eq.s32.totalorder %s11, 1
      %p71 = scmp.ne.s32.totalorder %s66, %s68
      %p72 = scmp.eq.s32.totalorder %s11, 0
      %p73 = por %p71, %p72
      %p74 = scmp.ne.s32.totalorder %s66, %s68
      %p75 = scmp.eq.s32.totalorder %s16, 1
      %p76 = por %p74, %p75
      %p77 = scmp.ne.s32.totalorder %s68, %s69
      %p78 = scmp.eq.s32.totalorder %s16, 0
      %p79 = por %p77, %p78
      %p80 = scmp.ne.s32.totalorder %s68, %s69
      %p81 = scmp.eq.s32.totalorder %s17, 1
      %p82 = por %p80, %p81
      %p84 = scmp.ne.s32.totalorder %s69, %s83
      %p85 = scmp.eq.s32.totalorder %s17, 0
      %p86 = por %p84, %p85
      %s87 = ssub.s32 %s11, %s18
      %p88 = scmp.eq.s32.totalorder %s87, 0
      %s90 = sadd.s32 %s89, 1
      %s91 = scalar_select %p88, %s89, %s90
      %p94 = pneg %p88
      %p95 = scmp.eq.s32.totalorder %s11, 1
      %p96 = por %p94, %p95
      %p97 = scmp.ne.s32.totalorder %s89, %s92
      %p98 = scmp.eq.s32.totalorder %s11, 0
      %p99 = por %p97, %p98
      %p100 = scmp.ne.s32.totalorder %s89, %s92
      %p101 = scmp.eq.s32.totalorder %s16, 1
      %p102 = por %p100, %p101
      %p103 = scmp.ne.s32.totalorder %s92, %s93
      %p104 = scmp.eq.s32.totalorder %s16, 0
      %p105 = por %p103, %p104
      %p106 = scmp.ne.s32.totalorder %s92, %s93
      %p107 = scmp.eq.s32.totalorder %s17, 1
      %p108 = por %p106, %p107
      %p110 = scmp.ne.s32.totalorder %s93, %s109
      %p111 = scmp.eq.s32.totalorder %s17, 0
      %p112 = por %p110, %p111
      %p113 = scmp.le.s32.totalorder 1, %s11
      %p114 = scmp.lt.s32.totalorder %s11, 3
      %p115 = pnand %p113, %p114
      %p116 = pneg %p115
      // Predicated region
      $region9: #{mel_spec_reconstruction_loss.1} parent=5 // pred_check
        _
      $region10: #{mel_spec_reconstruction_loss.1} parent=5 // pred_check_branch
        %118 = sbr.rel (%p115) target = $region12
      $region11: #{mel_spec_reconstruction_loss.1} parent=5 // pred_region
        %s119 = ssub.s32 %s11, 1
        // Predicated region
        $region13: #{mel_spec_reconstruction_loss.1} parent=11 // pred_check
          %p120 = pneg %p58
        $region14: #{mel_spec_reconstruction_loss.1} parent=11 // pred_check_branch
          %122 = sbr.rel (%p120) target = $region16
        $region15: #{mel_spec_reconstruction_loss.1} parent=11 // pred_region
          %s124 = ssub.s32 65536, 65536
          %125 = vsyncadd [#allocation4], %s124
          %s126 = sshll.u32 [#allocation3], 4
          %s127 = int_to_ptr.vmem [resolvable:$true] %s126
          %132 = dma.hbm_to_vmem [thread:$0]  %s1, 65536, %s127, [#allocation4], 512, 512, 32
        $region16: #{mel_spec_reconstruction_loss.1} parent=11 // pred_fallthru
          _
        // Predicated region
        $region17: #{mel_spec_reconstruction_loss.1} parent=11 // pred_check
          %p133 = pneg %p79
        $region18: #{mel_spec_reconstruction_loss.1} parent=11 // pred_check_branch
          %135 = sbr.rel (%p133) target = $region20
        $region19: #{mel_spec_reconstruction_loss.1} parent=11 // pred_region
          %s137 = ssub.s32 4096, 4096
          %138 = vsyncadd [#allocation6], %s137
          %s139 = sshll.u32 [#allocation5], 4
          %s140 = int_to_ptr.vmem [resolvable:$true] %s139
          %145 = dma.hbm_to_vmem [thread:$0]  %s2, 4096, %s140, [#allocation6], 64, 64, 4
        $region20: #{mel_spec_reconstruction_loss.1} parent=11 // pred_fallthru
          _
      $region12: #{mel_spec_reconstruction_loss.1} parent=5 // pred_fallthru
        _
      %p146 = scmp.lt.s32.totalorder %s11, 2
      // Predicated region
      $region21: #{mel_spec_reconstruction_loss.1} parent=5 // pred_check
        %p147 = pneg %p146
      $region22: #{mel_spec_reconstruction_loss.1} parent=5 // pred_check_branch
        %149 = sbr.rel (%p147) target = $region24
      $region23: #{mel_spec_reconstruction_loss.1} parent=5 // pred_region
        // Predicated region
        $region25: #{mel_spec_reconstruction_loss.1} parent=23 // pred_check
          %p150 = pneg %p31
        $region26: #{mel_spec_reconstruction_loss.1} parent=23 // pred_check_branch
          %152 = sbr.rel (%p150) target = $region28
        $region27: #{mel_spec_reconstruction_loss.1} parent=23 // pred_region
          %s153 = sand.u32 %s21, 1
          %s154 = sand.u32 %s21, 1
          %s155 = smul.addr %s154, 160
          %s156 = scalar_lea.vmem [#allocation2], %s155
          %s157 = smul.addr %s11, 10
          %s158 = smul.addr %s157, 8
          %s159 = scalar_lea.vmem %s0, %s158
          // Predicated region
          $region29: #{mel_spec_reconstruction_loss.1} parent=27 // pred_check
            _
          $region30: #{mel_spec_reconstruction_loss.1} parent=27 // pred_check_branch
            %161 = sbr.rel (0) target = $region32
          $region31: #{mel_spec_reconstruction_loss.1} parent=27 // pred_region
            // Predicated region
            $region33: #{mel_spec_reconstruction_loss.1} parent=31 // pred_check
              _
            $region34: #{mel_spec_reconstruction_loss.1} parent=31 // pred_check_branch
              %163 = sbr.rel (0) target = $region36
            $region35: #{mel_spec_reconstruction_loss.1} parent=31 // pred_region
              loop: start=0, step=1, limit=1
              $region37: #{mel_spec_reconstruction_loss.1} parent=35 // loop_pre_header
                _
              $region38: #{mel_spec_reconstruction_loss.1} parent=35 // loop_header
                %s165 = sphi 0, %s169
                %p166 = scmp.ge.s32.totalorder %s165, 1
                %s170 = sphi %s159, %s159
                %s171 = sphi %s156, %s156
              $region39: #{mel_spec_reconstruction_loss.1} parent=35 // loop_header_branch
                %168 = sbr.rel (%p166) target = $region43
              $region40: #{mel_spec_reconstruction_loss.1} parent=35 // loop_body
                %v172 = vld [vmem:[%s170] sm:$0xff]
                %173 = vst [vmem:[%s171] sm:$0xff] %v172
                %v174 = vld [vmem:[%s170 + $0x8] sm:$0xff]
                %175 = vst [vmem:[%s171 + $0x8] sm:$0xff] %v174
                %v176 = vld [vmem:[%s170 + $0x10] sm:$0xff]
                %177 = vst [vmem:[%s171 + $0x10] sm:$0xff] %v176
                %v178 = vld [vmem:[%s170 + $0x18] sm:$0xff]
                %179 = vst [vmem:[%s171 + $0x18] sm:$0xff] %v178
                %v180 = vld [vmem:[%s170 + $0x20] sm:$0xff]
                %181 = vst [vmem:[%s171 + $0x20] sm:$0xff] %v180
                %v182 = vld [vmem:[%s170 + $0x28] sm:$0xff]
                %183 = vst [vmem:[%s171 + $0x28] sm:$0xff] %v182
                %v184 = vld [vmem:[%s170 + $0x30] sm:$0xff]
                %185 = vst [vmem:[%s171 + $0x30] sm:$0xff] %v184
                %v186 = vld [vmem:[%s170 + $0x38] sm:$0xff]
                %187 = vst [vmem:[%s171 + $0x38] sm:$0xff] %v186
                %v188 = vld [vmem:[%s170 + $0x40] sm:$0xff]
                %189 = vst [vmem:[%s171 + $0x40] sm:$0xff] %v188
                %v190 = vld [vmem:[%s170 + $0x48] sm:$0xff]
                %191 = vst [vmem:[%s171 + $0x48] sm:$0xff] %v190
                %v192 = vld [vmem:[%s170 + $0xa0] sm:$0xff]
                %193 = vst [vmem:[%s171 + $0x50] sm:$0xff] %v192
                %v194 = vld [vmem:[%s170 + $0xa8] sm:$0xff]
                %195 = vst [vmem:[%s171 + $0x58] sm:$0xff] %v194
                %v196 = vld [vmem:[%s170 + $0xb0] sm:$0xff]
                %197 = vst [vmem:[%s171 + $0x60] sm:$0xff] %v196
                %v198 = vld [vmem:[%s170 + $0xb8] sm:$0xff]
                %199 = vst [vmem:[%s171 + $0x68] sm:$0xff] %v198
                %v200 = vld [vmem:[%s170 + $0xc0] sm:$0xff]
                %201 = vst [vmem:[%s171 + $0x70] sm:$0xff] %v200
                %v202 = vld [vmem:[%s170 + $0xc8] sm:$0xff]
                %203 = vst [vmem:[%s171 + $0x78] sm:$0xff] %v202
                %v204 = vld [vmem:[%s170 + $0xd0] sm:$0xff]
                %205 = vst [vmem:[%s171 + $0x80] sm:$0xff] %v204
                %v206 = vld [vmem:[%s170 + $0xd8] sm:$0xff]
                %207 = vst [vmem:[%s171 + $0x88] sm:$0xff] %v206
                %v208 = vld [vmem:[%s170 + $0xe0] sm:$0xff]
                %209 = vst [vmem:[%s171 + $0x90] sm:$0xff] %v208
                %v210 = vld [vmem:[%s170 + $0xe8] sm:$0xff]
                %211 = vst [vmem:[%s171 + $0x98] sm:$0xff] %v210
              $region41: #{mel_spec_reconstruction_loss.1} parent=35 // loop_footer
                %s169 = sadd.s32 1, %s165
              $region42: #{mel_spec_reconstruction_loss.1} parent=35 // loop_footer_branch
                %164 = sbr.rel target = $region38
              $region43: #{mel_spec_reconstruction_loss.1} parent=35 // loop_exit
                _
            $region36: #{mel_spec_reconstruction_loss.1} parent=31 // pred_fallthru
              _
            // Predicated region
            $region44: #{mel_spec_reconstruction_loss.1} parent=31 // pred_check
              _
            $region45: #{mel_spec_reconstruction_loss.1} parent=31 // pred_check_branch
              %213 = sbr.rel target = $region47
            $region46: #{mel_spec_reconstruction_loss.1} parent=31 // pred_region
              _
            $region47: #{mel_spec_reconstruction_loss.1} parent=31 // pred_fallthru
              _
          $region32: #{mel_spec_reconstruction_loss.1} parent=27 // pred_fallthru
            _
          %214 = vnop
        $region28: #{mel_spec_reconstruction_loss.1} parent=23 // pred_fallthru
          _
      $region24: #{mel_spec_reconstruction_loss.1} parent=5 // pred_fallthru
        _
      %p215 = scmp.le.s32.totalorder 1, %s11
      %p216 = scmp.lt.s32.totalorder %s11, 3
      %p217 = pnand %p215, %p216
      %p218 = pneg %p217
      // Predicated region
      $region48: #{mel_spec_reconstruction_loss.1} parent=5 // pred_check
        _
      $region49: #{mel_spec_reconstruction_loss.1} parent=5 // pred_check_branch
        %220 = sbr.rel (%p217) target = $region51
      $region50: #{mel_spec_reconstruction_loss.1} parent=5 // pred_region
        %s221 = ssub.s32 %s11, 1
        %s222 = sand.u32 %s24, 1
        %s223 = sand.u32 %s24, 1
        %s224 = smul.addr %s223, 160
        %s225 = scalar_lea.vmem [#allocation2], %s224
        // Predicated region
        $region52: #{mel_spec_reconstruction_loss.1} parent=50 // pred_check
          %p226 = pneg %p37
        $region53: #{mel_spec_reconstruction_loss.1} parent=50 // pred_check_branch
          %228 = sbr.rel (%p226) target = $region55
        $region54: #{mel_spec_reconstruction_loss.1} parent=50 // pred_region
          _
        $region55: #{mel_spec_reconstruction_loss.1} parent=50 // pred_fallthru
          _
        // Predicated region
        $region56: #{mel_spec_reconstruction_loss.1} parent=50 // pred_check
          %p229 = pneg %p58
        $region57: #{mel_spec_reconstruction_loss.1} parent=50 // pred_check_branch
          %231 = sbr.rel (%p229) target = $region59
        $region58: #{mel_spec_reconstruction_loss.1} parent=50 // pred_region
          %232 = dma.done [#allocation4], 65536
        $region59: #{mel_spec_reconstruction_loss.1} parent=50 // pred_fallthru
          _
        // Predicated region
        $region60: #{mel_spec_reconstruction_loss.1} parent=50 // pred_check
          %p233 = pneg %p79
        $region61: #{mel_spec_reconstruction_loss.1} parent=50 // pred_check_branch
          %235 = sbr.rel (%p233) target = $region63
        $region62: #{mel_spec_reconstruction_loss.1} parent=50 // pred_region
          %236 = dma.done [#allocation6], 4096
        $region63: #{mel_spec_reconstruction_loss.1} parent=50 // pred_fallthru
          _
        %s237 = sand.u32 %s24, 1
        %s238 = sand.u32 %s24, 1
        %s239 = smul.addr %s238, 160
        %s240 = scalar_lea.vmem [#allocation2], %s239
        %p241 = pneg %p37
        %p242 = pneg %p34
        %p243 = pneg %p58
        %p244 = pneg %p55
        %p245 = pneg %p79
        %p246 = pneg %p76
        %p247 = pneg %p105
        %p248 = pneg %p102
        %p249 = scmp.lt.s32.totalorder %s16, 1
        %s250 = scalar_select %p249, %s16, 1
        %s251 = smul.addr %s250, 8
        %s252 = scalar_lea.vmem %s3, %s251
        %p253 = scmp.lt.s32.totalorder %s16, 1
        %s254 = scalar_select %p253, %s16, 1
        %s255 = smul.addr %s254, 8
        %s256 = scalar_lea.vmem %s3, %s255
        %v258 = vld [vmem:[%s225] sm:$0xff]
        %v259 = vld [vmem:[%s225 + $0x8] sm:$0xff]
        %v260 = vld [vmem:[%s225 + $0x10] sm:$0xff]
        %v261 = vld [vmem:[%s225 + $0x18] sm:$0xff]
        %v262 = vld [vmem:[%s225 + $0x20] sm:$0xff]
        %v263 = vld [vmem:[%s225 + $0x28] sm:$0xff]
        %v264 = vld [vmem:[%s225 + $0x30] sm:$0xff]
        %v265 = vld [vmem:[%s225 + $0x38] sm:$0xff]
        %v266 = vld [vmem:[%s225 + $0x50] sm:$0xff]
        %v267 = vld [vmem:[%s225 + $0x58] sm:$0xff]
        %v268 = vld [vmem:[%s225 + $0x60] sm:$0xff]
        %v269 = vld [vmem:[%s225 + $0x68] sm:$0xff]
        %v270 = vld [vmem:[%s225 + $0x70] sm:$0xff]
        %v271 = vld [vmem:[%s225 + $0x78] sm:$0xff]
        %v272 = vld [vmem:[%s225 + $0x80] sm:$0xff]
        %v273 = vld [vmem:[%s225 + $0x88] sm:$0xff]
        %v274 = vpack.c.bf16 %v260, %v258
        %v275 = vpack.c.bf16 %v261, %v259
        %v276 = vpack.c.bf16 %v264, %v262
        %v277 = vpack.c.bf16 %v265, %v263
        %v278 = vpack.c.bf16 %v268, %v266
        %v279 = vpack.c.bf16 %v269, %v267
        %v280 = vpack.c.bf16 %v272, %v270
        %v281 = vpack.c.bf16 %v273, %v271
        %v282 = vld [vmem:[#allocation3] sm:$0xff]
        %v283 = vld [vmem:[#allocation3 + $0x8] sm:$0xff]
        %v284 = vld [vmem:[#allocation3 + $0x10] sm:$0xff]
        %v285 = vld [vmem:[#allocation3 + $0x18] sm:$0xff]
        %v286 = vld [vmem:[#allocation3 + $0x20] sm:$0xff]
        %v287 = vld [vmem:[#allocation3 + $0x28] sm:$0xff]
        %v288 = vld [vmem:[#allocation3 + $0x30] sm:$0xff]
        %v289 = vld [vmem:[#allocation3 + $0x38] sm:$0xff]
        %v290 = vld [vmem:[#allocation3 + $0x40] sm:$0xff]
        %v291 = vld [vmem:[#allocation3 + $0x48] sm:$0xff]
        %v292 = vld [vmem:[#allocation3 + $0x50] sm:$0xff]
        %v293 = vld [vmem:[#allocation3 + $0x58] sm:$0xff]
        %v294 = vld [vmem:[#allocation3 + $0x60] sm:$0xff]
        %v295 = vld [vmem:[#allocation3 + $0x68] sm:$0xff]
        %v296 = vld [vmem:[#allocation3 + $0x70] sm:$0xff]
        %v297 = vld [vmem:[#allocation3 + $0x78] sm:$0xff]
        %v298 = vld [vmem:[#allocation3 + $0x80] sm:$0xff]
        %v299 = vld [vmem:[#allocation3 + $0x88] sm:$0xff]
        %v300 = vld [vmem:[#allocation3 + $0x90] sm:$0xff]
        %v301 = vld [vmem:[#allocation3 + $0x98] sm:$0xff]
        %v302 = vld [vmem:[#allocation3 + $0xa0] sm:$0xff]
        %v303 = vld [vmem:[#allocation3 + $0xa8] sm:$0xff]
        %v304 = vld [vmem:[#allocation3 + $0xb0] sm:$0xff]
        %v305 = vld [vmem:[#allocation3 + $0xb8] sm:$0xff]
        %v306 = vld [vmem:[#allocation3 + $0xc0] sm:$0xff]
        %v307 = vld [vmem:[#allocation3 + $0xc8] sm:$0xff]
        %v308 = vld [vmem:[#allocation3 + $0xd0] sm:$0xff]
        %v309 = vld [vmem:[#allocation3 + $0xd8] sm:$0xff]
        %v310 = vld [vmem:[#allocation3 + $0xe0] sm:$0xff]
        %v311 = vld [vmem:[#allocation3 + $0xe8] sm:$0xff]
        %v312 = vld [vmem:[#allocation3 + $0xf0] sm:$0xff]
        %v313 = vld [vmem:[#allocation3 + $0xf8] sm:$0xff]
        %v314 = vld [vmem:[#allocation3 + $0x100] sm:$0xff]
        %v315 = vld [vmem:[#allocation3 + $0x108] sm:$0xff]
        %v316 = vld [vmem:[#allocation3 + $0x110] sm:$0xff]
        %v317 = vld [vmem:[#allocation3 + $0x118] sm:$0xff]
        %v318 = vld [vmem:[#allocation3 + $0x120] sm:$0xff]
        %v319 = vld [vmem:[#allocation3 + $0x128] sm:$0xff]
        %v320 = vld [vmem:[#allocation3 + $0x130] sm:$0xff]
        %v321 = vld [vmem:[#allocation3 + $0x138] sm:$0xff]
        %v322 = vld [vmem:[#allocation3 + $0x140] sm:$0xff]
        %v323 = vld [vmem:[#allocation3 + $0x148] sm:$0xff]
        %v324 = vld [vmem:[#allocation3 + $0x150] sm:$0xff]
        %v325 = vld [vmem:[#allocation3 + $0x158] sm:$0xff]
        %v326 = vld [vmem:[#allocation3 + $0x160] sm:$0xff]
        %v327 = vld [vmem:[#allocation3 + $0x168] sm:$0xff]
        %v328 = vld [vmem:[#allocation3 + $0x170] sm:$0xff]
        %v329 = vld [vmem:[#allocation3 + $0x178] sm:$0xff]
        %v330 = vld [vmem:[#allocation3 + $0x180] sm:$0xff]
        %v331 = vld [vmem:[#allocation3 + $0x188] sm:$0xff]
        %v332 = vld [vmem:[#allocation3 + $0x190] sm:$0xff]
        %v333 = vld [vmem:[#allocation3 + $0x198] sm:$0xff]
        %v334 = vld [vmem:[#allocation3 + $0x1a0] sm:$0xff]
        %v335 = vld [vmem:[#allocation3 + $0x1a8] sm:$0xff]
        %v336 = vld [vmem:[#allocation3 + $0x1b0] sm:$0xff]
        %v337 = vld [vmem:[#allocation3 + $0x1b8] sm:$0xff]
        %v338 = vld [vmem:[#allocation3 + $0x1c0] sm:$0xff]
        %v339 = vld [vmem:[#allocation3 + $0x1c8] sm:$0xff]
        %v340 = vld [vmem:[#allocation3 + $0x1d0] sm:$0xff]
        %v341 = vld [vmem:[#allocation3 + $0x1d8] sm:$0xff]
        %v342 = vld [vmem:[#allocation3 + $0x1e0] sm:$0xff]
        %v343 = vld [vmem:[#allocation3 + $0x1e8] sm:$0xff]
        %v344 = vld [vmem:[#allocation3 + $0x1f0] sm:$0xff]
        %v345 = vld [vmem:[#allocation3 + $0x1f8] sm:$0xff]
        %v346 = vld [vmem:[#allocation3 + $0x200] sm:$0xff]
        %v347 = vld [vmem:[#allocation3 + $0x208] sm:$0xff]
        %v348 = vld [vmem:[#allocation3 + $0x210] sm:$0xff]
        %v349 = vld [vmem:[#allocation3 + $0x218] sm:$0xff]
        %v350 = vld [vmem:[#allocation3 + $0x220] sm:$0xff]
        %v351 = vld [vmem:[#allocation3 + $0x228] sm:$0xff]
        %v352 = vld [vmem:[#allocation3 + $0x230] sm:$0xff]
        %v353 = vld [vmem:[#allocation3 + $0x238] sm:$0xff]
        %v354 = vld [vmem:[#allocation3 + $0x240] sm:$0xff]
        %v355 = vld [vmem:[#allocation3 + $0x248] sm:$0xff]
        %v356 = vld [vmem:[#allocation3 + $0x250] sm:$0xff]
        %v357 = vld [vmem:[#allocation3 + $0x258] sm:$0xff]
        %v358 = vld [vmem:[#allocation3 + $0x260] sm:$0xff]
        %v359 = vld [vmem:[#allocation3 + $0x268] sm:$0xff]
        %v360 = vld [vmem:[#allocation3 + $0x270] sm:$0xff]
        %v361 = vld [vmem:[#allocation3 + $0x278] sm:$0xff]
        %v362 = vld [vmem:[#allocation3 + $0x280] sm:$0xff]
        %v363 = vld [vmem:[#allocation3 + $0x288] sm:$0xff]
        %v364 = vld [vmem:[#allocation3 + $0x290] sm:$0xff]
        %v365 = vld [vmem:[#allocation3 + $0x298] sm:$0xff]
        %v366 = vld [vmem:[#allocation3 + $0x2a0] sm:$0xff]
        %v367 = vld [vmem:[#allocation3 + $0x2a8] sm:$0xff]
        %v368 = vld [vmem:[#allocation3 + $0x2b0] sm:$0xff]
        %v369 = vld [vmem:[#allocation3 + $0x2b8] sm:$0xff]
        %v370 = vld [vmem:[#allocation3 + $0x2c0] sm:$0xff]
        %v371 = vld [vmem:[#allocation3 + $0x2c8] sm:$0xff]
        %v372 = vld [vmem:[#allocation3 + $0x2d0] sm:$0xff]
        %v373 = vld [vmem:[#allocation3 + $0x2d8] sm:$0xff]
        %v374 = vld [vmem:[#allocation3 + $0x2e0] sm:$0xff]
        %v375 = vld [vmem:[#allocation3 + $0x2e8] sm:$0xff]
        %v376 = vld [vmem:[#allocation3 + $0x2f0] sm:$0xff]
        %v377 = vld [vmem:[#allocation3 + $0x2f8] sm:$0xff]
        %v378 = vld [vmem:[#allocation3 + $0x300] sm:$0xff]
        %v379 = vld [vmem:[#allocation3 + $0x308] sm:$0xff]
        %v380 = vld [vmem:[#allocation3 + $0x310] sm:$0xff]
        %v381 = vld [vmem:[#allocation3 + $0x318] sm:$0xff]
        %v382 = vld [vmem:[#allocation3 + $0x320] sm:$0xff]
        %v383 = vld [vmem:[#allocation3 + $0x328] sm:$0xff]
        %v384 = vld [vmem:[#allocation3 + $0x330] sm:$0xff]
        %v385 = vld [vmem:[#allocation3 + $0x338] sm:$0xff]
        %v386 = vld [vmem:[#allocation3 + $0x340] sm:$0xff]
        %v387 = vld [vmem:[#allocation3 + $0x348] sm:$0xff]
        %v388 = vld [vmem:[#allocation3 + $0x350] sm:$0xff]
        %v389 = vld [vmem:[#allocation3 + $0x358] sm:$0xff]
        %v390 = vld [vmem:[#allocation3 + $0x360] sm:$0xff]
        %v391 = vld [vmem:[#allocation3 + $0x368] sm:$0xff]
        %v392 = vld [vmem:[#allocation3 + $0x370] sm:$0xff]
        %v393 = vld [vmem:[#allocation3 + $0x378] sm:$0xff]
        %v394 = vld [vmem:[#allocation3 + $0x380] sm:$0xff]
        %v395 = vld [vmem:[#allocation3 + $0x388] sm:$0xff]
        %v396 = vld [vmem:[#allocation3 + $0x390] sm:$0xff]
        %v397 = vld [vmem:[#allocation3 + $0x398] sm:$0xff]
        %v398 = vld [vmem:[#allocation3 + $0x3a0] sm:$0xff]
        %v399 = vld [vmem:[#allocation3 + $0x3a8] sm:$0xff]
        %v400 = vld [vmem:[#allocation3 + $0x3b0] sm:$0xff]
        %v401 = vld [vmem:[#allocation3 + $0x3b8] sm:$0xff]
        %v402 = vld [vmem:[#allocation3 + $0x3c0] sm:$0xff]
        %v403 = vld [vmem:[#allocation3 + $0x3c8] sm:$0xff]
        %v404 = vld [vmem:[#allocation3 + $0x3d0] sm:$0xff]
        %v405 = vld [vmem:[#allocation3 + $0x3d8] sm:$0xff]
        %v406 = vld [vmem:[#allocation3 + $0x3e0] sm:$0xff]
        %v407 = vld [vmem:[#allocation3 + $0x3e8] sm:$0xff]
        %v408 = vld [vmem:[#allocation3 + $0x3f0] sm:$0xff]
        %v409 = vld [vmem:[#allocation3 + $0x3f8] sm:$0xff]
        %v410 = vld [vmem:[%s225] sm:$0xfe]
        %v411 = vld [vmem:[%s225 + $0x8] sm:$0xfe]
        %v412 = vld [vmem:[%s225 + $0x10] sm:$0xff]
        %v413 = vld [vmem:[%s225 + $0x18] sm:$0xff]
        %v414 = vld [vmem:[%s225 + $0x20] sm:$0xff]
        %v415 = vld [vmem:[%s225 + $0x28] sm:$0xff]
        %v416 = vld [vmem:[%s225 + $0x30] sm:$0xff]
        %v417 = vld [vmem:[%s225 + $0x38] sm:$0xff]
        %v418 = vld [vmem:[%s225 + $0x40] sm:$0x1]
        %v419 = vld [vmem:[%s225 + $0x48] sm:$0x1]
        %v420 = vld [vmem:[%s225 + $0x50] sm:$0xfe]
        %v421 = vld [vmem:[%s225 + $0x58] sm:$0xfe]
        %v422 = vld [vmem:[%s225 + $0x60] sm:$0xff]
        %v423 = vld [vmem:[%s225 + $0x68] sm:$0xff]
        %v424 = vld [vmem:[%s225 + $0x70] sm:$0xff]
        %v425 = vld [vmem:[%s225 + $0x78] sm:$0xff]
        %v426 = vld [vmem:[%s225 + $0x80] sm:$0xff]
        %v427 = vld [vmem:[%s225 + $0x88] sm:$0xff]
        %v428 = vld [vmem:[%s225 + $0x90] sm:$0x1]
        %v429 = vld [vmem:[%s225 + $0x98] sm:$0x1]
        %vm450 = vcmask 1046528
        %v451 = vrot.slane %v410, 1
        %v452 = vrot.slane %v412, 1
        %v453 = vsel %vm450, %v451, %v452
        %v454 = vrot.slane %v411, 1
        %v455 = vrot.slane %v413, 1
        %v456 = vsel %vm450, %v454, %v455
        %v457 = vrot.slane %v414, 1
        %v458 = vsel %vm450, %v452, %v457
        %v459 = vrot.slane %v415, 1
        %v460 = vsel %vm450, %v455, %v459
        %v461 = vrot.slane %v416, 1
        %v462 = vsel %vm450, %v457, %v461
        %v463 = vrot.slane %v417, 1
        %v464 = vsel %vm450, %v459, %v463
        %v465 = vrot.slane %v418, 1
        %v466 = vsel %vm450, %v461, %v465
        %v467 = vrot.slane %v419, 1
        %v468 = vsel %vm450, %v463, %v467
        %v469 = vrot.slane %v420, 1
        %v470 = vrot.slane %v422, 1
        %v471 = vsel %vm450, %v469, %v470
        %v472 = vrot.slane %v421, 1
        %v473 = vrot.slane %v423, 1
        %v474 = vsel %vm450, %v472, %v473
        %v475 = vrot.slane %v424, 1
        %v476 = vsel %vm450, %v470, %v475
        %v477 = vrot.slane %v425, 1
        %v478 = vsel %vm450, %v473, %v477
        %v479 = vrot.slane %v426, 1
        %v480 = vsel %vm450, %v475, %v479
        %v481 = vrot.slane %v427, 1
        %v482 = vsel %vm450, %v477, %v481
        %v483 = vrot.slane %v428, 1
        %v484 = vsel %vm450, %v479, %v483
        %v485 = vrot.slane %v429, 1
        %v486 = vsel %vm450, %v481, %v485
        %v503 = vpack.c.bf16 %v458, %v453
        %v504 = vpack.c.bf16 %v460, %v456
        %v505 = vpack.c.bf16 %v466, %v462
        %v506 = vpack.c.bf16 %v468, %v464
        %v507 = vpack.c.bf16 %v476, %v471
        %v508 = vpack.c.bf16 %v478, %v474
        %v509 = vpack.c.bf16 %v484, %v480
        %v510 = vpack.c.bf16 %v486, %v482
        %v511 = vld [vmem:[#allocation3 + $0x400] sm:$0xff]
        %v512 = vld [vmem:[#allocation3 + $0x408] sm:$0xff]
        %v513 = vld [vmem:[#allocation3 + $0x410] sm:$0xff]
        %v514 = vld [vmem:[#allocation3 + $0x418] sm:$0xff]
        %v515 = vld [vmem:[#allocation3 + $0x420] sm:$0xff]
        %v516 = vld [vmem:[#allocation3 + $0x428] sm:$0xff]
        %v517 = vld [vmem:[#allocation3 + $0x430] sm:$0xff]
        %v518 = vld [vmem:[#allocation3 + $0x438] sm:$0xff]
        %v519 = vld [vmem:[#allocation3 + $0x440] sm:$0xff]
        %v520 = vld [vmem:[#allocation3 + $0x448] sm:$0xff]
        %v521 = vld [vmem:[#allocation3 + $0x450] sm:$0xff]
        %v522 = vld [vmem:[#allocation3 + $0x458] sm:$0xff]
        %v523 = vld [vmem:[#allocation3 + $0x460] sm:$0xff]
        %v524 = vld [vmem:[#allocation3 + $0x468] sm:$0xff]
        %v525 = vld [vmem:[#allocation3 + $0x470] sm:$0xff]
        %v526 = vld [vmem:[#allocation3 + $0x478] sm:$0xff]
        %v527 = vld [vmem:[#allocation3 + $0x480] sm:$0xff]
        %v528 = vld [vmem:[#allocation3 + $0x488] sm:$0xff]
        %v529 = vld [vmem:[#allocation3 + $0x490] sm:$0xff]
        %v530 = vld [vmem:[#allocation3 + $0x498] sm:$0xff]
        %v531 = vld [vmem:[#allocation3 + $0x4a0] sm:$0xff]
        %v532 = vld [vmem:[#allocation3 + $0x4a8] sm:$0xff]
        %v533 = vld [vmem:[#allocation3 + $0x4b0] sm:$0xff]
        %v534 = vld [vmem:[#allocation3 + $0x4b8] sm:$0xff]
        %v535 = vld [vmem:[#allocation3 + $0x4c0] sm:$0xff]
        %v536 = vld [vmem:[#allocation3 + $0x4c8] sm:$0xff]
        %v537 = vld [vmem:[#allocation3 + $0x4d0] sm:$0xff]
        %v538 = vld [vmem:[#allocation3 + $0x4d8] sm:$0xff]
        %v539 = vld [vmem:[#allocation3 + $0x4e0] sm:$0xff]
        %v540 = vld [vmem:[#allocation3 + $0x4e8] sm:$0xff]
        %v541 = vld [vmem:[#allocation3 + $0x4f0] sm:$0xff]
        %v542 = vld [vmem:[#allocation3 + $0x4f8] sm:$0xff]
        %v543 = vld [vmem:[#allocation3 + $0x500] sm:$0xff]
        %v544 = vld [vmem:[#allocation3 + $0x508] sm:$0xff]
        %v545 = vld [vmem:[#allocation3 + $0x510] sm:$0xff]
        %v546 = vld [vmem:[#allocation3 + $0x518] sm:$0xff]
        %v547 = vld [vmem:[#allocation3 + $0x520] sm:$0xff]
        %v548 = vld [vmem:[#allocation3 + $0x528] sm:$0xff]
        %v549 = vld [vmem:[#allocation3 + $0x530] sm:$0xff]
        %v550 = vld [vmem:[#allocation3 + $0x538] sm:$0xff]
        %v551 = vld [vmem:[#allocation3 + $0x540] sm:$0xff]
        %v552 = vld [vmem:[#allocation3 + $0x548] sm:$0xff]
        %v553 = vld [vmem:[#allocation3 + $0x550] sm:$0xff]
        %v554 = vld [vmem:[#allocation3 + $0x558] sm:$0xff]
        %v555 = vld [vmem:[#allocation3 + $0x560] sm:$0xff]
        %v556 = vld [vmem:[#allocation3 + $0x568] sm:$0xff]
        %v557 = vld [vmem:[#allocation3 + $0x570] sm:$0xff]
        %v558 = vld [vmem:[#allocation3 + $0x578] sm:$0xff]
        %v559 = vld [vmem:[#allocation3 + $0x580] sm:$0xff]
        %v560 = vld [vmem:[#allocation3 + $0x588] sm:$0xff]
        %v561 = vld [vmem:[#allocation3 + $0x590] sm:$0xff]
        %v562 = vld [vmem:[#allocation3 + $0x598] sm:$0xff]
        %v563 = vld [vmem:[#allocation3 + $0x5a0] sm:$0xff]
        %v564 = vld [vmem:[#allocation3 + $0x5a8] sm:$0xff]
        %v565 = vld [vmem:[#allocation3 + $0x5b0] sm:$0xff]
        %v566 = vld [vmem:[#allocation3 + $0x5b8] sm:$0xff]
        %v567 = vld [vmem:[#allocation3 + $0x5c0] sm:$0xff]
        %v568 = vld [vmem:[#allocation3 + $0x5c8] sm:$0xff]
        %v569 = vld [vmem:[#allocation3 + $0x5d0] sm:$0xff]
        %v570 = vld [vmem:[#allocation3 + $0x5d8] sm:$0xff]
        %v571 = vld [vmem:[#allocation3 + $0x5e0] sm:$0xff]
        %v572 = vld [vmem:[#allocation3 + $0x5e8] sm:$0xff]
        %v573 = vld [vmem:[#allocation3 + $0x5f0] sm:$0xff]
        %v574 = vld [vmem:[#allocation3 + $0x5f8] sm:$0xff]
        %v575 = vld [vmem:[#allocation3 + $0x600] sm:$0xff]
        %v576 = vld [vmem:[#allocation3 + $0x608] sm:$0xff]
        %v577 = vld [vmem:[#allocation3 + $0x610] sm:$0xff]
        %v578 = vld [vmem:[#allocation3 + $0x618] sm:$0xff]
        %v579 = vld [vmem:[#allocation3 + $0x620] sm:$0xff]
        %v580 = vld [vmem:[#allocation3 + $0x628] sm:$0xff]
        %v581 = vld [vmem:[#allocation3 + $0x630] sm:$0xff]
        %v582 = vld [vmem:[#allocation3 + $0x638] sm:$0xff]
        %v583 = vld [vmem:[#allocation3 + $0x640] sm:$0xff]
        %v584 = vld [vmem:[#allocation3 + $0x648] sm:$0xff]
        %v585 = vld [vmem:[#allocation3 + $0x650] sm:$0xff]
        %v586 = vld [vmem:[#allocation3 + $0x658] sm:$0xff]
        %v587 = vld [vmem:[#allocation3 + $0x660] sm:$0xff]
        %v588 = vld [vmem:[#allocation3 + $0x668] sm:$0xff]
        %v589 = vld [vmem:[#allocation3 + $0x670] sm:$0xff]
        %v590 = vld [vmem:[#allocation3 + $0x678] sm:$0xff]
        %v591 = vld [vmem:[#allocation3 + $0x680] sm:$0xff]
        %v592 = vld [vmem:[#allocation3 + $0x688] sm:$0xff]
        %v593 = vld [vmem:[#allocation3 + $0x690] sm:$0xff]
        %v594 = vld [vmem:[#allocation3 + $0x698] sm:$0xff]
        %v595 = vld [vmem:[#allocation3 + $0x6a0] sm:$0xff]
        %v596 = vld [vmem:[#allocation3 + $0x6a8] sm:$0xff]
        %v597 = vld [vmem:[#allocation3 + $0x6b0] sm:$0xff]
        %v598 = vld [vmem:[#allocation3 + $0x6b8] sm:$0xff]
        %v599 = vld [vmem:[#allocation3 + $0x6c0] sm:$0xff]
        %v600 = vld [vmem:[#allocation3 + $0x6c8] sm:$0xff]
        %v601 = vld [vmem:[#allocation3 + $0x6d0] sm:$0xff]
        %v602 = vld [vmem:[#allocation3 + $0x6d8] sm:$0xff]
        %v603 = vld [vmem:[#allocation3 + $0x6e0] sm:$0xff]
        %v604 = vld [vmem:[#allocation3 + $0x6e8] sm:$0xff]
        %v605 = vld [vmem:[#allocation3 + $0x6f0] sm:$0xff]
        %v606 = vld [vmem:[#allocation3 + $0x6f8] sm:$0xff]
        %v607 = vld [vmem:[#allocation3 + $0x700] sm:$0xff]
        %v608 = vld [vmem:[#allocation3 + $0x708] sm:$0xff]
        %v609 = vld [vmem:[#allocation3 + $0x710] sm:$0xff]
        %v610 = vld [vmem:[#allocation3 + $0x718] sm:$0xff]
        %v611 = vld [vmem:[#allocation3 + $0x720] sm:$0xff]
        %v612 = vld [vmem:[#allocation3 + $0x728] sm:$0xff]
        %v613 = vld [vmem:[#allocation3 + $0x730] sm:$0xff]
        %v614 = vld [vmem:[#allocation3 + $0x738] sm:$0xff]
        %v615 = vld [vmem:[#allocation3 + $0x740] sm:$0xff]
        %v616 = vld [vmem:[#allocation3 + $0x748] sm:$0xff]
        %v617 = vld [vmem:[#allocation3 + $0x750] sm:$0xff]
        %v618 = vld [vmem:[#allocation3 + $0x758] sm:$0xff]
        %v619 = vld [vmem:[#allocation3 + $0x760] sm:$0xff]
        %v620 = vld [vmem:[#allocation3 + $0x768] sm:$0xff]
        %v621 = vld [vmem:[#allocation3 + $0x770] sm:$0xff]
        %v622 = vld [vmem:[#allocation3 + $0x778] sm:$0xff]
        %v623 = vld [vmem:[#allocation3 + $0x780] sm:$0xff]
        %v624 = vld [vmem:[#allocation3 + $0x788] sm:$0xff]
        %v625 = vld [vmem:[#allocation3 + $0x790] sm:$0xff]
        %v626 = vld [vmem:[#allocation3 + $0x798] sm:$0xff]
        %v627 = vld [vmem:[#allocation3 + $0x7a0] sm:$0xff]
        %v628 = vld [vmem:[#allocation3 + $0x7a8] sm:$0xff]
        %v629 = vld [vmem:[#allocation3 + $0x7b0] sm:$0xff]
        %v630 = vld [vmem:[#allocation3 + $0x7b8] sm:$0xff]
        %v631 = vld [vmem:[#allocation3 + $0x7c0] sm:$0xff]
        %v632 = vld [vmem:[#allocation3 + $0x7c8] sm:$0xff]
        %v633 = vld [vmem:[#allocation3 + $0x7d0] sm:$0xff]
        %v634 = vld [vmem:[#allocation3 + $0x7d8] sm:$0xff]
        %v635 = vld [vmem:[#allocation3 + $0x7e0] sm:$0xff]
        %v636 = vld [vmem:[#allocation3 + $0x7e8] sm:$0xff]
        %v637 = vld [vmem:[#allocation3 + $0x7f0] sm:$0xff]
        %v638 = vld [vmem:[#allocation3 + $0x7f8] sm:$0xff]
        %v767 = vunpack.c.l.b16 %v511
        %v768 = vunpack.c.h.b16 %v511
        %v769 = vunpack.c.l.b16 %v512
        %v770 = vunpack.c.h.b16 %v512
        %v771 = vunpack.c.l.b16 %v513
        %v772 = vunpack.c.h.b16 %v513
        %v773 = vunpack.c.l.b16 %v514
        %v774 = vunpack.c.h.b16 %v514
        %v775 = vunpack.c.l.b16 %v515
        %v776 = vunpack.c.h.b16 %v515
        %v777 = vunpack.c.l.b16 %v516
        %v778 = vunpack.c.h.b16 %v516
        %v779 = vunpack.c.l.b16 %v517
        %v780 = vunpack.c.h.b16 %v517
        %v781 = vunpack.c.l.b16 %v518
        %v782 = vunpack.c.h.b16 %v518
        %v783 = vunpack.c.l.b16 %v519
        %v784 = vunpack.c.h.b16 %v519
        %v785 = vunpack.c.l.b16 %v520
        %v786 = vunpack.c.h.b16 %v520
        %v787 = vunpack.c.l.b16 %v521
        %v788 = vunpack.c.h.b16 %v521
        %v789 = vunpack.c.l.b16 %v522
        %v790 = vunpack.c.h.b16 %v522
        %v791 = vunpack.c.l.b16 %v523
        %v792 = vunpack.c.h.b16 %v523
        %v793 = vunpack.c.l.b16 %v524
        %v794 = vunpack.c.h.b16 %v524
        %v795 = vunpack.c.l.b16 %v525
        %v796 = vunpack.c.h.b16 %v525
        %v797 = vunpack.c.l.b16 %v526
        %v798 = vunpack.c.h.b16 %v526
        %v799 = vunpack.c.l.b16 %v527
        %v800 = vunpack.c.h.b16 %v527
        %v801 = vunpack.c.l.b16 %v528
        %v802 = vunpack.c.h.b16 %v528
        %v803 = vunpack.c.l.b16 %v529
        %v804 = vunpack.c.h.b16 %v529
        %v805 = vunpack.c.l.b16 %v530
        %v806 = vunpack.c.h.b16 %v530
        %v807 = vunpack.c.l.b16 %v531
        %v808 = vunpack.c.h.b16 %v531
        %v809 = vunpack.c.l.b16 %v532
        %v810 = vunpack.c.h.b16 %v532
        %v811 = vunpack.c.l.b16 %v533
        %v812 = vunpack.c.h.b16 %v533
        %v813 = vunpack.c.l.b16 %v534
        %v814 = vunpack.c.h.b16 %v534
        %v815 = vunpack.c.l.b16 %v535
        %v816 = vunpack.c.h.b16 %v535
        %v817 = vunpack.c.l.b16 %v536
        %v818 = vunpack.c.h.b16 %v536
        %v819 = vunpack.c.l.b16 %v537
        %v820 = vunpack.c.h.b16 %v537
        %v821 = vunpack.c.l.b16 %v538
        %v822 = vunpack.c.h.b16 %v538
        %v823 = vunpack.c.l.b16 %v539
        %v824 = vunpack.c.h.b16 %v539
        %v825 = vunpack.c.l.b16 %v540
        %v826 = vunpack.c.h.b16 %v540
        %v827 = vunpack.c.l.b16 %v541
        %v828 = vunpack.c.h.b16 %v541
        %v829 = vunpack.c.l.b16 %v542
        %v830 = vunpack.c.h.b16 %v542
        %v831 = vunpack.c.l.b16 %v543
        %v832 = vunpack.c.h.b16 %v543
        %v833 = vunpack.c.l.b16 %v544
        %v834 = vunpack.c.h.b16 %v544
        %v835 = vunpack.c.l.b16 %v545
        %v836 = vunpack.c.h.b16 %v545
        %v837 = vunpack.c.l.b16 %v546
        %v838 = vunpack.c.h.b16 %v546
        %v839 = vunpack.c.l.b16 %v547
        %v840 = vunpack.c.h.b16 %v547
        %v841 = vunpack.c.l.b16 %v548
        %v842 = vunpack.c.h.b16 %v548
        %v843 = vunpack.c.l.b16 %v549
        %v844 = vunpack.c.h.b16 %v549
        %v845 = vunpack.c.l.b16 %v550
        %v846 = vunpack.c.h.b16 %v550
        %v847 = vunpack.c.l.b16 %v551
        %v848 = vunpack.c.h.b16 %v551
        %v849 = vunpack.c.l.b16 %v552
        %v850 = vunpack.c.h.b16 %v552
        %v851 = vunpack.c.l.b16 %v553
        %v852 = vunpack.c.h.b16 %v553
        %v853 = vunpack.c.l.b16 %v554
        %v854 = vunpack.c.h.b16 %v554
        %v855 = vunpack.c.l.b16 %v555
        %v856 = vunpack.c.h.b16 %v555
        %v857 = vunpack.c.l.b16 %v556
        %v858 = vunpack.c.h.b16 %v556
        %v859 = vunpack.c.l.b16 %v557
        %v860 = vunpack.c.h.b16 %v557
        %v861 = vunpack.c.l.b16 %v558
        %v862 = vunpack.c.h.b16 %v558
        %v863 = vunpack.c.l.b16 %v559
        %v864 = vunpack.c.h.b16 %v559
        %v865 = vunpack.c.l.b16 %v560
        %v866 = vunpack.c.h.b16 %v560
        %v867 = vunpack.c.l.b16 %v561
        %v868 = vunpack.c.h.b16 %v561
        %v869 = vunpack.c.l.b16 %v562
        %v870 = vunpack.c.h.b16 %v562
        %v871 = vunpack.c.l.b16 %v563
        %v872 = vunpack.c.h.b16 %v563
        %v873 = vunpack.c.l.b16 %v564
        %v874 = vunpack.c.h.b16 %v564
        %v875 = vunpack.c.l.b16 %v565
        %v876 = vunpack.c.h.b16 %v565
        %v877 = vunpack.c.l.b16 %v566
        %v878 = vunpack.c.h.b16 %v566
        %v879 = vunpack.c.l.b16 %v567
        %v880 = vunpack.c.h.b16 %v567
        %v881 = vunpack.c.l.b16 %v568
        %v882 = vunpack.c.h.b16 %v568
        %v883 = vunpack.c.l.b16 %v569
        %v884 = vunpack.c.h.b16 %v569
        %v885 = vunpack.c.l.b16 %v570
        %v886 = vunpack.c.h.b16 %v570
        %v887 = vunpack.c.l.b16 %v571
        %v888 = vunpack.c.h.b16 %v571
        %v889 = vunpack.c.l.b16 %v572
        %v890 = vunpack.c.h.b16 %v572
        %v891 = vunpack.c.l.b16 %v573
        %v892 = vunpack.c.h.b16 %v573
        %v893 = vunpack.c.l.b16 %v574
        %v894 = vunpack.c.h.b16 %v574
        %v895 = vunpack.c.l.b16 %v575
        %v896 = vunpack.c.h.b16 %v575
        %v897 = vunpack.c.l.b16 %v576
        %v898 = vunpack.c.h.b16 %v576
        %v899 = vunpack.c.l.b16 %v577
        %v900 = vunpack.c.h.b16 %v577
        %v901 = vunpack.c.l.b16 %v578
        %v902 = vunpack.c.h.b16 %v578
        %v903 = vunpack.c.l.b16 %v579
        %v904 = vunpack.c.h.b16 %v579
        %v905 = vunpack.c.l.b16 %v580
        %v906 = vunpack.c.h.b16 %v580
        %v907 = vunpack.c.l.b16 %v581
        %v908 = vunpack.c.h.b16 %v581
        %v909 = vunpack.c.l.b16 %v582
        %v910 = vunpack.c.h.b16 %v582
        %v911 = vunpack.c.l.b16 %v583
        %v912 = vunpack.c.h.b16 %v583
        %v913 = vunpack.c.l.b16 %v584
        %v914 = vunpack.c.h.b16 %v584
        %v915 = vunpack.c.l.b16 %v585
        %v916 = vunpack.c.h.b16 %v585
        %v917 = vunpack.c.l.b16 %v586
        %v918 = vunpack.c.h.b16 %v586
        %v919 = vunpack.c.l.b16 %v587
        %v920 = vunpack.c.h.b16 %v587
        %v921 = vunpack.c.l.b16 %v588
        %v922 = vunpack.c.h.b16 %v588
        %v923 = vunpack.c.l.b16 %v589
        %v924 = vunpack.c.h.b16 %v589
        %v925 = vunpack.c.l.b16 %v590
        %v926 = vunpack.c.h.b16 %v590
        %v927 = vunpack.c.l.b16 %v591
        %v928 = vunpack.c.h.b16 %v591
        %v929 = vunpack.c.l.b16 %v592
        %v930 = vunpack.c.h.b16 %v592
        %v931 = vunpack.c.l.b16 %v593
        %v932 = vunpack.c.h.b16 %v593
        %v933 = vunpack.c.l.b16 %v594
        %v934 = vunpack.c.h.b16 %v594
        %v935 = vunpack.c.l.b16 %v595
        %v936 = vunpack.c.h.b16 %v595
        %v937 = vunpack.c.l.b16 %v596
        %v938 = vunpack.c.h.b16 %v596
        %v939 = vunpack.c.l.b16 %v597
        %v940 = vunpack.c.h.b16 %v597
        %v941 = vunpack.c.l.b16 %v598
        %v942 = vunpack.c.h.b16 %v598
        %v943 = vunpack.c.l.b16 %v599
        %v944 = vunpack.c.h.b16 %v599
        %v945 = vunpack.c.l.b16 %v600
        %v946 = vunpack.c.h.b16 %v600
        %v947 = vunpack.c.l.b16 %v601
        %v948 = vunpack.c.h.b16 %v601
        %v949 = vunpack.c.l.b16 %v602
        %v950 = vunpack.c.h.b16 %v602
        %v951 = vunpack.c.l.b16 %v603
        %v952 = vunpack.c.h.b16 %v603
        %v953 = vunpack.c.l.b16 %v604
        %v954 = vunpack.c.h.b16 %v604
        %v955 = vunpack.c.l.b16 %v605
        %v956 = vunpack.c.h.b16 %v605
        %v957 = vunpack.c.l.b16 %v606
        %v958 = vunpack.c.h.b16 %v606
        %v959 = vunpack.c.l.b16 %v607
        %v960 = vunpack.c.h.b16 %v607
        %v961 = vunpack.c.l.b16 %v608
        %v962 = vunpack.c.h.b16 %v608
        %v963 = vunpack.c.l.b16 %v609
        %v964 = vunpack.c.h.b16 %v609
        %v965 = vunpack.c.l.b16 %v610
        %v966 = vunpack.c.h.b16 %v610
        %v967 = vunpack.c.l.b16 %v611
        %v968 = vunpack.c.h.b16 %v611
        %v969 = vunpack.c.l.b16 %v612
        %v970 = vunpack.c.h.b16 %v612
        %v971 = vunpack.c.l.b16 %v613
        %v972 = vunpack.c.h.b16 %v613
        %v973 = vunpack.c.l.b16 %v614
        %v974 = vunpack.c.h.b16 %v614
        %v975 = vunpack.c.l.b16 %v615
        %v976 = vunpack.c.h.b16 %v615
        %v977 = vunpack.c.l.b16 %v616
        %v978 = vunpack.c.h.b16 %v616
        %v979 = vunpack.c.l.b16 %v617
        %v980 = vunpack.c.h.b16 %v617
        %v981 = vunpack.c.l.b16 %v618
        %v982 = vunpack.c.h.b16 %v618
        %v983 = vunpack.c.l.b16 %v619
        %v984 = vunpack.c.h.b16 %v619
        %v985 = vunpack.c.l.b16 %v620
        %v986 = vunpack.c.h.b16 %v620
        %v987 = vunpack.c.l.b16 %v621
        %v988 = vunpack.c.h.b16 %v621
        %v989 = vunpack.c.l.b16 %v622
        %v990 = vunpack.c.h.b16 %v622
        %v991 = vunpack.c.l.b16 %v623
        %v992 = vunpack.c.h.b16 %v623
        %v993 = vunpack.c.l.b16 %v624
        %v994 = vunpack.c.h.b16 %v624
        %v995 = vunpack.c.l.b16 %v625
        %v996 = vunpack.c.h.b16 %v625
        %v997 = vunpack.c.l.b16 %v626
        %v998 = vunpack.c.h.b16 %v626
        %v999 = vunpack.c.l.b16 %v627
        %v1000 = vunpack.c.h.b16 %v627
        %v1001 = vunpack.c.l.b16 %v628
        %v1002 = vunpack.c.h.b16 %v628
        %v1003 = vunpack.c.l.b16 %v629
        %v1004 = vunpack.c.h.b16 %v629
        %v1005 = vunpack.c.l.b16 %v630
        %v1006 = vunpack.c.h.b16 %v630
        %v1007 = vunpack.c.l.b16 %v631
        %v1008 = vunpack.c.h.b16 %v631
        %v1009 = vunpack.c.l.b16 %v632
        %v1010 = vunpack.c.h.b16 %v632
        %v1011 = vunpack.c.l.b16 %v633
        %v1012 = vunpack.c.h.b16 %v633
        %v1013 = vunpack.c.l.b16 %v634
        %v1014 = vunpack.c.h.b16 %v634
        %v1015 = vunpack.c.l.b16 %v635
        %v1016 = vunpack.c.h.b16 %v635
        %v1017 = vunpack.c.l.b16 %v636
        %v1018 = vunpack.c.h.b16 %v636
        %v1019 = vunpack.c.l.b16 %v637
        %v1020 = vunpack.c.h.b16 %v637
        %v1021 = vunpack.c.l.b16 %v638
        %v1022 = vunpack.c.h.b16 %v638
        %v1023 = vpack.c.b16 %v775, %v767
        %v1024 = vpack.c.b16 %v776, %v768
        %v1025 = vpack.c.b16 %v777, %v769
        %v1026 = vpack.c.b16 %v778, %v770
        %v1027 = vpack.c.b16 %v779, %v771
        %v1028 = vpack.c.b16 %v780, %v772
        %v1029 = vpack.c.b16 %v781, %v773
        %v1030 = vpack.c.b16 %v782, %v774
        %v1031 = vpack.c.b16 %v791, %v783
        %v1032 = vpack.c.b16 %v792, %v784
        %v1033 = vpack.c.b16 %v793, %v785
        %v1034 = vpack.c.b16 %v794, %v786
        %v1035 = vpack.c.b16 %v795, %v787
        %v1036 = vpack.c.b16 %v796, %v788
        %v1037 = vpack.c.b16 %v797, %v789
        %v1038 = vpack.c.b16 %v798, %v790
        %v1039 = vpack.c.b16 %v807, %v799
        %v1040 = vpack.c.b16 %v808, %v800
        %v1041 = vpack.c.b16 %v809, %v801
        %v1042 = vpack.c.b16 %v810, %v802
        %v1043 = vpack.c.b16 %v811, %v803
        %v1044 = vpack.c.b16 %v812, %v804
        %v1045 = vpack.c.b16 %v813, %v805
        %v1046 = vpack.c.b16 %v814, %v806
        %v1047 = vpack.c.b16 %v823, %v815
        %v1048 = vpack.c.b16 %v824, %v816
        %v1049 = vpack.c.b16 %v825, %v817
        %v1050 = vpack.c.b16 %v826, %v818
        %v1051 = vpack.c.b16 %v827, %v819
        %v1052 = vpack.c.b16 %v828, %v820
        %v1053 = vpack.c.b16 %v829, %v821
        %v1054 = vpack.c.b16 %v830, %v822
        %v1055 = vpack.c.b16 %v839, %v831
        %v1056 = vpack.c.b16 %v840, %v832
        %v1057 = vpack.c.b16 %v841, %v833
        %v1058 = vpack.c.b16 %v842, %v834
        %v1059 = vpack.c.b16 %v843, %v835
        %v1060 = vpack.c.b16 %v844, %v836
        %v1061 = vpack.c.b16 %v845, %v837
        %v1062 = vpack.c.b16 %v846, %v838
        %v1063 = vpack.c.b16 %v855, %v847
        %v1064 = vpack.c.b16 %v856, %v848
        %v1065 = vpack.c.b16 %v857, %v849
        %v1066 = vpack.c.b16 %v858, %v850
        %v1067 = vpack.c.b16 %v859, %v851
        %v1068 = vpack.c.b16 %v860, %v852
        %v1069 = vpack.c.b16 %v861, %v853
        %v1070 = vpack.c.b16 %v862, %v854
        %v1071 = vpack.c.b16 %v871, %v863
        %v1072 = vpack.c.b16 %v872, %v864
        %v1073 = vpack.c.b16 %v873, %v865
        %v1074 = vpack.c.b16 %v874, %v866
        %v1075 = vpack.c.b16 %v875, %v867
        %v1076 = vpack.c.b16 %v876, %v868
        %v1077 = vpack.c.b16 %v877, %v869
        %v1078 = vpack.c.b16 %v878, %v870
        %v1079 = vpack.c.b16 %v887, %v879
        %v1080 = vpack.c.b16 %v888, %v880
        %v1081 = vpack.c.b16 %v889, %v881
        %v1082 = vpack.c.b16 %v890, %v882
        %v1083 = vpack.c.b16 %v891, %v883
        %v1084 = vpack.c.b16 %v892, %v884
        %v1085 = vpack.c.b16 %v893, %v885
        %v1086 = vpack.c.b16 %v894, %v886
        %v1087 = vpack.c.b16 %v903, %v895
        %v1088 = vpack.c.b16 %v904, %v896
        %v1089 = vpack.c.b16 %v905, %v897
        %v1090 = vpack.c.b16 %v906, %v898
        %v1091 = vpack.c.b16 %v907, %v899
        %v1092 = vpack.c.b16 %v908, %v900
        %v1093 = vpack.c.b16 %v909, %v901
        %v1094 = vpack.c.b16 %v910, %v902
        %v1095 = vpack.c.b16 %v919, %v911
        %v1096 = vpack.c.b16 %v920, %v912
        %v1097 = vpack.c.b16 %v921, %v913
        %v1098 = vpack.c.b16 %v922, %v914
        %v1099 = vpack.c.b16 %v923, %v915
        %v1100 = vpack.c.b16 %v924, %v916
        %v1101 = vpack.c.b16 %v925, %v917
        %v1102 = vpack.c.b16 %v926, %v918
        %v1103 = vpack.c.b16 %v935, %v927
        %v1104 = vpack.c.b16 %v936, %v928
        %v1105 = vpack.c.b16 %v937, %v929
        %v1106 = vpack.c.b16 %v938, %v930
        %v1107 = vpack.c.b16 %v939, %v931
        %v1108 = vpack.c.b16 %v940, %v932
        %v1109 = vpack.c.b16 %v941, %v933
        %v1110 = vpack.c.b16 %v942, %v934
        %v1111 = vpack.c.b16 %v951, %v943
        %v1112 = vpack.c.b16 %v952, %v944
        %v1113 = vpack.c.b16 %v953, %v945
        %v1114 = vpack.c.b16 %v954, %v946
        %v1115 = vpack.c.b16 %v955, %v947
        %v1116 = vpack.c.b16 %v956, %v948
        %v1117 = vpack.c.b16 %v957, %v949
        %v1118 = vpack.c.b16 %v958, %v950
        %v1119 = vpack.c.b16 %v967, %v959
        %v1120 = vpack.c.b16 %v968, %v960
        %v1121 = vpack.c.b16 %v969, %v961
        %v1122 = vpack.c.b16 %v970, %v962
        %v1123 = vpack.c.b16 %v971, %v963
        %v1124 = vpack.c.b16 %v972, %v964
        %v1125 = vpack.c.b16 %v973, %v965
        %v1126 = vpack.c.b16 %v974, %v966
        %v1127 = vpack.c.b16 %v983, %v975
        %v1128 = vpack.c.b16 %v984, %v976
        %v1129 = vpack.c.b16 %v985, %v977
        %v1130 = vpack.c.b16 %v986, %v978
        %v1131 = vpack.c.b16 %v987, %v979
        %v1132 = vpack.c.b16 %v988, %v980
        %v1133 = vpack.c.b16 %v989, %v981
        %v1134 = vpack.c.b16 %v990, %v982
        %v1135 = vpack.c.b16 %v999, %v991
        %v1136 = vpack.c.b16 %v1000, %v992
        %v1137 = vpack.c.b16 %v1001, %v993
        %v1138 = vpack.c.b16 %v1002, %v994
        %v1139 = vpack.c.b16 %v1003, %v995
        %v1140 = vpack.c.b16 %v1004, %v996
        %v1141 = vpack.c.b16 %v1005, %v997
        %v1142 = vpack.c.b16 %v1006, %v998
        %v1143 = vpack.c.b16 %v1015, %v1007
        %v1144 = vpack.c.b16 %v1016, %v1008
        %v1145 = vpack.c.b16 %v1017, %v1009
        %v1146 = vpack.c.b16 %v1018, %v1010
        %v1147 = vpack.c.b16 %v1019, %v1011
        %v1148 = vpack.c.b16 %v1020, %v1012
        %v1149 = vpack.c.b16 %v1021, %v1013
        %v1150 = vpack.c.b16 %v1022, %v1014
        %1279 = vmatprep.subr.bf16.mxu0 %v1080
        %1280 = vmatpush1.bf16.msra.mxu0 %v1079
        %1281 = vmatprep.subr.bf16.mxu0 %v1072
        %1282 = vmatpush1.bf16.msra.mxu0 %v1071
        %1283 = vmatprep.subr.bf16.mxu0 %v1064
        %1284 = vmatpush1.bf16.msra.mxu0 %v1063
        %1285 = vmatprep.subr.bf16.mxu0 %v1056
        %1286 = vmatpush1.bf16.msra.mxu0 %v1055
        %1287 = vmatprep.subr.bf16.mxu0 %v1048
        %1288 = vmatpush1.bf16.msra.mxu0 %v1047
        %1289 = vmatprep.subr.bf16.mxu0 %v1040
        %1290 = vmatpush1.bf16.msra.mxu0 %v1039
        %1291 = vmatprep.subr.bf16.mxu0 %v1032
        %1292 = vmatpush1.bf16.msra.mxu0 %v1031
        %1293 = vmatprep.subr.bf16.mxu0 %v1024
        %1294 = vmatpush1.bf16.msra.mxu0 %v1023
        %1295 = vmatprep.subr.bf16.mxu0 %v1144
        %1296 = vmatpush2.bf16.msra.mxu0 %v1143
        %1297 = vmatprep.subr.bf16.mxu0 %v1136
        %1298 = vmatpush2.bf16.msra.mxu0 %v1135
        %1299 = vmatprep.subr.bf16.mxu0 %v1128
        %1300 = vmatpush2.bf16.msra.mxu0 %v1127
        %1301 = vmatprep.subr.bf16.mxu0 %v1120
        %1302 = vmatpush2.bf16.msra.mxu0 %v1119
        %1303 = vmatprep.subr.bf16.mxu0 %v1112
        %1304 = vmatpush2.bf16.msra.mxu0 %v1111
        %1305 = vmatprep.subr.bf16.mxu0 %v1104
        %1306 = vmatpush2.bf16.msra.mxu0 %v1103
        %1307 = vmatprep.subr.bf16.mxu0 %v1096
        %1308 = vmatpush2.bf16.msra.mxu0 %v1095
        %1309 = vmatprep.subr.bf16.mxu0 %v1088
        %1310 = vmatpush2.bf16.msra.mxu0 %v1087
        %1311 = vmatprep.mubr.bf16.mxu0 %v504
        %1312 = vmatmul.mubr.bf16.gmra.mxu0 %v503
        %v1313 = vpop.f32.mrf.mxu0
        %v1314 = vadd.f32 0.0, %v1313
        %v1315 = vpop.f32.mrf.mxu0
        %v1316 = vadd.f32 0.0, %v1315
        %v1317 = vpop.f32.mrf.mxu0
        %v1318 = vadd.f32 0.0, %v1317
        %v1319 = vpop.f32.mrf.mxu0
        %v1320 = vadd.f32 0.0, %v1319
        %1321 = vmatprep.mubr.bf16.mxu0 %v506
        %1322 = vmatmul.mubr.bf16.gmra.mxu0 %v505
        %v1323 = vpop.f32.mrf.mxu0
        %v1324 = vadd.f32 0.0, %v1323
        %v1325 = vpop.f32.mrf.mxu0
        %v1326 = vadd.f32 0.0, %v1325
        %v1327 = vpop.f32.mrf.mxu0
        %v1328 = vadd.f32 0.0, %v1327
        %v1329 = vpop.f32.mrf.mxu0
        %v1330 = vadd.f32 0.0, %v1329
        %1331 = vmatprep.mubr.bf16.mxu0 %v508
        %1332 = vmatmul.mubr.bf16.gmra.mxu0 %v507
        %v1333 = vpop.f32.mrf.mxu0
        %v1334 = vadd.f32 0.0, %v1333
        %v1335 = vpop.f32.mrf.mxu0
        %v1336 = vadd.f32 0.0, %v1335
        %v1337 = vpop.f32.mrf.mxu0
        %v1338 = vadd.f32 0.0, %v1337
        %v1339 = vpop.f32.mrf.mxu0
        %v1340 = vadd.f32 0.0, %v1339
        %1341 = vmatprep.mubr.bf16.mxu0 %v510
        %1342 = vmatmul.mubr.bf16.gmra.mxu0 %v509
        %v1343 = vpop.f32.mrf.mxu0
        %v1344 = vadd.f32 0.0, %v1343
        %v1345 = vpop.f32.mrf.mxu0
        %v1346 = vadd.f32 0.0, %v1345
        %v1347 = vpop.f32.mrf.mxu0
        %v1348 = vadd.f32 0.0, %v1347
        %v1349 = vpop.f32.mrf.mxu0
        %v1350 = vadd.f32 0.0, %v1349
        %1351 = vdwg.mxu0
        %1352 = vmatprep.subr.bf16.mxu0 %v1082
        %1353 = vmatpush1.bf16.msra.mxu0 %v1081
        %1354 = vmatprep.subr.bf16.mxu0 %v1074
        %1355 = vmatpush1.bf16.msra.mxu0 %v1073
        %1356 = vmatprep.subr.bf16.mxu0 %v1066
        %1357 = vmatpush1.bf16.msra.mxu0 %v1065
        %1358 = vmatprep.subr.bf16.mxu0 %v1058
        %1359 = vmatpush1.bf16.msra.mxu0 %v1057
        %1360 = vmatprep.subr.bf16.mxu0 %v1050
        %1361 = vmatpush1.bf16.msra.mxu0 %v1049
        %1362 = vmatprep.subr.bf16.mxu0 %v1042
        %1363 = vmatpush1.bf16.msra.mxu0 %v1041
        %1364 = vmatprep.subr.bf16.mxu0 %v1034
        %1365 = vmatpush1.bf16.msra.mxu0 %v1033
        %1366 = vmatprep.subr.bf16.mxu0 %v1026
        %1367 = vmatpush1.bf16.msra.mxu0 %v1025
        %1368 = vmatprep.subr.bf16.mxu0 %v1146
        %1369 = vmatpush2.bf16.msra.mxu0 %v1145
        %1370 = vmatprep.subr.bf16.mxu0 %v1138
        %1371 = vmatpush2.bf16.msra.mxu0 %v1137
        %1372 = vmatprep.subr.bf16.mxu0 %v1130
        %1373 = vmatpush2.bf16.msra.mxu0 %v1129
        %1374 = vmatprep.subr.bf16.mxu0 %v1122
        %1375 = vmatpush2.bf16.msra.mxu0 %v1121
        %1376 = vmatprep.subr.bf16.mxu0 %v1114
        %1377 = vmatpush2.bf16.msra.mxu0 %v1113
        %1378 = vmatprep.subr.bf16.mxu0 %v1106
        %1379 = vmatpush2.bf16.msra.mxu0 %v1105
        %1380 = vmatprep.subr.bf16.mxu0 %v1098
        %1381 = vmatpush2.bf16.msra.mxu0 %v1097
        %1382 = vmatprep.subr.bf16.mxu0 %v1090
        %1383 = vmatpush2.bf16.msra.mxu0 %v1089
        %1384 = vmatprep.mubr.bf16.mxu0 %v504
        %1385 = vmatmul.mubr.bf16.gmra.mxu0 %v503
        %v1386 = vpop.f32.mrf.mxu0
        %v1387 = vadd.f32 0.0, %v1386
        %v1388 = vpop.f32.mrf.mxu0
        %v1389 = vadd.f32 0.0, %v1388
        %v1390 = vpop.f32.mrf.mxu0
        %v1391 = vadd.f32 0.0, %v1390
        %v1392 = vpop.f32.mrf.mxu0
        %v1393 = vadd.f32 0.0, %v1392
        %1394 = vmatprep.mubr.bf16.mxu0 %v506
        %1395 = vmatmul.mubr.bf16.gmra.mxu0 %v505
        %v1396 = vpop.f32.mrf.mxu0
        %v1397 = vadd.f32 0.0, %v1396
        %v1398 = vpop.f32.mrf.mxu0
        %v1399 = vadd.f32 0.0, %v1398
        %v1400 = vpop.f32.mrf.mxu0
        %v1401 = vadd.f32 0.0, %v1400
        %v1402 = vpop.f32.mrf.mxu0
        %v1403 = vadd.f32 0.0, %v1402
        %1404 = vmatprep.mubr.bf16.mxu0 %v508
        %1405 = vmatmul.mubr.bf16.gmra.mxu0 %v507
        %v1406 = vpop.f32.mrf.mxu0
        %v1407 = vadd.f32 0.0, %v1406
        %v1408 = vpop.f32.mrf.mxu0
        %v1409 = vadd.f32 0.0, %v1408
        %v1410 = vpop.f32.mrf.mxu0
        %v1411 = vadd.f32 0.0, %v1410
        %v1412 = vpop.f32.mrf.mxu0
        %v1413 = vadd.f32 0.0, %v1412
        %1414 = vmatprep.mubr.bf16.mxu0 %v510
        %1415 = vmatmul.mubr.bf16.gmra.mxu0 %v509
        %v1416 = vpop.f32.mrf.mxu0
        %v1417 = vadd.f32 0.0, %v1416
        %v1418 = vpop.f32.mrf.mxu0
        %v1419 = vadd.f32 0.0, %v1418
        %v1420 = vpop.f32.mrf.mxu0
        %v1421 = vadd.f32 0.0, %v1420
        %v1422 = vpop.f32.mrf.mxu0
        %v1423 = vadd.f32 0.0, %v1422
        %1424 = vdwg.mxu0
        %1425 = vmatprep.subr.bf16.mxu0 %v1084
        %1426 = vmatpush1.bf16.msra.mxu0 %v1083
        %1427 = vmatprep.subr.bf16.mxu0 %v1076
        %1428 = vmatpush1.bf16.msra.mxu0 %v1075
        %1429 = vmatprep.subr.bf16.mxu0 %v1068
        %1430 = vmatpush1.bf16.msra.mxu0 %v1067
        %1431 = vmatprep.subr.bf16.mxu0 %v1060
        %1432 = vmatpush1.bf16.msra.mxu0 %v1059
        %1433 = vmatprep.subr.bf16.mxu0 %v1052
        %1434 = vmatpush1.bf16.msra.mxu0 %v1051
        %1435 = vmatprep.subr.bf16.mxu0 %v1044
        %1436 = vmatpush1.bf16.msra.mxu0 %v1043
        %1437 = vmatprep.subr.bf16.mxu0 %v1036
        %1438 = vmatpush1.bf16.msra.mxu0 %v1035
        %1439 = vmatprep.subr.bf16.mxu0 %v1028
        %1440 = vmatpush1.bf16.msra.mxu0 %v1027
        %1441 = vmatprep.subr.bf16.mxu0 %v1148
        %1442 = vmatpush2.bf16.msra.mxu0 %v1147
        %1443 = vmatprep.subr.bf16.mxu0 %v1140
        %1444 = vmatpush2.bf16.msra.mxu0 %v1139
        %1445 = vmatprep.subr.bf16.mxu0 %v1132
        %1446 = vmatpush2.bf16.msra.mxu0 %v1131
        %1447 = vmatprep.subr.bf16.mxu0 %v1124
        %1448 = vmatpush2.bf16.msra.mxu0 %v1123
        %1449 = vmatprep.subr.bf16.mxu0 %v1116
        %1450 = vmatpush2.bf16.msra.mxu0 %v1115
        %1451 = vmatprep.subr.bf16.mxu0 %v1108
        %1452 = vmatpush2.bf16.msra.mxu0 %v1107
        %1453 = vmatprep.subr.bf16.mxu0 %v1100
        %1454 = vmatpush2.bf16.msra.mxu0 %v1099
        %1455 = vmatprep.subr.bf16.mxu0 %v1092
        %1456 = vmatpush2.bf16.msra.mxu0 %v1091
        %1457 = vmatprep.mubr.bf16.mxu0 %v504
        %1458 = vmatmul.mubr.bf16.gmra.mxu0 %v503
        %v1459 = vpop.f32.mrf.mxu0
        %v1460 = vadd.f32 0.0, %v1459
        %v1461 = vpop.f32.mrf.mxu0
        %v1462 = vadd.f32 0.0, %v1461
        %v1463 = vpop.f32.mrf.mxu0
        %v1464 = vadd.f32 0.0, %v1463
        %v1465 = vpop.f32.mrf.mxu0
        %v1466 = vadd.f32 0.0, %v1465
        %1467 = vmatprep.mubr.bf16.mxu0 %v506
        %1468 = vmatmul.mubr.bf16.gmra.mxu0 %v505
        %v1469 = vpop.f32.mrf.mxu0
        %v1470 = vadd.f32 0.0, %v1469
        %v1471 = vpop.f32.mrf.mxu0
        %v1472 = vadd.f32 0.0, %v1471
        %v1473 = vpop.f32.mrf.mxu0
        %v1474 = vadd.f32 0.0, %v1473
        %v1475 = vpop.f32.mrf.mxu0
        %v1476 = vadd.f32 0.0, %v1475
        %1477 = vmatprep.mubr.bf16.mxu0 %v508
        %1478 = vmatmul.mubr.bf16.gmra.mxu0 %v507
        %v1479 = vpop.f32.mrf.mxu0
        %v1480 = vadd.f32 0.0, %v1479
        %v1481 = vpop.f32.mrf.mxu0
        %v1482 = vadd.f32 0.0, %v1481
        %v1483 = vpop.f32.mrf.mxu0
        %v1484 = vadd.f32 0.0, %v1483
        %v1485 = vpop.f32.mrf.mxu0
        %v1486 = vadd.f32 0.0, %v1485
        %1487 = vmatprep.mubr.bf16.mxu0 %v510
        %1488 = vmatmul.mubr.bf16.gmra.mxu0 %v509
        %v1489 = vpop.f32.mrf.mxu0
        %v1490 = vadd.f32 0.0, %v1489
        %v1491 = vpop.f32.mrf.mxu0
        %v1492 = vadd.f32 0.0, %v1491
        %v1493 = vpop.f32.mrf.mxu0
        %v1494 = vadd.f32 0.0, %v1493
        %v1495 = vpop.f32.mrf.mxu0
        %v1496 = vadd.f32 0.0, %v1495
        %1497 = vdwg.mxu0
        %1498 = vmatprep.subr.bf16.mxu0 %v1086
        %1499 = vmatpush1.bf16.msra.mxu0 %v1085
        %1500 = vmatprep.subr.bf16.mxu0 %v1078
        %1501 = vmatpush1.bf16.msra.mxu0 %v1077
        %1502 = vmatprep.subr.bf16.mxu0 %v1070
        %1503 = vmatpush1.bf16.msra.mxu0 %v1069
        %1504 = vmatprep.subr.bf16.mxu0 %v1062
        %1505 = vmatpush1.bf16.msra.mxu0 %v1061
        %1506 = vmatprep.subr.bf16.mxu0 %v1054
        %1507 = vmatpush1.bf16.msra.mxu0 %v1053
        %1508 = vmatprep.subr.bf16.mxu0 %v1046
        %1509 = vmatpush1.bf16.msra.mxu0 %v1045
        %1510 = vmatprep.subr.bf16.mxu0 %v1038
        %1511 = vmatpush1.bf16.msra.mxu0 %v1037
        %1512 = vmatprep.subr.bf16.mxu0 %v1030
        %1513 = vmatpush1.bf16.msra.mxu0 %v1029
        %1514 = vmatprep.subr.bf16.mxu0 %v1150
        %1515 = vmatpush2.bf16.msra.mxu0 %v1149
        %1516 = vmatprep.subr.bf16.mxu0 %v1142
        %1517 = vmatpush2.bf16.msra.mxu0 %v1141
        %1518 = vmatprep.subr.bf16.mxu0 %v1134
        %1519 = vmatpush2.bf16.msra.mxu0 %v1133
        %1520 = vmatprep.subr.bf16.mxu0 %v1126
        %1521 = vmatpush2.bf16.msra.mxu0 %v1125
        %1522 = vmatprep.subr.bf16.mxu0 %v1118
        %1523 = vmatpush2.bf16.msra.mxu0 %v1117
        %1524 = vmatprep.subr.bf16.mxu0 %v1110
        %1525 = vmatpush2.bf16.msra.mxu0 %v1109
        %1526 = vmatprep.subr.bf16.mxu0 %v1102
        %1527 = vmatpush2.bf16.msra.mxu0 %v1101
        %1528 = vmatprep.subr.bf16.mxu0 %v1094
        %1529 = vmatpush2.bf16.msra.mxu0 %v1093
        %1530 = vmatprep.mubr.bf16.mxu0 %v504
        %1531 = vmatmul.mubr.bf16.gmra.mxu0 %v503
        %v1532 = vpop.f32.mrf.mxu0
        %v1533 = vadd.f32 0.0, %v1532
        %v1534 = vpop.f32.mrf.mxu0
        %v1535 = vadd.f32 0.0, %v1534
        %v1536 = vpop.f32.mrf.mxu0
        %v1537 = vadd.f32 0.0, %v1536
        %v1538 = vpop.f32.mrf.mxu0
        %v1539 = vadd.f32 0.0, %v1538
        %1540 = vmatprep.mubr.bf16.mxu0 %v506
        %1541 = vmatmul.mubr.bf16.gmra.mxu0 %v505
        %v1542 = vpop.f32.mrf.mxu0
        %v1543 = vadd.f32 0.0, %v1542
        %v1544 = vpop.f32.mrf.mxu0
        %v1545 = vadd.f32 0.0, %v1544
        %v1546 = vpop.f32.mrf.mxu0
        %v1547 = vadd.f32 0.0, %v1546
        %v1548 = vpop.f32.mrf.mxu0
        %v1549 = vadd.f32 0.0, %v1548
        %1550 = vmatprep.mubr.bf16.mxu0 %v508
        %1551 = vmatmul.mubr.bf16.gmra.mxu0 %v507
        %v1552 = vpop.f32.mrf.mxu0
        %v1553 = vadd.f32 0.0, %v1552
        %v1554 = vpop.f32.mrf.mxu0
        %v1555 = vadd.f32 0.0, %v1554
        %v1556 = vpop.f32.mrf.mxu0
        %v1557 = vadd.f32 0.0, %v1556
        %v1558 = vpop.f32.mrf.mxu0
        %v1559 = vadd.f32 0.0, %v1558
        %1560 = vmatprep.mubr.bf16.mxu0 %v510
        %1561 = vmatmul.mubr.bf16.gmra.mxu0 %v509
        %v1562 = vpop.f32.mrf.mxu0
        %v1563 = vadd.f32 0.0, %v1562
        %v1564 = vpop.f32.mrf.mxu0
        %v1565 = vadd.f32 0.0, %v1564
        %v1566 = vpop.f32.mrf.mxu0
        %v1567 = vadd.f32 0.0, %v1566
        %v1568 = vpop.f32.mrf.mxu0
        %v1569 = vadd.f32 0.0, %v1568
        %1570 = vdwg.mxu0
        %v1699 = vunpack.c.l.b16 %v282
        %v1700 = vunpack.c.h.b16 %v282
        %v1701 = vunpack.c.l.b16 %v283
        %v1702 = vunpack.c.h.b16 %v283
        %v1703 = vunpack.c.l.b16 %v284
        %v1704 = vunpack.c.h.b16 %v284
        %v1705 = vunpack.c.l.b16 %v285
        %v1706 = vunpack.c.h.b16 %v285
        %v1707 = vunpack.c.l.b16 %v286
        %v1708 = vunpack.c.h.b16 %v286
        %v1709 = vunpack.c.l.b16 %v287
        %v1710 = vunpack.c.h.b16 %v287
        %v1711 = vunpack.c.l.b16 %v288
        %v1712 = vunpack.c.h.b16 %v288
        %v1713 = vunpack.c.l.b16 %v289
        %v1714 = vunpack.c.h.b16 %v289
        %v1715 = vunpack.c.l.b16 %v290
        %v1716 = vunpack.c.h.b16 %v290
        %v1717 = vunpack.c.l.b16 %v291
        %v1718 = vunpack.c.h.b16 %v291
        %v1719 = vunpack.c.l.b16 %v292
        %v1720 = vunpack.c.h.b16 %v292
        %v1721 = vunpack.c.l.b16 %v293
        %v1722 = vunpack.c.h.b16 %v293
        %v1723 = vunpack.c.l.b16 %v294
        %v1724 = vunpack.c.h.b16 %v294
        %v1725 = vunpack.c.l.b16 %v295
        %v1726 = vunpack.c.h.b16 %v295
        %v1727 = vunpack.c.l.b16 %v296
        %v1728 = vunpack.c.h.b16 %v296
        %v1729 = vunpack.c.l.b16 %v297
        %v1730 = vunpack.c.h.b16 %v297
        %v1731 = vunpack.c.l.b16 %v298
        %v1732 = vunpack.c.h.b16 %v298
        %v1733 = vunpack.c.l.b16 %v299
        %v1734 = vunpack.c.h.b16 %v299
        %v1735 = vunpack.c.l.b16 %v300
        %v1736 = vunpack.c.h.b16 %v300
        %v1737 = vunpack.c.l.b16 %v301
        %v1738 = vunpack.c.h.b16 %v301
        %v1739 = vunpack.c.l.b16 %v302
        %v1740 = vunpack.c.h.b16 %v302
        %v1741 = vunpack.c.l.b16 %v303
        %v1742 = vunpack.c.h.b16 %v303
        %v1743 = vunpack.c.l.b16 %v304
        %v1744 = vunpack.c.h.b16 %v304
        %v1745 = vunpack.c.l.b16 %v305
        %v1746 = vunpack.c.h.b16 %v305
        %v1747 = vunpack.c.l.b16 %v306
        %v1748 = vunpack.c.h.b16 %v306
        %v1749 = vunpack.c.l.b16 %v307
        %v1750 = vunpack.c.h.b16 %v307
        %v1751 = vunpack.c.l.b16 %v308
        %v1752 = vunpack.c.h.b16 %v308
        %v1753 = vunpack.c.l.b16 %v309
        %v1754 = vunpack.c.h.b16 %v309
        %v1755 = vunpack.c.l.b16 %v310
        %v1756 = vunpack.c.h.b16 %v310
        %v1757 = vunpack.c.l.b16 %v311
        %v1758 = vunpack.c.h.b16 %v311
        %v1759 = vunpack.c.l.b16 %v312
        %v1760 = vunpack.c.h.b16 %v312
        %v1761 = vunpack.c.l.b16 %v313
        %v1762 = vunpack.c.h.b16 %v313
        %v1763 = vunpack.c.l.b16 %v314
        %v1764 = vunpack.c.h.b16 %v314
        %v1765 = vunpack.c.l.b16 %v315
        %v1766 = vunpack.c.h.b16 %v315
        %v1767 = vunpack.c.l.b16 %v316
        %v1768 = vunpack.c.h.b16 %v316
        %v1769 = vunpack.c.l.b16 %v317
        %v1770 = vunpack.c.h.b16 %v317
        %v1771 = vunpack.c.l.b16 %v318
        %v1772 = vunpack.c.h.b16 %v318
        %v1773 = vunpack.c.l.b16 %v319
        %v1774 = vunpack.c.h.b16 %v319
        %v1775 = vunpack.c.l.b16 %v320
        %v1776 = vunpack.c.h.b16 %v320
        %v1777 = vunpack.c.l.b16 %v321
        %v1778 = vunpack.c.h.b16 %v321
        %v1779 = vunpack.c.l.b16 %v322
        %v1780 = vunpack.c.h.b16 %v322
        %v1781 = vunpack.c.l.b16 %v323
        %v1782 = vunpack.c.h.b16 %v323
        %v1783 = vunpack.c.l.b16 %v324
        %v1784 = vunpack.c.h.b16 %v324
        %v1785 = vunpack.c.l.b16 %v325
        %v1786 = vunpack.c.h.b16 %v325
        %v1787 = vunpack.c.l.b16 %v326
        %v1788 = vunpack.c.h.b16 %v326
        %v1789 = vunpack.c.l.b16 %v327
        %v1790 = vunpack.c.h.b16 %v327
        %v1791 = vunpack.c.l.b16 %v328
        %v1792 = vunpack.c.h.b16 %v328
        %v1793 = vunpack.c.l.b16 %v329
        %v1794 = vunpack.c.h.b16 %v329
        %v1795 = vunpack.c.l.b16 %v330
        %v1796 = vunpack.c.h.b16 %v330
        %v1797 = vunpack.c.l.b16 %v331
        %v1798 = vunpack.c.h.b16 %v331
        %v1799 = vunpack.c.l.b16 %v332
        %v1800 = vunpack.c.h.b16 %v332
        %v1801 = vunpack.c.l.b16 %v333
        %v1802 = vunpack.c.h.b16 %v333
        %v1803 = vunpack.c.l.b16 %v334
        %v1804 = vunpack.c.h.b16 %v334
        %v1805 = vunpack.c.l.b16 %v335
        %v1806 = vunpack.c.h.b16 %v335
        %v1807 = vunpack.c.l.b16 %v336
        %v1808 = vunpack.c.h.b16 %v336
        %v1809 = vunpack.c.l.b16 %v337
        %v1810 = vunpack.c.h.b16 %v337
        %v1811 = vunpack.c.l.b16 %v338
        %v1812 = vunpack.c.h.b16 %v338
        %v1813 = vunpack.c.l.b16 %v339
        %v1814 = vunpack.c.h.b16 %v339
        %v1815 = vunpack.c.l.b16 %v340
        %v1816 = vunpack.c.h.b16 %v340
        %v1817 = vunpack.c.l.b16 %v341
        %v1818 = vunpack.c.h.b16 %v341
        %v1819 = vunpack.c.l.b16 %v342
        %v1820 = vunpack.c.h.b16 %v342
        %v1821 = vunpack.c.l.b16 %v343
        %v1822 = vunpack.c.h.b16 %v343
        %v1823 = vunpack.c.l.b16 %v344
        %v1824 = vunpack.c.h.b16 %v344
        %v1825 = vunpack.c.l.b16 %v345
        %v1826 = vunpack.c.h.b16 %v345
        %v1827 = vunpack.c.l.b16 %v346
        %v1828 = vunpack.c.h.b16 %v346
        %v1829 = vunpack.c.l.b16 %v347
        %v1830 = vunpack.c.h.b16 %v347
        %v1831 = vunpack.c.l.b16 %v348
        %v1832 = vunpack.c.h.b16 %v348
        %v1833 = vunpack.c.l.b16 %v349
        %v1834 = vunpack.c.h.b16 %v349
        %v1835 = vunpack.c.l.b16 %v350
        %v1836 = vunpack.c.h.b16 %v350
        %v1837 = vunpack.c.l.b16 %v351
        %v1838 = vunpack.c.h.b16 %v351
        %v1839 = vunpack.c.l.b16 %v352
        %v1840 = vunpack.c.h.b16 %v352
        %v1841 = vunpack.c.l.b16 %v353
        %v1842 = vunpack.c.h.b16 %v353
        %v1843 = vunpack.c.l.b16 %v354
        %v1844 = vunpack.c.h.b16 %v354
        %v1845 = vunpack.c.l.b16 %v355
        %v1846 = vunpack.c.h.b16 %v355
        %v1847 = vunpack.c.l.b16 %v356
        %v1848 = vunpack.c.h.b16 %v356
        %v1849 = vunpack.c.l.b16 %v357
        %v1850 = vunpack.c.h.b16 %v357
        %v1851 = vunpack.c.l.b16 %v358
        %v1852 = vunpack.c.h.b16 %v358
        %v1853 = vunpack.c.l.b16 %v359
        %v1854 = vunpack.c.h.b16 %v359
        %v1855 = vunpack.c.l.b16 %v360
        %v1856 = vunpack.c.h.b16 %v360
        %v1857 = vunpack.c.l.b16 %v361
        %v1858 = vunpack.c.h.b16 %v361
        %v1859 = vunpack.c.l.b16 %v362
        %v1860 = vunpack.c.h.b16 %v362
        %v1861 = vunpack.c.l.b16 %v363
        %v1862 = vunpack.c.h.b16 %v363
        %v1863 = vunpack.c.l.b16 %v364
        %v1864 = vunpack.c.h.b16 %v364
        %v1865 = vunpack.c.l.b16 %v365
        %v1866 = vunpack.c.h.b16 %v365
        %v1867 = vunpack.c.l.b16 %v366
        %v1868 = vunpack.c.h.b16 %v366
        %v1869 = vunpack.c.l.b16 %v367
        %v1870 = vunpack.c.h.b16 %v367
        %v1871 = vunpack.c.l.b16 %v368
        %v1872 = vunpack.c.h.b16 %v368
        %v1873 = vunpack.c.l.b16 %v369
        %v1874 = vunpack.c.h.b16 %v369
        %v1875 = vunpack.c.l.b16 %v370
        %v1876 = vunpack.c.h.b16 %v370
        %v1877 = vunpack.c.l.b16 %v371
        %v1878 = vunpack.c.h.b16 %v371
        %v1879 = vunpack.c.l.b16 %v372
        %v1880 = vunpack.c.h.b16 %v372
        %v1881 = vunpack.c.l.b16 %v373
        %v1882 = vunpack.c.h.b16 %v373
        %v1883 = vunpack.c.l.b16 %v374
        %v1884 = vunpack.c.h.b16 %v374
        %v1885 = vunpack.c.l.b16 %v375
        %v1886 = vunpack.c.h.b16 %v375
        %v1887 = vunpack.c.l.b16 %v376
        %v1888 = vunpack.c.h.b16 %v376
        %v1889 = vunpack.c.l.b16 %v377
        %v1890 = vunpack.c.h.b16 %v377
        %v1891 = vunpack.c.l.b16 %v378
        %v1892 = vunpack.c.h.b16 %v378
        %v1893 = vunpack.c.l.b16 %v379
        %v1894 = vunpack.c.h.b16 %v379
        %v1895 = vunpack.c.l.b16 %v380
        %v1896 = vunpack.c.h.b16 %v380
        %v1897 = vunpack.c.l.b16 %v381
        %v1898 = vunpack.c.h.b16 %v381
        %v1899 = vunpack.c.l.b16 %v382
        %v1900 = vunpack.c.h.b16 %v382
        %v1901 = vunpack.c.l.b16 %v383
        %v1902 = vunpack.c.h.b16 %v383
        %v1903 = vunpack.c.l.b16 %v384
        %v1904 = vunpack.c.h.b16 %v384
        %v1905 = vunpack.c.l.b16 %v385
        %v1906 = vunpack.c.h.b16 %v385
        %v1907 = vunpack.c.l.b16 %v386
        %v1908 = vunpack.c.h.b16 %v386
        %v1909 = vunpack.c.l.b16 %v387
        %v1910 = vunpack.c.h.b16 %v387
        %v1911 = vunpack.c.l.b16 %v388
        %v1912 = vunpack.c.h.b16 %v388
        %v1913 = vunpack.c.l.b16 %v389
        %v1914 = vunpack.c.h.b16 %v389
        %v1915 = vunpack.c.l.b16 %v390
        %v1916 = vunpack.c.h.b16 %v390
        %v1917 = vunpack.c.l.b16 %v391
        %v1918 = vunpack.c.h.b16 %v391
        %v1919 = vunpack.c.l.b16 %v392
        %v1920 = vunpack.c.h.b16 %v392
        %v1921 = vunpack.c.l.b16 %v393
        %v1922 = vunpack.c.h.b16 %v393
        %v1923 = vunpack.c.l.b16 %v394
        %v1924 = vunpack.c.h.b16 %v394
        %v1925 = vunpack.c.l.b16 %v395
        %v1926 = vunpack.c.h.b16 %v395
        %v1927 = vunpack.c.l.b16 %v396
        %v1928 = vunpack.c.h.b16 %v396
        %v1929 = vunpack.c.l.b16 %v397
        %v1930 = vunpack.c.h.b16 %v397
        %v1931 = vunpack.c.l.b16 %v398
        %v1932 = vunpack.c.h.b16 %v398
        %v1933 = vunpack.c.l.b16 %v399
        %v1934 = vunpack.c.h.b16 %v399
        %v1935 = vunpack.c.l.b16 %v400
        %v1936 = vunpack.c.h.b16 %v400
        %v1937 = vunpack.c.l.b16 %v401
        %v1938 = vunpack.c.h.b16 %v401
        %v1939 = vunpack.c.l.b16 %v402
        %v1940 = vunpack.c.h.b16 %v402
        %v1941 = vunpack.c.l.b16 %v403
        %v1942 = vunpack.c.h.b16 %v403
        %v1943 = vunpack.c.l.b16 %v404
        %v1944 = vunpack.c.h.b16 %v404
        %v1945 = vunpack.c.l.b16 %v405
        %v1946 = vunpack.c.h.b16 %v405
        %v1947 = vunpack.c.l.b16 %v406
        %v1948 = vunpack.c.h.b16 %v406
        %v1949 = vunpack.c.l.b16 %v407
        %v1950 = vunpack.c.h.b16 %v407
        %v1951 = vunpack.c.l.b16 %v408
        %v1952 = vunpack.c.h.b16 %v408
        %v1953 = vunpack.c.l.b16 %v409
        %v1954 = vunpack.c.h.b16 %v409
        %v1955 = vpack.c.b16 %v1707, %v1699
        %v1956 = vpack.c.b16 %v1708, %v1700
        %v1957 = vpack.c.b16 %v1709, %v1701
        %v1958 = vpack.c.b16 %v1710, %v1702
        %v1959 = vpack.c.b16 %v1711, %v1703
        %v1960 = vpack.c.b16 %v1712, %v1704
        %v1961 = vpack.c.b16 %v1713, %v1705
        %v1962 = vpack.c.b16 %v1714, %v1706
        %v1963 = vpack.c.b16 %v1723, %v1715
        %v1964 = vpack.c.b16 %v1724, %v1716
        %v1965 = vpack.c.b16 %v1725, %v1717
        %v1966 = vpack.c.b16 %v1726, %v1718
        %v1967 = vpack.c.b16 %v1727, %v1719
        %v1968 = vpack.c.b16 %v1728, %v1720
        %v1969 = vpack.c.b16 %v1729, %v1721
        %v1970 = vpack.c.b16 %v1730, %v1722
        %v1971 = vpack.c.b16 %v1739, %v1731
        %v1972 = vpack.c.b16 %v1740, %v1732
        %v1973 = vpack.c.b16 %v1741, %v1733
        %v1974 = vpack.c.b16 %v1742, %v1734
        %v1975 = vpack.c.b16 %v1743, %v1735
        %v1976 = vpack.c.b16 %v1744, %v1736
        %v1977 = vpack.c.b16 %v1745, %v1737
        %v1978 = vpack.c.b16 %v1746, %v1738
        %v1979 = vpack.c.b16 %v1755, %v1747
        %v1980 = vpack.c.b16 %v1756, %v1748
        %v1981 = vpack.c.b16 %v1757, %v1749
        %v1982 = vpack.c.b16 %v1758, %v1750
        %v1983 = vpack.c.b16 %v1759, %v1751
        %v1984 = vpack.c.b16 %v1760, %v1752
        %v1985 = vpack.c.b16 %v1761, %v1753
        %v1986 = vpack.c.b16 %v1762, %v1754
        %v1987 = vpack.c.b16 %v1771, %v1763
        %v1988 = vpack.c.b16 %v1772, %v1764
        %v1989 = vpack.c.b16 %v1773, %v1765
        %v1990 = vpack.c.b16 %v1774, %v1766
        %v1991 = vpack.c.b16 %v1775, %v1767
        %v1992 = vpack.c.b16 %v1776, %v1768
        %v1993 = vpack.c.b16 %v1777, %v1769
        %v1994 = vpack.c.b16 %v1778, %v1770
        %v1995 = vpack.c.b16 %v1787, %v1779
        %v1996 = vpack.c.b16 %v1788, %v1780
        %v1997 = vpack.c.b16 %v1789, %v1781
        %v1998 = vpack.c.b16 %v1790, %v1782
        %v1999 = vpack.c.b16 %v1791, %v1783
        %v2000 = vpack.c.b16 %v1792, %v1784
        %v2001 = vpack.c.b16 %v1793, %v1785
        %v2002 = vpack.c.b16 %v1794, %v1786
        %v2003 = vpack.c.b16 %v1803, %v1795
        %v2004 = vpack.c.b16 %v1804, %v1796
        %v2005 = vpack.c.b16 %v1805, %v1797
        %v2006 = vpack.c.b16 %v1806, %v1798
        %v2007 = vpack.c.b16 %v1807, %v1799
        %v2008 = vpack.c.b16 %v1808, %v1800
        %v2009 = vpack.c.b16 %v1809, %v1801
        %v2010 = vpack.c.b16 %v1810, %v1802
        %v2011 = vpack.c.b16 %v1819, %v1811
        %v2012 = vpack.c.b16 %v1820, %v1812
        %v2013 = vpack.c.b16 %v1821, %v1813
        %v2014 = vpack.c.b16 %v1822, %v1814
        %v2015 = vpack.c.b16 %v1823, %v1815
        %v2016 = vpack.c.b16 %v1824, %v1816
        %v2017 = vpack.c.b16 %v1825, %v1817
        %v2018 = vpack.c.b16 %v1826, %v1818
        %v2019 = vpack.c.b16 %v1835, %v1827
        %v2020 = vpack.c.b16 %v1836, %v1828
        %v2021 = vpack.c.b16 %v1837, %v1829
        %v2022 = vpack.c.b16 %v1838, %v1830
        %v2023 = vpack.c.b16 %v1839, %v1831
        %v2024 = vpack.c.b16 %v1840, %v1832
        %v2025 = vpack.c.b16 %v1841, %v1833
        %v2026 = vpack.c.b16 %v1842, %v1834
        %v2027 = vpack.c.b16 %v1851, %v1843
        %v2028 = vpack.c.b16 %v1852, %v1844
        %v2029 = vpack.c.b16 %v1853, %v1845
        %v2030 = vpack.c.b16 %v1854, %v1846
        %v2031 = vpack.c.b16 %v1855, %v1847
        %v2032 = vpack.c.b16 %v1856, %v1848
        %v2033 = vpack.c.b16 %v1857, %v1849
        %v2034 = vpack.c.b16 %v1858, %v1850
        %v2035 = vpack.c.b16 %v1867, %v1859
        %v2036 = vpack.c.b16 %v1868, %v1860
        %v2037 = vpack.c.b16 %v1869, %v1861
        %v2038 = vpack.c.b16 %v1870, %v1862
        %v2039 = vpack.c.b16 %v1871, %v1863
        %v2040 = vpack.c.b16 %v1872, %v1864
        %v2041 = vpack.c.b16 %v1873, %v1865
        %v2042 = vpack.c.b16 %v1874, %v1866
        %v2043 = vpack.c.b16 %v1883, %v1875
        %v2044 = vpack.c.b16 %v1884, %v1876
        %v2045 = vpack.c.b16 %v1885, %v1877
        %v2046 = vpack.c.b16 %v1886, %v1878
        %v2047 = vpack.c.b16 %v1887, %v1879
        %v2048 = vpack.c.b16 %v1888, %v1880
        %v2049 = vpack.c.b16 %v1889, %v1881
        %v2050 = vpack.c.b16 %v1890, %v1882
        %v2051 = vpack.c.b16 %v1899, %v1891
        %v2052 = vpack.c.b16 %v1900, %v1892
        %v2053 = vpack.c.b16 %v1901, %v1893
        %v2054 = vpack.c.b16 %v1902, %v1894
        %v2055 = vpack.c.b16 %v1903, %v1895
        %v2056 = vpack.c.b16 %v1904, %v1896
        %v2057 = vpack.c.b16 %v1905, %v1897
        %v2058 = vpack.c.b16 %v1906, %v1898
        %v2059 = vpack.c.b16 %v1915, %v1907
        %v2060 = vpack.c.b16 %v1916, %v1908
        %v2061 = vpack.c.b16 %v1917, %v1909
        %v2062 = vpack.c.b16 %v1918, %v1910
        %v2063 = vpack.c.b16 %v1919, %v1911
        %v2064 = vpack.c.b16 %v1920, %v1912
        %v2065 = vpack.c.b16 %v1921, %v1913
        %v2066 = vpack.c.b16 %v1922, %v1914
        %v2067 = vpack.c.b16 %v1931, %v1923
        %v2068 = vpack.c.b16 %v1932, %v1924
        %v2069 = vpack.c.b16 %v1933, %v1925
        %v2070 = vpack.c.b16 %v1934, %v1926
        %v2071 = vpack.c.b16 %v1935, %v1927
        %v2072 = vpack.c.b16 %v1936, %v1928
        %v2073 = vpack.c.b16 %v1937, %v1929
        %v2074 = vpack.c.b16 %v1938, %v1930
        %v2075 = vpack.c.b16 %v1947, %v1939
        %v2076 = vpack.c.b16 %v1948, %v1940
        %v2077 = vpack.c.b16 %v1949, %v1941
        %v2078 = vpack.c.b16 %v1950, %v1942
        %v2079 = vpack.c.b16 %v1951, %v1943
        %v2080 = vpack.c.b16 %v1952, %v1944
        %v2081 = vpack.c.b16 %v1953, %v1945
        %v2082 = vpack.c.b16 %v1954, %v1946
        %2211 = vmatprep.subr.bf16.mxu0 %v2012
        %2212 = vmatpush1.bf16.msra.mxu0 %v2011
        %2213 = vmatprep.subr.bf16.mxu0 %v2004
        %2214 = vmatpush1.bf16.msra.mxu0 %v2003
        %2215 = vmatprep.subr.bf16.mxu0 %v1996
        %2216 = vmatpush1.bf16.msra.mxu0 %v1995
        %2217 = vmatprep.subr.bf16.mxu0 %v1988
        %2218 = vmatpush1.bf16.msra.mxu0 %v1987
        %2219 = vmatprep.subr.bf16.mxu0 %v1980
        %2220 = vmatpush1.bf16.msra.mxu0 %v1979
        %2221 = vmatprep.subr.bf16.mxu0 %v1972
        %2222 = vmatpush1.bf16.msra.mxu0 %v1971
        %2223 = vmatprep.subr.bf16.mxu0 %v1964
        %2224 = vmatpush1.bf16.msra.mxu0 %v1963
        %2225 = vmatprep.subr.bf16.mxu0 %v1956
        %2226 = vmatpush1.bf16.msra.mxu0 %v1955
        %2227 = vmatprep.subr.bf16.mxu0 %v2076
        %2228 = vmatpush2.bf16.msra.mxu0 %v2075
        %2229 = vmatprep.subr.bf16.mxu0 %v2068
        %2230 = vmatpush2.bf16.msra.mxu0 %v2067
        %2231 = vmatprep.subr.bf16.mxu0 %v2060
        %2232 = vmatpush2.bf16.msra.mxu0 %v2059
        %2233 = vmatprep.subr.bf16.mxu0 %v2052
        %2234 = vmatpush2.bf16.msra.mxu0 %v2051
        %2235 = vmatprep.subr.bf16.mxu0 %v2044
        %2236 = vmatpush2.bf16.msra.mxu0 %v2043
        %2237 = vmatprep.subr.bf16.mxu0 %v2036
        %2238 = vmatpush2.bf16.msra.mxu0 %v2035
        %2239 = vmatprep.subr.bf16.mxu0 %v2028
        %2240 = vmatpush2.bf16.msra.mxu0 %v2027
        %2241 = vmatprep.subr.bf16.mxu0 %v2020
        %2242 = vmatpush2.bf16.msra.mxu0 %v2019
        %2243 = vmatprep.mubr.bf16.mxu0 %v275
        %2244 = vmatmul.mubr.bf16.gmra.mxu0 %v274
        %v2245 = vpop.f32.mrf.mxu0
        %v2246 = vadd.f32 %v1314, %v2245
        %v2247 = vpop.f32.mrf.mxu0
        %v2248 = vadd.f32 %v1316, %v2247
        %v2249 = vpop.f32.mrf.mxu0
        %v2250 = vadd.f32 %v1318, %v2249
        %v2251 = vpop.f32.mrf.mxu0
        %v2252 = vadd.f32 %v1320, %v2251
        %2253 = vmatprep.mubr.bf16.mxu0 %v277
        %2254 = vmatmul.mubr.bf16.gmra.mxu0 %v276
        %v2255 = vpop.f32.mrf.mxu0
        %v2256 = vadd.f32 %v1324, %v2255
        %v2257 = vpop.f32.mrf.mxu0
        %v2258 = vadd.f32 %v1326, %v2257
        %v2259 = vpop.f32.mrf.mxu0
        %v2260 = vadd.f32 %v1328, %v2259
        %v2261 = vpop.f32.mrf.mxu0
        %v2262 = vadd.f32 %v1330, %v2261
        %2263 = vmatprep.mubr.bf16.mxu0 %v279
        %2264 = vmatmul.mubr.bf16.gmra.mxu0 %v278
        %v2265 = vpop.f32.mrf.mxu0
        %v2266 = vadd.f32 %v1334, %v2265
        %v2267 = vpop.f32.mrf.mxu0
        %v2268 = vadd.f32 %v1336, %v2267
        %v2269 = vpop.f32.mrf.mxu0
        %v2270 = vadd.f32 %v1338, %v2269
        %v2271 = vpop.f32.mrf.mxu0
        %v2272 = vadd.f32 %v1340, %v2271
        %2273 = vmatprep.mubr.bf16.mxu0 %v281
        %2274 = vmatmul.mubr.bf16.gmra.mxu0 %v280
        %v2275 = vpop.f32.mrf.mxu0
        %v2276 = vadd.f32 %v1344, %v2275
        %v2277 = vpop.f32.mrf.mxu0
        %v2278 = vadd.f32 %v1346, %v2277
        %v2279 = vpop.f32.mrf.mxu0
        %v2280 = vadd.f32 %v1348, %v2279
        %v2281 = vpop.f32.mrf.mxu0
        %v2282 = vadd.f32 %v1350, %v2281
        %2283 = vdwg.mxu0
        %2284 = vmatprep.subr.bf16.mxu0 %v2014
        %2285 = vmatpush1.bf16.msra.mxu0 %v2013
        %2286 = vmatprep.subr.bf16.mxu0 %v2006
        %2287 = vmatpush1.bf16.msra.mxu0 %v2005
        %2288 = vmatprep.subr.bf16.mxu0 %v1998
        %2289 = vmatpush1.bf16.msra.mxu0 %v1997
        %2290 = vmatprep.subr.bf16.mxu0 %v1990
        %2291 = vmatpush1.bf16.msra.mxu0 %v1989
        %2292 = vmatprep.subr.bf16.mxu0 %v1982
        %2293 = vmatpush1.bf16.msra.mxu0 %v1981
        %2294 = vmatprep.subr.bf16.mxu0 %v1974
        %2295 = vmatpush1.bf16.msra.mxu0 %v1973
        %2296 = vmatprep.subr.bf16.mxu0 %v1966
        %2297 = vmatpush1.bf16.msra.mxu0 %v1965
        %2298 = vmatprep.subr.bf16.mxu0 %v1958
        %2299 = vmatpush1.bf16.msra.mxu0 %v1957
        %2300 = vmatprep.subr.bf16.mxu0 %v2078
        %2301 = vmatpush2.bf16.msra.mxu0 %v2077
        %2302 = vmatprep.subr.bf16.mxu0 %v2070
        %2303 = vmatpush2.bf16.msra.mxu0 %v2069
        %2304 = vmatprep.subr.bf16.mxu0 %v2062
        %2305 = vmatpush2.bf16.msra.mxu0 %v2061
        %2306 = vmatprep.subr.bf16.mxu0 %v2054
        %2307 = vmatpush2.bf16.msra.mxu0 %v2053
        %2308 = vmatprep.subr.bf16.mxu0 %v2046
        %2309 = vmatpush2.bf16.msra.mxu0 %v2045
        %2310 = vmatprep.subr.bf16.mxu0 %v2038
        %2311 = vmatpush2.bf16.msra.mxu0 %v2037
        %2312 = vmatprep.subr.bf16.mxu0 %v2030
        %2313 = vmatpush2.bf16.msra.mxu0 %v2029
        %2314 = vmatprep.subr.bf16.mxu0 %v2022
        %2315 = vmatpush2.bf16.msra.mxu0 %v2021
        %2316 = vmatprep.mubr.bf16.mxu0 %v275
        %2317 = vmatmul.mubr.bf16.gmra.mxu0 %v274
        %v2318 = vpop.f32.mrf.mxu0
        %v2319 = vadd.f32 %v1387, %v2318
        %v2320 = vpop.f32.mrf.mxu0
        %v2321 = vadd.f32 %v1389, %v2320
        %v2322 = vpop.f32.mrf.mxu0
        %v2323 = vadd.f32 %v1391, %v2322
        %v2324 = vpop.f32.mrf.mxu0
        %v2325 = vadd.f32 %v1393, %v2324
        %2326 = vmatprep.mubr.bf16.mxu0 %v277
        %2327 = vmatmul.mubr.bf16.gmra.mxu0 %v276
        %v2328 = vpop.f32.mrf.mxu0
        %v2329 = vadd.f32 %v1397, %v2328
        %v2330 = vpop.f32.mrf.mxu0
        %v2331 = vadd.f32 %v1399, %v2330
        %v2332 = vpop.f32.mrf.mxu0
        %v2333 = vadd.f32 %v1401, %v2332
        %v2334 = vpop.f32.mrf.mxu0
        %v2335 = vadd.f32 %v1403, %v2334
        %2336 = vmatprep.mubr.bf16.mxu0 %v279
        %2337 = vmatmul.mubr.bf16.gmra.mxu0 %v278
        %v2338 = vpop.f32.mrf.mxu0
        %v2339 = vadd.f32 %v1407, %v2338
        %v2340 = vpop.f32.mrf.mxu0
        %v2341 = vadd.f32 %v1409, %v2340
        %v2342 = vpop.f32.mrf.mxu0
        %v2343 = vadd.f32 %v1411, %v2342
        %v2344 = vpop.f32.mrf.mxu0
        %v2345 = vadd.f32 %v1413, %v2344
        %2346 = vmatprep.mubr.bf16.mxu0 %v281
        %2347 = vmatmul.mubr.bf16.gmra.mxu0 %v280
        %v2348 = vpop.f32.mrf.mxu0
        %v2349 = vadd.f32 %v1417, %v2348
        %v2350 = vpop.f32.mrf.mxu0
        %v2351 = vadd.f32 %v1419, %v2350
        %v2352 = vpop.f32.mrf.mxu0
        %v2353 = vadd.f32 %v1421, %v2352
        %v2354 = vpop.f32.mrf.mxu0
        %v2355 = vadd.f32 %v1423, %v2354
        %2356 = vdwg.mxu0
        %2357 = vmatprep.subr.bf16.mxu0 %v2016
        %2358 = vmatpush1.bf16.msra.mxu0 %v2015
        %2359 = vmatprep.subr.bf16.mxu0 %v2008
        %2360 = vmatpush1.bf16.msra.mxu0 %v2007
        %2361 = vmatprep.subr.bf16.mxu0 %v2000
        %2362 = vmatpush1.bf16.msra.mxu0 %v1999
        %2363 = vmatprep.subr.bf16.mxu0 %v1992
        %2364 = vmatpush1.bf16.msra.mxu0 %v1991
        %2365 = vmatprep.subr.bf16.mxu0 %v1984
        %2366 = vmatpush1.bf16.msra.mxu0 %v1983
        %2367 = vmatprep.subr.bf16.mxu0 %v1976
        %2368 = vmatpush1.bf16.msra.mxu0 %v1975
        %2369 = vmatprep.subr.bf16.mxu0 %v1968
        %2370 = vmatpush1.bf16.msra.mxu0 %v1967
        %2371 = vmatprep.subr.bf16.mxu0 %v1960
        %2372 = vmatpush1.bf16.msra.mxu0 %v1959
        %2373 = vmatprep.subr.bf16.mxu0 %v2080
        %2374 = vmatpush2.bf16.msra.mxu0 %v2079
        %2375 = vmatprep.subr.bf16.mxu0 %v2072
        %2376 = vmatpush2.bf16.msra.mxu0 %v2071
        %2377 = vmatprep.subr.bf16.mxu0 %v2064
        %2378 = vmatpush2.bf16.msra.mxu0 %v2063
        %2379 = vmatprep.subr.bf16.mxu0 %v2056
        %2380 = vmatpush2.bf16.msra.mxu0 %v2055
        %2381 = vmatprep.subr.bf16.mxu0 %v2048
        %2382 = vmatpush2.bf16.msra.mxu0 %v2047
        %2383 = vmatprep.subr.bf16.mxu0 %v2040
        %2384 = vmatpush2.bf16.msra.mxu0 %v2039
        %2385 = vmatprep.subr.bf16.mxu0 %v2032
        %2386 = vmatpush2.bf16.msra.mxu0 %v2031
        %2387 = vmatprep.subr.bf16.mxu0 %v2024
        %2388 = vmatpush2.bf16.msra.mxu0 %v2023
        %2389 = vmatprep.mubr.bf16.mxu0 %v275
        %2390 = vmatmul.mubr.bf16.gmra.mxu0 %v274
        %v2391 = vpop.f32.mrf.mxu0
        %v2392 = vadd.f32 %v1460, %v2391
        %v2393 = vpop.f32.mrf.mxu0
        %v2394 = vadd.f32 %v1462, %v2393
        %v2395 = vpop.f32.mrf.mxu0
        %v2396 = vadd.f32 %v1464, %v2395
        %v2397 = vpop.f32.mrf.mxu0
        %v2398 = vadd.f32 %v1466, %v2397
        %2399 = vmatprep.mubr.bf16.mxu0 %v277
        %2400 = vmatmul.mubr.bf16.gmra.mxu0 %v276
        %v2401 = vpop.f32.mrf.mxu0
        %v2402 = vadd.f32 %v1470, %v2401
        %v2403 = vpop.f32.mrf.mxu0
        %v2404 = vadd.f32 %v1472, %v2403
        %v2405 = vpop.f32.mrf.mxu0
        %v2406 = vadd.f32 %v1474, %v2405
        %v2407 = vpop.f32.mrf.mxu0
        %v2408 = vadd.f32 %v1476, %v2407
        %2409 = vmatprep.mubr.bf16.mxu0 %v279
        %2410 = vmatmul.mubr.bf16.gmra.mxu0 %v278
        %v2411 = vpop.f32.mrf.mxu0
        %v2412 = vadd.f32 %v1480, %v2411
        %v2413 = vpop.f32.mrf.mxu0
        %v2414 = vadd.f32 %v1482, %v2413
        %v2415 = vpop.f32.mrf.mxu0
        %v2416 = vadd.f32 %v1484, %v2415
        %v2417 = vpop.f32.mrf.mxu0
        %v2418 = vadd.f32 %v1486, %v2417
        %2419 = vmatprep.mubr.bf16.mxu0 %v281
        %2420 = vmatmul.mubr.bf16.gmra.mxu0 %v280
        %v2421 = vpop.f32.mrf.mxu0
        %v2422 = vadd.f32 %v1490, %v2421
        %v2423 = vpop.f32.mrf.mxu0
        %v2424 = vadd.f32 %v1492, %v2423
        %v2425 = vpop.f32.mrf.mxu0
        %v2426 = vadd.f32 %v1494, %v2425
        %v2427 = vpop.f32.mrf.mxu0
        %v2428 = vadd.f32 %v1496, %v2427
        %2429 = vdwg.mxu0
        %2430 = vmatprep.subr.bf16.mxu0 %v2018
        %2431 = vmatpush1.bf16.msra.mxu0 %v2017
        %2432 = vmatprep.subr.bf16.mxu0 %v2010
        %2433 = vmatpush1.bf16.msra.mxu0 %v2009
        %2434 = vmatprep.subr.bf16.mxu0 %v2002
        %2435 = vmatpush1.bf16.msra.mxu0 %v2001
        %2436 = vmatprep.subr.bf16.mxu0 %v1994
        %2437 = vmatpush1.bf16.msra.mxu0 %v1993
        %2438 = vmatprep.subr.bf16.mxu0 %v1986
        %2439 = vmatpush1.bf16.msra.mxu0 %v1985
        %2440 = vmatprep.subr.bf16.mxu0 %v1978
        %2441 = vmatpush1.bf16.msra.mxu0 %v1977
        %2442 = vmatprep.subr.bf16.mxu0 %v1970
        %2443 = vmatpush1.bf16.msra.mxu0 %v1969
        %2444 = vmatprep.subr.bf16.mxu0 %v1962
        %2445 = vmatpush1.bf16.msra.mxu0 %v1961
        %2446 = vmatprep.subr.bf16.mxu0 %v2082
        %2447 = vmatpush2.bf16.msra.mxu0 %v2081
        %2448 = vmatprep.subr.bf16.mxu0 %v2074
        %2449 = vmatpush2.bf16.msra.mxu0 %v2073
        %2450 = vmatprep.subr.bf16.mxu0 %v2066
        %2451 = vmatpush2.bf16.msra.mxu0 %v2065
        %2452 = vmatprep.subr.bf16.mxu0 %v2058
        %2453 = vmatpush2.bf16.msra.mxu0 %v2057
        %2454 = vmatprep.subr.bf16.mxu0 %v2050
        %2455 = vmatpush2.bf16.msra.mxu0 %v2049
        %2456 = vmatprep.subr.bf16.mxu0 %v2042
        %2457 = vmatpush2.bf16.msra.mxu0 %v2041
        %2458 = vmatprep.subr.bf16.mxu0 %v2034
        %2459 = vmatpush2.bf16.msra.mxu0 %v2033
        %2460 = vmatprep.subr.bf16.mxu0 %v2026
        %2461 = vmatpush2.bf16.msra.mxu0 %v2025
        %2462 = vmatprep.mubr.bf16.mxu0 %v275
        %2463 = vmatmul.mubr.bf16.gmra.mxu0 %v274
        %v2464 = vpop.f32.mrf.mxu0
        %v2465 = vadd.f32 %v1533, %v2464
        %v2466 = vpop.f32.mrf.mxu0
        %v2467 = vadd.f32 %v1535, %v2466
        %v2468 = vpop.f32.mrf.mxu0
        %v2469 = vadd.f32 %v1537, %v2468
        %v2470 = vpop.f32.mrf.mxu0
        %v2471 = vadd.f32 %v1539, %v2470
        %2472 = vmatprep.mubr.bf16.mxu0 %v277
        %2473 = vmatmul.mubr.bf16.gmra.mxu0 %v276
        %v2474 = vpop.f32.mrf.mxu0
        %v2475 = vadd.f32 %v1543, %v2474
        %v2476 = vpop.f32.mrf.mxu0
        %v2477 = vadd.f32 %v1545, %v2476
        %v2478 = vpop.f32.mrf.mxu0
        %v2479 = vadd.f32 %v1547, %v2478
        %v2480 = vpop.f32.mrf.mxu0
        %v2481 = vadd.f32 %v1549, %v2480
        %2482 = vmatprep.mubr.bf16.mxu0 %v279
        %2483 = vmatmul.mubr.bf16.gmra.mxu0 %v278
        %v2484 = vpop.f32.mrf.mxu0
        %v2485 = vadd.f32 %v1553, %v2484
        %v2486 = vpop.f32.mrf.mxu0
        %v2487 = vadd.f32 %v1555, %v2486
        %v2488 = vpop.f32.mrf.mxu0
        %v2489 = vadd.f32 %v1557, %v2488
        %v2490 = vpop.f32.mrf.mxu0
        %v2491 = vadd.f32 %v1559, %v2490
        %2492 = vmatprep.mubr.bf16.mxu0 %v281
        %2493 = vmatmul.mubr.bf16.gmra.mxu0 %v280
        %v2494 = vpop.f32.mrf.mxu0
        %v2495 = vadd.f32 %v1563, %v2494
        %v2496 = vpop.f32.mrf.mxu0
        %v2497 = vadd.f32 %v1565, %v2496
        %v2498 = vpop.f32.mrf.mxu0
        %v2499 = vadd.f32 %v1567, %v2498
        %v2500 = vpop.f32.mrf.mxu0
        %v2501 = vadd.f32 %v1569, %v2500
        %2502 = vdwg.mxu0
        %v2503 = vld [vmem:[%s225] sm:$0xfc]
        %v2504 = vld [vmem:[%s225 + $0x8] sm:$0xfc]
        %v2505 = vld [vmem:[%s225 + $0x40] sm:$0x3]
        %v2506 = vld [vmem:[%s225 + $0x48] sm:$0x3]
        %v2507 = vld [vmem:[%s225 + $0x50] sm:$0xfc]
        %v2508 = vld [vmem:[%s225 + $0x58] sm:$0xfc]
        %v2509 = vld [vmem:[%s225 + $0x90] sm:$0x3]
        %v2510 = vld [vmem:[%s225 + $0x98] sm:$0x3]
        %vm2519 = vcmask 1045504
        %v2520 = vrot.slane %v2503, 2
        %v2521 = vrot.slane %v412, 2
        %v2522 = vsel %vm2519, %v2520, %v2521
        %v2523 = vrot.slane %v2504, 2
        %v2524 = vrot.slane %v413, 2
        %v2525 = vsel %vm2519, %v2523, %v2524
        %v2526 = vrot.slane %v414, 2
        %v2527 = vsel %vm2519, %v2521, %v2526
        %v2528 = vrot.slane %v415, 2
        %v2529 = vsel %vm2519, %v2524, %v2528
        %v2530 = vrot.slane %v416, 2
        %v2531 = vsel %vm2519, %v2526, %v2530
        %v2532 = vrot.slane %v417, 2
        %v2533 = vsel %vm2519, %v2528, %v2532
        %v2534 = vrot.slane %v2505, 2
        %v2535 = vsel %vm2519, %v2530, %v2534
        %v2536 = vrot.slane %v2506, 2
        %v2537 = vsel %vm2519, %v2532, %v2536
        %v2538 = vrot.slane %v2507, 2
        %v2539 = vrot.slane %v422, 2
        %v2540 = vsel %vm2519, %v2538, %v2539
        %v2541 = vrot.slane %v2508, 2
        %v2542 = vrot.slane %v423, 2
        %v2543 = vsel %vm2519, %v2541, %v2542
        %v2544 = vrot.slane %v424, 2
        %v2545 = vsel %vm2519, %v2539, %v2544
        %v2546 = vrot.slane %v425, 2
        %v2547 = vsel %vm2519, %v2542, %v2546
        %v2548 = vrot.slane %v426, 2
        %v2549 = vsel %vm2519, %v2544, %v2548
        %v2550 = vrot.slane %v427, 2
        %v2551 = vsel %vm2519, %v2546, %v2550
        %v2552 = vrot.slane %v2509, 2
        %v2553 = vsel %vm2519, %v2548, %v2552
        %v2554 = vrot.slane %v2510, 2
        %v2555 = vsel %vm2519, %v2550, %v2554
        %v2572 = vpack.c.bf16 %v2527, %v2522
        %v2573 = vpack.c.bf16 %v2529, %v2525
        %v2574 = vpack.c.bf16 %v2535, %v2531
        %v2575 = vpack.c.bf16 %v2537, %v2533
        %v2576 = vpack.c.bf16 %v2545, %v2540
        %v2577 = vpack.c.bf16 %v2547, %v2543
        %v2578 = vpack.c.bf16 %v2553, %v2549
        %v2579 = vpack.c.bf16 %v2555, %v2551
        %v2580 = vld [vmem:[#allocation3 + $0x800] sm:$0xff]
        %v2581 = vld [vmem:[#allocation3 + $0x808] sm:$0xff]
        %v2582 = vld [vmem:[#allocation3 + $0x810] sm:$0xff]
        %v2583 = vld [vmem:[#allocation3 + $0x818] sm:$0xff]
        %v2584 = vld [vmem:[#allocation3 + $0x820] sm:$0xff]
        %v2585 = vld [vmem:[#allocation3 + $0x828] sm:$0xff]
        %v2586 = vld [vmem:[#allocation3 + $0x830] sm:$0xff]
        %v2587 = vld [vmem:[#allocation3 + $0x838] sm:$0xff]
        %v2588 = vld [vmem:[#allocation3 + $0x840] sm:$0xff]
        %v2589 = vld [vmem:[#allocation3 + $0x848] sm:$0xff]
        %v2590 = vld [vmem:[#allocation3 + $0x850] sm:$0xff]
        %v2591 = vld [vmem:[#allocation3 + $0x858] sm:$0xff]
        %v2592 = vld [vmem:[#allocation3 + $0x860] sm:$0xff]
        %v2593 = vld [vmem:[#allocation3 + $0x868] sm:$0xff]
        %v2594 = vld [vmem:[#allocation3 + $0x870] sm:$0xff]
        %v2595 = vld [vmem:[#allocation3 + $0x878] sm:$0xff]
        %v2596 = vld [vmem:[#allocation3 + $0x880] sm:$0xff]
        %v2597 = vld [vmem:[#allocation3 + $0x888] sm:$0xff]
        %v2598 = vld [vmem:[#allocation3 + $0x890] sm:$0xff]
        %v2599 = vld [vmem:[#allocation3 + $0x898] sm:$0xff]
        %v2600 = vld [vmem:[#allocation3 + $0x8a0] sm:$0xff]
        %v2601 = vld [vmem:[#allocation3 + $0x8a8] sm:$0xff]
        %v2602 = vld [vmem:[#allocation3 + $0x8b0] sm:$0xff]
        %v2603 = vld [vmem:[#allocation3 + $0x8b8] sm:$0xff]
        %v2604 = vld [vmem:[#allocation3 + $0x8c0] sm:$0xff]
        %v2605 = vld [vmem:[#allocation3 + $0x8c8] sm:$0xff]
        %v2606 = vld [vmem:[#allocation3 + $0x8d0] sm:$0xff]
        %v2607 = vld [vmem:[#allocation3 + $0x8d8] sm:$0xff]
        %v2608 = vld [vmem:[#allocation3 + $0x8e0] sm:$0xff]
        %v2609 = vld [vmem:[#allocation3 + $0x8e8] sm:$0xff]
        %v2610 = vld [vmem:[#allocation3 + $0x8f0] sm:$0xff]
        %v2611 = vld [vmem:[#allocation3 + $0x8f8] sm:$0xff]
        %v2612 = vld [vmem:[#allocation3 + $0x900] sm:$0xff]
        %v2613 = vld [vmem:[#allocation3 + $0x908] sm:$0xff]
        %v2614 = vld [vmem:[#allocation3 + $0x910] sm:$0xff]
        %v2615 = vld [vmem:[#allocation3 + $0x918] sm:$0xff]
        %v2616 = vld [vmem:[#allocation3 + $0x920] sm:$0xff]
        %v2617 = vld [vmem:[#allocation3 + $0x928] sm:$0xff]
        %v2618 = vld [vmem:[#allocation3 + $0x930] sm:$0xff]
        %v2619 = vld [vmem:[#allocation3 + $0x938] sm:$0xff]
        %v2620 = vld [vmem:[#allocation3 + $0x940] sm:$0xff]
        %v2621 = vld [vmem:[#allocation3 + $0x948] sm:$0xff]
        %v2622 = vld [vmem:[#allocation3 + $0x950] sm:$0xff]
        %v2623 = vld [vmem:[#allocation3 + $0x958] sm:$0xff]
        %v2624 = vld [vmem:[#allocation3 + $0x960] sm:$0xff]
        %v2625 = vld [vmem:[#allocation3 + $0x968] sm:$0xff]
        %v2626 = vld [vmem:[#allocation3 + $0x970] sm:$0xff]
        %v2627 = vld [vmem:[#allocation3 + $0x978] sm:$0xff]
        %v2628 = vld [vmem:[#allocation3 + $0x980] sm:$0xff]
        %v2629 = vld [vmem:[#allocation3 + $0x988] sm:$0xff]
        %v2630 = vld [vmem:[#allocation3 + $0x990] sm:$0xff]
        %v2631 = vld [vmem:[#allocation3 + $0x998] sm:$0xff]
        %v2632 = vld [vmem:[#allocation3 + $0x9a0] sm:$0xff]
        %v2633 = vld [vmem:[#allocation3 + $0x9a8] sm:$0xff]
        %v2634 = vld [vmem:[#allocation3 + $0x9b0] sm:$0xff]
        %v2635 = vld [vmem:[#allocation3 + $0x9b8] sm:$0xff]
        %v2636 = vld [vmem:[#allocation3 + $0x9c0] sm:$0xff]
        %v2637 = vld [vmem:[#allocation3 + $0x9c8] sm:$0xff]
        %v2638 = vld [vmem:[#allocation3 + $0x9d0] sm:$0xff]
        %v2639 = vld [vmem:[#allocation3 + $0x9d8] sm:$0xff]
        %v2640 = vld [vmem:[#allocation3 + $0x9e0] sm:$0xff]
        %v2641 = vld [vmem:[#allocation3 + $0x9e8] sm:$0xff]
        %v2642 = vld [vmem:[#allocation3 + $0x9f0] sm:$0xff]
        %v2643 = vld [vmem:[#allocation3 + $0x9f8] sm:$0xff]
        %v2644 = vld [vmem:[#allocation3 + $0xa00] sm:$0xff]
        %v2645 = vld [vmem:[#allocation3 + $0xa08] sm:$0xff]
        %v2646 = vld [vmem:[#allocation3 + $0xa10] sm:$0xff]
        %v2647 = vld [vmem:[#allocation3 + $0xa18] sm:$0xff]
        %v2648 = vld [vmem:[#allocation3 + $0xa20] sm:$0xff]
        %v2649 = vld [vmem:[#allocation3 + $0xa28] sm:$0xff]
        %v2650 = vld [vmem:[#allocation3 + $0xa30] sm:$0xff]
        %v2651 = vld [vmem:[#allocation3 + $0xa38] sm:$0xff]
        %v2652 = vld [vmem:[#allocation3 + $0xa40] sm:$0xff]
        %v2653 = vld [vmem:[#allocation3 + $0xa48] sm:$0xff]
        %v2654 = vld [vmem:[#allocation3 + $0xa50] sm:$0xff]
        %v2655 = vld [vmem:[#allocation3 + $0xa58] sm:$0xff]
        %v2656 = vld [vmem:[#allocation3 + $0xa60] sm:$0xff]
        %v2657 = vld [vmem:[#allocation3 + $0xa68] sm:$0xff]
        %v2658 = vld [vmem:[#allocation3 + $0xa70] sm:$0xff]
        %v2659 = vld [vmem:[#allocation3 + $0xa78] sm:$0xff]
        %v2660 = vld [vmem:[#allocation3 + $0xa80] sm:$0xff]
        %v2661 = vld [vmem:[#allocation3 + $0xa88] sm:$0xff]
        %v2662 = vld [vmem:[#allocation3 + $0xa90] sm:$0xff]
        %v2663 = vld [vmem:[#allocation3 + $0xa98] sm:$0xff]
        %v2664 = vld [vmem:[#allocation3 + $0xaa0] sm:$0xff]
        %v2665 = vld [vmem:[#allocation3 + $0xaa8] sm:$0xff]
        %v2666 = vld [vmem:[#allocation3 + $0xab0] sm:$0xff]
        %v2667 = vld [vmem:[#allocation3 + $0xab8] sm:$0xff]
        %v2668 = vld [vmem:[#allocation3 + $0xac0] sm:$0xff]
        %v2669 = vld [vmem:[#allocation3 + $0xac8] sm:$0xff]
        %v2670 = vld [vmem:[#allocation3 + $0xad0] sm:$0xff]
        %v2671 = vld [vmem:[#allocation3 + $0xad8] sm:$0xff]
        %v2672 = vld [vmem:[#allocation3 + $0xae0] sm:$0xff]
        %v2673 = vld [vmem:[#allocation3 + $0xae8] sm:$0xff]
        %v2674 = vld [vmem:[#allocation3 + $0xaf0] sm:$0xff]
        %v2675 = vld [vmem:[#allocation3 + $0xaf8] sm:$0xff]
        %v2676 = vld [vmem:[#allocation3 + $0xb00] sm:$0xff]
        %v2677 = vld [vmem:[#allocation3 + $0xb08] sm:$0xff]
        %v2678 = vld [vmem:[#allocation3 + $0xb10] sm:$0xff]
        %v2679 = vld [vmem:[#allocation3 + $0xb18] sm:$0xff]
        %v2680 = vld [vmem:[#allocation3 + $0xb20] sm:$0xff]
        %v2681 = vld [vmem:[#allocation3 + $0xb28] sm:$0xff]
        %v2682 = vld [vmem:[#allocation3 + $0xb30] sm:$0xff]
        %v2683 = vld [vmem:[#allocation3 + $0xb38] sm:$0xff]
        %v2684 = vld [vmem:[#allocation3 + $0xb40] sm:$0xff]
        %v2685 = vld [vmem:[#allocation3 + $0xb48] sm:$0xff]
        %v2686 = vld [vmem:[#allocation3 + $0xb50] sm:$0xff]
        %v2687 = vld [vmem:[#allocation3 + $0xb58] sm:$0xff]
        %v2688 = vld [vmem:[#allocation3 + $0xb60] sm:$0xff]
        %v2689 = vld [vmem:[#allocation3 + $0xb68] sm:$0xff]
        %v2690 = vld [vmem:[#allocation3 + $0xb70] sm:$0xff]
        %v2691 = vld [vmem:[#allocation3 + $0xb78] sm:$0xff]
        %v2692 = vld [vmem:[#allocation3 + $0xb80] sm:$0xff]
        %v2693 = vld [vmem:[#allocation3 + $0xb88] sm:$0xff]
        %v2694 = vld [vmem:[#allocation3 + $0xb90] sm:$0xff]
        %v2695 = vld [vmem:[#allocation3 + $0xb98] sm:$0xff]
        %v2696 = vld [vmem:[#allocation3 + $0xba0] sm:$0xff]
        %v2697 = vld [vmem:[#allocation3 + $0xba8] sm:$0xff]
        %v2698 = vld [vmem:[#allocation3 + $0xbb0] sm:$0xff]
        %v2699 = vld [vmem:[#allocation3 + $0xbb8] sm:$0xff]
        %v2700 = vld [vmem:[#allocation3 + $0xbc0] sm:$0xff]
        %v2701 = vld [vmem:[#allocation3 + $0xbc8] sm:$0xff]
        %v2702 = vld [vmem:[#allocation3 + $0xbd0] sm:$0xff]
        %v2703 = vld [vmem:[#allocation3 + $0xbd8] sm:$0xff]
        %v2704 = vld [vmem:[#allocation3 + $0xbe0] sm:$0xff]
        %v2705 = vld [vmem:[#allocation3 + $0xbe8] sm:$0xff]
        %v2706 = vld [vmem:[#allocation3 + $0xbf0] sm:$0xff]
        %v2707 = vld [vmem:[#allocation3 + $0xbf8] sm:$0xff]
        %v2836 = vunpack.c.l.b16 %v2580
        %v2837 = vunpack.c.h.b16 %v2580
        %v2838 = vunpack.c.l.b16 %v2581
        %v2839 = vunpack.c.h.b16 %v2581
        %v2840 = vunpack.c.l.b16 %v2582
        %v2841 = vunpack.c.h.b16 %v2582
        %v2842 = vunpack.c.l.b16 %v2583
        %v2843 = vunpack.c.h.b16 %v2583
        %v2844 = vunpack.c.l.b16 %v2584
        %v2845 = vunpack.c.h.b16 %v2584
        %v2846 = vunpack.c.l.b16 %v2585
        %v2847 = vunpack.c.h.b16 %v2585
        %v2848 = vunpack.c.l.b16 %v2586
        %v2849 = vunpack.c.h.b16 %v2586
        %v2850 = vunpack.c.l.b16 %v2587
        %v2851 = vunpack.c.h.b16 %v2587
        %v2852 = vunpack.c.l.b16 %v2588
        %v2853 = vunpack.c.h.b16 %v2588
        %v2854 = vunpack.c.l.b16 %v2589
        %v2855 = vunpack.c.h.b16 %v2589
        %v2856 = vunpack.c.l.b16 %v2590
        %v2857 = vunpack.c.h.b16 %v2590
        %v2858 = vunpack.c.l.b16 %v2591
        %v2859 = vunpack.c.h.b16 %v2591
        %v2860 = vunpack.c.l.b16 %v2592
        %v2861 = vunpack.c.h.b16 %v2592
        %v2862 = vunpack.c.l.b16 %v2593
        %v2863 = vunpack.c.h.b16 %v2593
        %v2864 = vunpack.c.l.b16 %v2594
        %v2865 = vunpack.c.h.b16 %v2594
        %v2866 = vunpack.c.l.b16 %v2595
        %v2867 = vunpack.c.h.b16 %v2595
        %v2868 = vunpack.c.l.b16 %v2596
        %v2869 = vunpack.c.h.b16 %v2596
        %v2870 = vunpack.c.l.b16 %v2597
        %v2871 = vunpack.c.h.b16 %v2597
        %v2872 = vunpack.c.l.b16 %v2598
        %v2873 = vunpack.c.h.b16 %v2598
        %v2874 = vunpack.c.l.b16 %v2599
        %v2875 = vunpack.c.h.b16 %v2599
        %v2876 = vunpack.c.l.b16 %v2600
        %v2877 = vunpack.c.h.b16 %v2600
        %v2878 = vunpack.c.l.b16 %v2601
        %v2879 = vunpack.c.h.b16 %v2601
        %v2880 = vunpack.c.l.b16 %v2602
        %v2881 = vunpack.c.h.b16 %v2602
        %v2882 = vunpack.c.l.b16 %v2603
        %v2883 = vunpack.c.h.b16 %v2603
        %v2884 = vunpack.c.l.b16 %v2604
        %v2885 = vunpack.c.h.b16 %v2604
        %v2886 = vunpack.c.l.b16 %v2605
        %v2887 = vunpack.c.h.b16 %v2605
        %v2888 = vunpack.c.l.b16 %v2606
        %v2889 = vunpack.c.h.b16 %v2606
        %v2890 = vunpack.c.l.b16 %v2607
        %v2891 = vunpack.c.h.b16 %v2607
        %v2892 = vunpack.c.l.b16 %v2608
        %v2893 = vunpack.c.h.b16 %v2608
        %v2894 = vunpack.c.l.b16 %v2609
        %v2895 = vunpack.c.h.b16 %v2609
        %v2896 = vunpack.c.l.b16 %v2610
        %v2897 = vunpack.c.h.b16 %v2610
        %v2898 = vunpack.c.l.b16 %v2611
        %v2899 = vunpack.c.h.b16 %v2611
        %v2900 = vunpack.c.l.b16 %v2612
        %v2901 = vunpack.c.h.b16 %v2612
        %v2902 = vunpack.c.l.b16 %v2613
        %v2903 = vunpack.c.h.b16 %v2613
        %v2904 = vunpack.c.l.b16 %v2614
        %v2905 = vunpack.c.h.b16 %v2614
        %v2906 = vunpack.c.l.b16 %v2615
        %v2907 = vunpack.c.h.b16 %v2615
        %v2908 = vunpack.c.l.b16 %v2616
        %v2909 = vunpack.c.h.b16 %v2616
        %v2910 = vunpack.c.l.b16 %v2617
        %v2911 = vunpack.c.h.b16 %v2617
        %v2912 = vunpack.c.l.b16 %v2618
        %v2913 = vunpack.c.h.b16 %v2618
        %v2914 = vunpack.c.l.b16 %v2619
        %v2915 = vunpack.c.h.b16 %v2619
        %v2916 = vunpack.c.l.b16 %v2620
        %v2917 = vunpack.c.h.b16 %v2620
        %v2918 = vunpack.c.l.b16 %v2621
        %v2919 = vunpack.c.h.b16 %v2621
        %v2920 = vunpack.c.l.b16 %v2622
        %v2921 = vunpack.c.h.b16 %v2622
        %v2922 = vunpack.c.l.b16 %v2623
        %v2923 = vunpack.c.h.b16 %v2623
        %v2924 = vunpack.c.l.b16 %v2624
        %v2925 = vunpack.c.h.b16 %v2624
        %v2926 = vunpack.c.l.b16 %v2625
        %v2927 = vunpack.c.h.b16 %v2625
        %v2928 = vunpack.c.l.b16 %v2626
        %v2929 = vunpack.c.h.b16 %v2626
        %v2930 = vunpack.c.l.b16 %v2627
        %v2931 = vunpack.c.h.b16 %v2627
        %v2932 = vunpack.c.l.b16 %v2628
        %v2933 = vunpack.c.h.b16 %v2628
        %v2934 = vunpack.c.l.b16 %v2629
        %v2935 = vunpack.c.h.b16 %v2629
        %v2936 = vunpack.c.l.b16 %v2630
        %v2937 = vunpack.c.h.b16 %v2630
        %v2938 = vunpack.c.l.b16 %v2631
        %v2939 = vunpack.c.h.b16 %v2631
        %v2940 = vunpack.c.l.b16 %v2632
        %v2941 = vunpack.c.h.b16 %v2632
        %v2942 = vunpack.c.l.b16 %v2633
        %v2943 = vunpack.c.h.b16 %v2633
        %v2944 = vunpack.c.l.b16 %v2634
        %v2945 = vunpack.c.h.b16 %v2634
        %v2946 = vunpack.c.l.b16 %v2635
        %v2947 = vunpack.c.h.b16 %v2635
        %v2948 = vunpack.c.l.b16 %v2636
        %v2949 = vunpack.c.h.b16 %v2636
        %v2950 = vunpack.c.l.b16 %v2637
        %v2951 = vunpack.c.h.b16 %v2637
        %v2952 = vunpack.c.l.b16 %v2638
        %v2953 = vunpack.c.h.b16 %v2638
        %v2954 = vunpack.c.l.b16 %v2639
        %v2955 = vunpack.c.h.b16 %v2639
        %v2956 = vunpack.c.l.b16 %v2640
        %v2957 = vunpack.c.h.b16 %v2640
        %v2958 = vunpack.c.l.b16 %v2641
        %v2959 = vunpack.c.h.b16 %v2641
        %v2960 = vunpack.c.l.b16 %v2642
        %v2961 = vunpack.c.h.b16 %v2642
        %v2962 = vunpack.c.l.b16 %v2643
        %v2963 = vunpack.c.h.b16 %v2643
        %v2964 = vunpack.c.l.b16 %v2644
        %v2965 = vunpack.c.h.b16 %v2644
        %v2966 = vunpack.c.l.b16 %v2645
        %v2967 = vunpack.c.h.b16 %v2645
        %v2968 = vunpack.c.l.b16 %v2646
        %v2969 = vunpack.c.h.b16 %v2646
        %v2970 = vunpack.c.l.b16 %v2647
        %v2971 = vunpack.c.h.b16 %v2647
        %v2972 = vunpack.c.l.b16 %v2648
        %v2973 = vunpack.c.h.b16 %v2648
        %v2974 = vunpack.c.l.b16 %v2649
        %v2975 = vunpack.c.h.b16 %v2649
        %v2976 = vunpack.c.l.b16 %v2650
        %v2977 = vunpack.c.h.b16 %v2650
        %v2978 = vunpack.c.l.b16 %v2651
        %v2979 = vunpack.c.h.b16 %v2651
        %v2980 = vunpack.c.l.b16 %v2652
        %v2981 = vunpack.c.h.b16 %v2652
        %v2982 = vunpack.c.l.b16 %v2653
        %v2983 = vunpack.c.h.b16 %v2653
        %v2984 = vunpack.c.l.b16 %v2654
        %v2985 = vunpack.c.h.b16 %v2654
        %v2986 = vunpack.c.l.b16 %v2655
        %v2987 = vunpack.c.h.b16 %v2655
        %v2988 = vunpack.c.l.b16 %v2656
        %v2989 = vunpack.c.h.b16 %v2656
        %v2990 = vunpack.c.l.b16 %v2657
        %v2991 = vunpack.c.h.b16 %v2657
        %v2992 = vunpack.c.l.b16 %v2658
        %v2993 = vunpack.c.h.b16 %v2658
        %v2994 = vunpack.c.l.b16 %v2659
        %v2995 = vunpack.c.h.b16 %v2659
        %v2996 = vunpack.c.l.b16 %v2660
        %v2997 = vunpack.c.h.b16 %v2660
        %v2998 = vunpack.c.l.b16 %v2661
        %v2999 = vunpack.c.h.b16 %v2661
        %v3000 = vunpack.c.l.b16 %v2662
        %v3001 = vunpack.c.h.b16 %v2662
        %v3002 = vunpack.c.l.b16 %v2663
        %v3003 = vunpack.c.h.b16 %v2663
        %v3004 = vunpack.c.l.b16 %v2664
        %v3005 = vunpack.c.h.b16 %v2664
        %v3006 = vunpack.c.l.b16 %v2665
        %v3007 = vunpack.c.h.b16 %v2665
        %v3008 = vunpack.c.l.b16 %v2666
        %v3009 = vunpack.c.h.b16 %v2666
        %v3010 = vunpack.c.l.b16 %v2667
        %v3011 = vunpack.c.h.b16 %v2667
        %v3012 = vunpack.c.l.b16 %v2668
        %v3013 = vunpack.c.h.b16 %v2668
        %v3014 = vunpack.c.l.b16 %v2669
        %v3015 = vunpack.c.h.b16 %v2669
        %v3016 = vunpack.c.l.b16 %v2670
        %v3017 = vunpack.c.h.b16 %v2670
        %v3018 = vunpack.c.l.b16 %v2671
        %v3019 = vunpack.c.h.b16 %v2671
        %v3020 = vunpack.c.l.b16 %v2672
        %v3021 = vunpack.c.h.b16 %v2672
        %v3022 = vunpack.c.l.b16 %v2673
        %v3023 = vunpack.c.h.b16 %v2673
        %v3024 = vunpack.c.l.b16 %v2674
        %v3025 = vunpack.c.h.b16 %v2674
        %v3026 = vunpack.c.l.b16 %v2675
        %v3027 = vunpack.c.h.b16 %v2675
        %v3028 = vunpack.c.l.b16 %v2676
        %v3029 = vunpack.c.h.b16 %v2676
        %v3030 = vunpack.c.l.b16 %v2677
        %v3031 = vunpack.c.h.b16 %v2677
        %v3032 = vunpack.c.l.b16 %v2678
        %v3033 = vunpack.c.h.b16 %v2678
        %v3034 = vunpack.c.l.b16 %v2679
        %v3035 = vunpack.c.h.b16 %v2679
        %v3036 = vunpack.c.l.b16 %v2680
        %v3037 = vunpack.c.h.b16 %v2680
        %v3038 = vunpack.c.l.b16 %v2681
        %v3039 = vunpack.c.h.b16 %v2681
        %v3040 = vunpack.c.l.b16 %v2682
        %v3041 = vunpack.c.h.b16 %v2682
        %v3042 = vunpack.c.l.b16 %v2683
        %v3043 = vunpack.c.h.b16 %v2683
        %v3044 = vunpack.c.l.b16 %v2684
        %v3045 = vunpack.c.h.b16 %v2684
        %v3046 = vunpack.c.l.b16 %v2685
        %v3047 = vunpack.c.h.b16 %v2685
        %v3048 = vunpack.c.l.b16 %v2686
        %v3049 = vunpack.c.h.b16 %v2686
        %v3050 = vunpack.c.l.b16 %v2687
        %v3051 = vunpack.c.h.b16 %v2687
        %v3052 = vunpack.c.l.b16 %v2688
        %v3053 = vunpack.c.h.b16 %v2688
        %v3054 = vunpack.c.l.b16 %v2689
        %v3055 = vunpack.c.h.b16 %v2689
        %v3056 = vunpack.c.l.b16 %v2690
        %v3057 = vunpack.c.h.b16 %v2690
        %v3058 = vunpack.c.l.b16 %v2691
        %v3059 = vunpack.c.h.b16 %v2691
        %v3060 = vunpack.c.l.b16 %v2692
        %v3061 = vunpack.c.h.b16 %v2692
        %v3062 = vunpack.c.l.b16 %v2693
        %v3063 = vunpack.c.h.b16 %v2693
        %v3064 = vunpack.c.l.b16 %v2694
        %v3065 = vunpack.c.h.b16 %v2694
        %v3066 = vunpack.c.l.b16 %v2695
        %v3067 = vunpack.c.h.b16 %v2695
        %v3068 = vunpack.c.l.b16 %v2696
        %v3069 = vunpack.c.h.b16 %v2696
        %v3070 = vunpack.c.l.b16 %v2697
        %v3071 = vunpack.c.h.b16 %v2697
        %v3072 = vunpack.c.l.b16 %v2698
        %v3073 = vunpack.c.h.b16 %v2698
        %v3074 = vunpack.c.l.b16 %v2699
        %v3075 = vunpack.c.h.b16 %v2699
        %v3076 = vunpack.c.l.b16 %v2700
        %v3077 = vunpack.c.h.b16 %v2700
        %v3078 = vunpack.c.l.b16 %v2701
        %v3079 = vunpack.c.h.b16 %v2701
        %v3080 = vunpack.c.l.b16 %v2702
        %v3081 = vunpack.c.h.b16 %v2702
        %v3082 = vunpack.c.l.b16 %v2703
        %v3083 = vunpack.c.h.b16 %v2703
        %v3084 = vunpack.c.l.b16 %v2704
        %v3085 = vunpack.c.h.b16 %v2704
        %v3086 = vunpack.c.l.b16 %v2705
        %v3087 = vunpack.c.h.b16 %v2705
        %v3088 = vunpack.c.l.b16 %v2706
        %v3089 = vunpack.c.h.b16 %v2706
        %v3090 = vunpack.c.l.b16 %v2707
        %v3091 = vunpack.c.h.b16 %v2707
        %v3092 = vpack.c.b16 %v2844, %v2836
        %v3093 = vpack.c.b16 %v2845, %v2837
        %v3094 = vpack.c.b16 %v2846, %v2838
        %v3095 = vpack.c.b16 %v2847, %v2839
        %v3096 = vpack.c.b16 %v2848, %v2840
        %v3097 = vpack.c.b16 %v2849, %v2841
        %v3098 = vpack.c.b16 %v2850, %v2842
        %v3099 = vpack.c.b16 %v2851, %v2843
        %v3100 = vpack.c.b16 %v2860, %v2852
        %v3101 = vpack.c.b16 %v2861, %v2853
        %v3102 = vpack.c.b16 %v2862, %v2854
        %v3103 = vpack.c.b16 %v2863, %v2855
        %v3104 = vpack.c.b16 %v2864, %v2856
        %v3105 = vpack.c.b16 %v2865, %v2857
        %v3106 = vpack.c.b16 %v2866, %v2858
        %v3107 = vpack.c.b16 %v2867, %v2859
        %v3108 = vpack.c.b16 %v2876, %v2868
        %v3109 = vpack.c.b16 %v2877, %v2869
        %v3110 = vpack.c.b16 %v2878, %v2870
        %v3111 = vpack.c.b16 %v2879, %v2871
        %v3112 = vpack.c.b16 %v2880, %v2872
        %v3113 = vpack.c.b16 %v2881, %v2873
        %v3114 = vpack.c.b16 %v2882, %v2874
        %v3115 = vpack.c.b16 %v2883, %v2875
        %v3116 = vpack.c.b16 %v2892, %v2884
        %v3117 = vpack.c.b16 %v2893, %v2885
        %v3118 = vpack.c.b16 %v2894, %v2886
        %v3119 = vpack.c.b16 %v2895, %v2887
        %v3120 = vpack.c.b16 %v2896, %v2888
        %v3121 = vpack.c.b16 %v2897, %v2889
        %v3122 = vpack.c.b16 %v2898, %v2890
        %v3123 = vpack.c.b16 %v2899, %v2891
        %v3124 = vpack.c.b16 %v2908, %v2900
        %v3125 = vpack.c.b16 %v2909, %v2901
        %v3126 = vpack.c.b16 %v2910, %v2902
        %v3127 = vpack.c.b16 %v2911, %v2903
        %v3128 = vpack.c.b16 %v2912, %v2904
        %v3129 = vpack.c.b16 %v2913, %v2905
        %v3130 = vpack.c.b16 %v2914, %v2906
        %v3131 = vpack.c.b16 %v2915, %v2907
        %v3132 = vpack.c.b16 %v2924, %v2916
        %v3133 = vpack.c.b16 %v2925, %v2917
        %v3134 = vpack.c.b16 %v2926, %v2918
        %v3135 = vpack.c.b16 %v2927, %v2919
        %v3136 = vpack.c.b16 %v2928, %v2920
        %v3137 = vpack.c.b16 %v2929, %v2921
        %v3138 = vpack.c.b16 %v2930, %v2922
        %v3139 = vpack.c.b16 %v2931, %v2923
        %v3140 = vpack.c.b16 %v2940, %v2932
        %v3141 = vpack.c.b16 %v2941, %v2933
        %v3142 = vpack.c.b16 %v2942, %v2934
        %v3143 = vpack.c.b16 %v2943, %v2935
        %v3144 = vpack.c.b16 %v2944, %v2936
        %v3145 = vpack.c.b16 %v2945, %v2937
        %v3146 = vpack.c.b16 %v2946, %v2938
        %v3147 = vpack.c.b16 %v2947, %v2939
        %v3148 = vpack.c.b16 %v2956, %v2948
        %v3149 = vpack.c.b16 %v2957, %v2949
        %v3150 = vpack.c.b16 %v2958, %v2950
        %v3151 = vpack.c.b16 %v2959, %v2951
        %v3152 = vpack.c.b16 %v2960, %v2952
        %v3153 = vpack.c.b16 %v2961, %v2953
        %v3154 = vpack.c.b16 %v2962, %v2954
        %v3155 = vpack.c.b16 %v2963, %v2955
        %v3156 = vpack.c.b16 %v2972, %v2964
        %v3157 = vpack.c.b16 %v2973, %v2965
        %v3158 = vpack.c.b16 %v2974, %v2966
        %v3159 = vpack.c.b16 %v2975, %v2967
        %v3160 = vpack.c.b16 %v2976, %v2968
        %v3161 = vpack.c.b16 %v2977, %v2969
        %v3162 = vpack.c.b16 %v2978, %v2970
        %v3163 = vpack.c.b16 %v2979, %v2971
        %v3164 = vpack.c.b16 %v2988, %v2980
        %v3165 = vpack.c.b16 %v2989, %v2981
        %v3166 = vpack.c.b16 %v2990, %v2982
        %v3167 = vpack.c.b16 %v2991, %v2983
        %v3168 = vpack.c.b16 %v2992, %v2984
        %v3169 = vpack.c.b16 %v2993, %v2985
        %v3170 = vpack.c.b16 %v2994, %v2986
        %v3171 = vpack.c.b16 %v2995, %v2987
        %v3172 = vpack.c.b16 %v3004, %v2996
        %v3173 = vpack.c.b16 %v3005, %v2997
        %v3174 = vpack.c.b16 %v3006, %v2998
        %v3175 = vpack.c.b16 %v3007, %v2999
        %v3176 = vpack.c.b16 %v3008, %v3000
        %v3177 = vpack.c.b16 %v3009, %v3001
        %v3178 = vpack.c.b16 %v3010, %v3002
        %v3179 = vpack.c.b16 %v3011, %v3003
        %v3180 = vpack.c.b16 %v3020, %v3012
        %v3181 = vpack.c.b16 %v3021, %v3013
        %v3182 = vpack.c.b16 %v3022, %v3014
        %v3183 = vpack.c.b16 %v3023, %v3015
        %v3184 = vpack.c.b16 %v3024, %v3016
        %v3185 = vpack.c.b16 %v3025, %v3017
        %v3186 = vpack.c.b16 %v3026, %v3018
        %v3187 = vpack.c.b16 %v3027, %v3019
        %v3188 = vpack.c.b16 %v3036, %v3028
        %v3189 = vpack.c.b16 %v3037, %v3029
        %v3190 = vpack.c.b16 %v3038, %v3030
        %v3191 = vpack.c.b16 %v3039, %v3031
        %v3192 = vpack.c.b16 %v3040, %v3032
        %v3193 = vpack.c.b16 %v3041, %v3033
        %v3194 = vpack.c.b16 %v3042, %v3034
        %v3195 = vpack.c.b16 %v3043, %v3035
        %v3196 = vpack.c.b16 %v3052, %v3044
        %v3197 = vpack.c.b16 %v3053, %v3045
        %v3198 = vpack.c.b16 %v3054, %v3046
        %v3199 = vpack.c.b16 %v3055, %v3047
        %v3200 = vpack.c.b16 %v3056, %v3048
        %v3201 = vpack.c.b16 %v3057, %v3049
        %v3202 = vpack.c.b16 %v3058, %v3050
        %v3203 = vpack.c.b16 %v3059, %v3051
        %v3204 = vpack.c.b16 %v3068, %v3060
        %v3205 = vpack.c.b16 %v3069, %v3061
        %v3206 = vpack.c.b16 %v3070, %v3062
        %v3207 = vpack.c.b16 %v3071, %v3063
        %v3208 = vpack.c.b16 %v3072, %v3064
        %v3209 = vpack.c.b16 %v3073, %v3065
        %v3210 = vpack.c.b16 %v3074, %v3066
        %v3211 = vpack.c.b16 %v3075, %v3067
        %v3212 = vpack.c.b16 %v3084, %v3076
        %v3213 = vpack.c.b16 %v3085, %v3077
        %v3214 = vpack.c.b16 %v3086, %v3078
        %v3215 = vpack.c.b16 %v3087, %v3079
        %v3216 = vpack.c.b16 %v3088, %v3080
        %v3217 = vpack.c.b16 %v3089, %v3081
        %v3218 = vpack.c.b16 %v3090, %v3082
        %v3219 = vpack.c.b16 %v3091, %v3083
        %3348 = vmatprep.subr.bf16.mxu0 %v3149
        %3349 = vmatpush1.bf16.msra.mxu0 %v3148
        %3350 = vmatprep.subr.bf16.mxu0 %v3141
        %3351 = vmatpush1.bf16.msra.mxu0 %v3140
        %3352 = vmatprep.subr.bf16.mxu0 %v3133
        %3353 = vmatpush1.bf16.msra.mxu0 %v3132
        %3354 = vmatprep.subr.bf16.mxu0 %v3125
        %3355 = vmatpush1.bf16.msra.mxu0 %v3124
        %3356 = vmatprep.subr.bf16.mxu0 %v3117
        %3357 = vmatpush1.bf16.msra.mxu0 %v3116
        %3358 = vmatprep.subr.bf16.mxu0 %v3109
        %3359 = vmatpush1.bf16.msra.mxu0 %v3108
        %3360 = vmatprep.subr.bf16.mxu0 %v3101
        %3361 = vmatpush1.bf16.msra.mxu0 %v3100
        %3362 = vmatprep.subr.bf16.mxu0 %v3093
        %3363 = vmatpush1.bf16.msra.mxu0 %v3092
        %3364 = vmatprep.subr.bf16.mxu0 %v3213
        %3365 = vmatpush2.bf16.msra.mxu0 %v3212
        %3366 = vmatprep.subr.bf16.mxu0 %v3205
        %3367 = vmatpush2.bf16.msra.mxu0 %v3204
        %3368 = vmatprep.subr.bf16.mxu0 %v3197
        %3369 = vmatpush2.bf16.msra.mxu0 %v3196
        %3370 = vmatprep.subr.bf16.mxu0 %v3189
        %3371 = vmatpush2.bf16.msra.mxu0 %v3188
        %3372 = vmatprep.subr.bf16.mxu0 %v3181
        %3373 = vmatpush2.bf16.msra.mxu0 %v3180
        %3374 = vmatprep.subr.bf16.mxu0 %v3173
        %3375 = vmatpush2.bf16.msra.mxu0 %v3172
        %3376 = vmatprep.subr.bf16.mxu0 %v3165
        %3377 = vmatpush2.bf16.msra.mxu0 %v3164
        %3378 = vmatprep.subr.bf16.mxu0 %v3157
        %3379 = vmatpush2.bf16.msra.mxu0 %v3156
        %3380 = vmatprep.mubr.bf16.mxu0 %v2573
        %3381 = vmatmul.mubr.bf16.gmra.mxu0 %v2572
        %v3382 = vpop.f32.mrf.mxu0
        %v3383 = vadd.f32 0.0, %v3382
        %v3384 = vpop.f32.mrf.mxu0
        %v3385 = vadd.f32 0.0, %v3384
        %v3386 = vpop.f32.mrf.mxu0
        %v3387 = vadd.f32 0.0, %v3386
        %v3388 = vpop.f32.mrf.mxu0
        %v3389 = vadd.f32 0.0, %v3388
        %3390 = vmatprep.mubr.bf16.mxu0 %v2575
        %3391 = vmatmul.mubr.bf16.gmra.mxu0 %v2574
        %v3392 = vpop.f32.mrf.mxu0
        %v3393 = vadd.f32 0.0, %v3392
        %v3394 = vpop.f32.mrf.mxu0
        %v3395 = vadd.f32 0.0, %v3394
        %v3396 = vpop.f32.mrf.mxu0
        %v3397 = vadd.f32 0.0, %v3396
        %v3398 = vpop.f32.mrf.mxu0
        %v3399 = vadd.f32 0.0, %v3398
        %3400 = vmatprep.mubr.bf16.mxu0 %v2577
        %3401 = vmatmul.mubr.bf16.gmra.mxu0 %v2576
        %v3402 = vpop.f32.mrf.mxu0
        %v3403 = vadd.f32 0.0, %v3402
        %v3404 = vpop.f32.mrf.mxu0
        %v3405 = vadd.f32 0.0, %v3404
        %v3406 = vpop.f32.mrf.mxu0
        %v3407 = vadd.f32 0.0, %v3406
        %v3408 = vpop.f32.mrf.mxu0
        %v3409 = vadd.f32 0.0, %v3408
        %3410 = vmatprep.mubr.bf16.mxu0 %v2579
        %3411 = vmatmul.mubr.bf16.gmra.mxu0 %v2578
        %v3412 = vpop.f32.mrf.mxu0
        %v3413 = vadd.f32 0.0, %v3412
        %v3414 = vpop.f32.mrf.mxu0
        %v3415 = vadd.f32 0.0, %v3414
        %v3416 = vpop.f32.mrf.mxu0
        %v3417 = vadd.f32 0.0, %v3416
        %v3418 = vpop.f32.mrf.mxu0
        %v3419 = vadd.f32 0.0, %v3418
        %3420 = vdwg.mxu0
        %3421 = vmatprep.subr.bf16.mxu0 %v3151
        %3422 = vmatpush1.bf16.msra.mxu0 %v3150
        %3423 = vmatprep.subr.bf16.mxu0 %v3143
        %3424 = vmatpush1.bf16.msra.mxu0 %v3142
        %3425 = vmatprep.subr.bf16.mxu0 %v3135
        %3426 = vmatpush1.bf16.msra.mxu0 %v3134
        %3427 = vmatprep.subr.bf16.mxu0 %v3127
        %3428 = vmatpush1.bf16.msra.mxu0 %v3126
        %3429 = vmatprep.subr.bf16.mxu0 %v3119
        %3430 = vmatpush1.bf16.msra.mxu0 %v3118
        %3431 = vmatprep.subr.bf16.mxu0 %v3111
        %3432 = vmatpush1.bf16.msra.mxu0 %v3110
        %3433 = vmatprep.subr.bf16.mxu0 %v3103
        %3434 = vmatpush1.bf16.msra.mxu0 %v3102
        %3435 = vmatprep.subr.bf16.mxu0 %v3095
        %3436 = vmatpush1.bf16.msra.mxu0 %v3094
        %3437 = vmatprep.subr.bf16.mxu0 %v3215
        %3438 = vmatpush2.bf16.msra.mxu0 %v3214
        %3439 = vmatprep.subr.bf16.mxu0 %v3207
        %3440 = vmatpush2.bf16.msra.mxu0 %v3206
        %3441 = vmatprep.subr.bf16.mxu0 %v3199
        %3442 = vmatpush2.bf16.msra.mxu0 %v3198
        %3443 = vmatprep.subr.bf16.mxu0 %v3191
        %3444 = vmatpush2.bf16.msra.mxu0 %v3190
        %3445 = vmatprep.subr.bf16.mxu0 %v3183
        %3446 = vmatpush2.bf16.msra.mxu0 %v3182
        %3447 = vmatprep.subr.bf16.mxu0 %v3175
        %3448 = vmatpush2.bf16.msra.mxu0 %v3174
        %3449 = vmatprep.subr.bf16.mxu0 %v3167
        %3450 = vmatpush2.bf16.msra.mxu0 %v3166
        %3451 = vmatprep.subr.bf16.mxu0 %v3159
        %3452 = vmatpush2.bf16.msra.mxu0 %v3158
        %3453 = vmatprep.mubr.bf16.mxu0 %v2573
        %3454 = vmatmul.mubr.bf16.gmra.mxu0 %v2572
        %v3455 = vpop.f32.mrf.mxu0
        %v3456 = vadd.f32 0.0, %v3455
        %v3457 = vpop.f32.mrf.mxu0
        %v3458 = vadd.f32 0.0, %v3457
        %v3459 = vpop.f32.mrf.mxu0
        %v3460 = vadd.f32 0.0, %v3459
        %v3461 = vpop.f32.mrf.mxu0
        %v3462 = vadd.f32 0.0, %v3461
        %3463 = vmatprep.mubr.bf16.mxu0 %v2575
        %3464 = vmatmul.mubr.bf16.gmra.mxu0 %v2574
        %v3465 = vpop.f32.mrf.mxu0
        %v3466 = vadd.f32 0.0, %v3465
        %v3467 = vpop.f32.mrf.mxu0
        %v3468 = vadd.f32 0.0, %v3467
        %v3469 = vpop.f32.mrf.mxu0
        %v3470 = vadd.f32 0.0, %v3469
        %v3471 = vpop.f32.mrf.mxu0
        %v3472 = vadd.f32 0.0, %v3471
        %3473 = vmatprep.mubr.bf16.mxu0 %v2577
        %3474 = vmatmul.mubr.bf16.gmra.mxu0 %v2576
        %v3475 = vpop.f32.mrf.mxu0
        %v3476 = vadd.f32 0.0, %v3475
        %v3477 = vpop.f32.mrf.mxu0
        %v3478 = vadd.f32 0.0, %v3477
        %v3479 = vpop.f32.mrf.mxu0
        %v3480 = vadd.f32 0.0, %v3479
        %v3481 = vpop.f32.mrf.mxu0
        %v3482 = vadd.f32 0.0, %v3481
        %3483 = vmatprep.mubr.bf16.mxu0 %v2579
        %3484 = vmatmul.mubr.bf16.gmra.mxu0 %v2578
        %v3485 = vpop.f32.mrf.mxu0
        %v3486 = vadd.f32 0.0, %v3485
        %v3487 = vpop.f32.mrf.mxu0
        %v3488 = vadd.f32 0.0, %v3487
        %v3489 = vpop.f32.mrf.mxu0
        %v3490 = vadd.f32 0.0, %v3489
        %v3491 = vpop.f32.mrf.mxu0
        %v3492 = vadd.f32 0.0, %v3491
        %3493 = vdwg.mxu0
        %3494 = vmatprep.subr.bf16.mxu0 %v3153
        %3495 = vmatpush1.bf16.msra.mxu0 %v3152
        %3496 = vmatprep.subr.bf16.mxu0 %v3145
        %3497 = vmatpush1.bf16.msra.mxu0 %v3144
        %3498 = vmatprep.subr.bf16.mxu0 %v3137
        %3499 = vmatpush1.bf16.msra.mxu0 %v3136
        %3500 = vmatprep.subr.bf16.mxu0 %v3129
        %3501 = vmatpush1.bf16.msra.mxu0 %v3128
        %3502 = vmatprep.subr.bf16.mxu0 %v3121
        %3503 = vmatpush1.bf16.msra.mxu0 %v3120
        %3504 = vmatprep.subr.bf16.mxu0 %v3113
        %3505 = vmatpush1.bf16.msra.mxu0 %v3112
        %3506 = vmatprep.subr.bf16.mxu0 %v3105
        %3507 = vmatpush1.bf16.msra.mxu0 %v3104
        %3508 = vmatprep.subr.bf16.mxu0 %v3097
        %3509 = vmatpush1.bf16.msra.mxu0 %v3096
        %3510 = vmatprep.subr.bf16.mxu0 %v3217
        %3511 = vmatpush2.bf16.msra.mxu0 %v3216
        %3512 = vmatprep.subr.bf16.mxu0 %v3209
        %3513 = vmatpush2.bf16.msra.mxu0 %v3208
        %3514 = vmatprep.subr.bf16.mxu0 %v3201
        %3515 = vmatpush2.bf16.msra.mxu0 %v3200
        %3516 = vmatprep.subr.bf16.mxu0 %v3193
        %3517 = vmatpush2.bf16.msra.mxu0 %v3192
        %3518 = vmatprep.subr.bf16.mxu0 %v3185
        %3519 = vmatpush2.bf16.msra.mxu0 %v3184
        %3520 = vmatprep.subr.bf16.mxu0 %v3177
        %3521 = vmatpush2.bf16.msra.mxu0 %v3176
        %3522 = vmatprep.subr.bf16.mxu0 %v3169
        %3523 = vmatpush2.bf16.msra.mxu0 %v3168
        %3524 = vmatprep.subr.bf16.mxu0 %v3161
        %3525 = vmatpush2.bf16.msra.mxu0 %v3160
        %3526 = vmatprep.mubr.bf16.mxu0 %v2573
        %3527 = vmatmul.mubr.bf16.gmra.mxu0 %v2572
        %v3528 = vpop.f32.mrf.mxu0
        %v3529 = vadd.f32 0.0, %v3528
        %v3530 = vpop.f32.mrf.mxu0
        %v3531 = vadd.f32 0.0, %v3530
        %v3532 = vpop.f32.mrf.mxu0
        %v3533 = vadd.f32 0.0, %v3532
        %v3534 = vpop.f32.mrf.mxu0
        %v3535 = vadd.f32 0.0, %v3534
        %3536 = vmatprep.mubr.bf16.mxu0 %v2575
        %3537 = vmatmul.mubr.bf16.gmra.mxu0 %v2574
        %v3538 = vpop.f32.mrf.mxu0
        %v3539 = vadd.f32 0.0, %v3538
        %v3540 = vpop.f32.mrf.mxu0
        %v3541 = vadd.f32 0.0, %v3540
        %v3542 = vpop.f32.mrf.mxu0
        %v3543 = vadd.f32 0.0, %v3542
        %v3544 = vpop.f32.mrf.mxu0
        %v3545 = vadd.f32 0.0, %v3544
        %3546 = vmatprep.mubr.bf16.mxu0 %v2577
        %3547 = vmatmul.mubr.bf16.gmra.mxu0 %v2576
        %v3548 = vpop.f32.mrf.mxu0
        %v3549 = vadd.f32 0.0, %v3548
        %v3550 = vpop.f32.mrf.mxu0
        %v3551 = vadd.f32 0.0, %v3550
        %v3552 = vpop.f32.mrf.mxu0
        %v3553 = vadd.f32 0.0, %v3552
        %v3554 = vpop.f32.mrf.mxu0
        %v3555 = vadd.f32 0.0, %v3554
        %3556 = vmatprep.mubr.bf16.mxu0 %v2579
        %3557 = vmatmul.mubr.bf16.gmra.mxu0 %v2578
        %v3558 = vpop.f32.mrf.mxu0
        %v3559 = vadd.f32 0.0, %v3558
        %v3560 = vpop.f32.mrf.mxu0
        %v3561 = vadd.f32 0.0, %v3560
        %v3562 = vpop.f32.mrf.mxu0
        %v3563 = vadd.f32 0.0, %v3562
        %v3564 = vpop.f32.mrf.mxu0
        %v3565 = vadd.f32 0.0, %v3564
        %3566 = vdwg.mxu0
        %3567 = vmatprep.subr.bf16.mxu0 %v3155
        %3568 = vmatpush1.bf16.msra.mxu0 %v3154
        %3569 = vmatprep.subr.bf16.mxu0 %v3147
        %3570 = vmatpush1.bf16.msra.mxu0 %v3146
        %3571 = vmatprep.subr.bf16.mxu0 %v3139
        %3572 = vmatpush1.bf16.msra.mxu0 %v3138
        %3573 = vmatprep.subr.bf16.mxu0 %v3131
        %3574 = vmatpush1.bf16.msra.mxu0 %v3130
        %3575 = vmatprep.subr.bf16.mxu0 %v3123
        %3576 = vmatpush1.bf16.msra.mxu0 %v3122
        %3577 = vmatprep.subr.bf16.mxu0 %v3115
        %3578 = vmatpush1.bf16.msra.mxu0 %v3114
        %3579 = vmatprep.subr.bf16.mxu0 %v3107
        %3580 = vmatpush1.bf16.msra.mxu0 %v3106
        %3581 = vmatprep.subr.bf16.mxu0 %v3099
        %3582 = vmatpush1.bf16.msra.mxu0 %v3098
        %3583 = vmatprep.subr.bf16.mxu0 %v3219
        %3584 = vmatpush2.bf16.msra.mxu0 %v3218
        %3585 = vmatprep.subr.bf16.mxu0 %v3211
        %3586 = vmatpush2.bf16.msra.mxu0 %v3210
        %3587 = vmatprep.subr.bf16.mxu0 %v3203
        %3588 = vmatpush2.bf16.msra.mxu0 %v3202
        %3589 = vmatprep.subr.bf16.mxu0 %v3195
        %3590 = vmatpush2.bf16.msra.mxu0 %v3194
        %3591 = vmatprep.subr.bf16.mxu0 %v3187
        %3592 = vmatpush2.bf16.msra.mxu0 %v3186
        %3593 = vmatprep.subr.bf16.mxu0 %v3179
        %3594 = vmatpush2.bf16.msra.mxu0 %v3178
        %3595 = vmatprep.subr.bf16.mxu0 %v3171
        %3596 = vmatpush2.bf16.msra.mxu0 %v3170
        %3597 = vmatprep.subr.bf16.mxu0 %v3163
        %3598 = vmatpush2.bf16.msra.mxu0 %v3162
        %3599 = vmatprep.mubr.bf16.mxu0 %v2573
        %3600 = vmatmul.mubr.bf16.gmra.mxu0 %v2572
        %v3601 = vpop.f32.mrf.mxu0
        %v3602 = vadd.f32 0.0, %v3601
        %v3603 = vpop.f32.mrf.mxu0
        %v3604 = vadd.f32 0.0, %v3603
        %v3605 = vpop.f32.mrf.mxu0
        %v3606 = vadd.f32 0.0, %v3605
        %v3607 = vpop.f32.mrf.mxu0
        %v3608 = vadd.f32 0.0, %v3607
        %3609 = vmatprep.mubr.bf16.mxu0 %v2575
        %3610 = vmatmul.mubr.bf16.gmra.mxu0 %v2574
        %v3611 = vpop.f32.mrf.mxu0
        %v3612 = vadd.f32 0.0, %v3611
        %v3613 = vpop.f32.mrf.mxu0
        %v3614 = vadd.f32 0.0, %v3613
        %v3615 = vpop.f32.mrf.mxu0
        %v3616 = vadd.f32 0.0, %v3615
        %v3617 = vpop.f32.mrf.mxu0
        %v3618 = vadd.f32 0.0, %v3617
        %3619 = vmatprep.mubr.bf16.mxu0 %v2577
        %3620 = vmatmul.mubr.bf16.gmra.mxu0 %v2576
        %v3621 = vpop.f32.mrf.mxu0
        %v3622 = vadd.f32 0.0, %v3621
        %v3623 = vpop.f32.mrf.mxu0
        %v3624 = vadd.f32 0.0, %v3623
        %v3625 = vpop.f32.mrf.mxu0
        %v3626 = vadd.f32 0.0, %v3625
        %v3627 = vpop.f32.mrf.mxu0
        %v3628 = vadd.f32 0.0, %v3627
        %3629 = vmatprep.mubr.bf16.mxu0 %v2579
        %3630 = vmatmul.mubr.bf16.gmra.mxu0 %v2578
        %v3631 = vpop.f32.mrf.mxu0
        %v3632 = vadd.f32 0.0, %v3631
        %v3633 = vpop.f32.mrf.mxu0
        %v3634 = vadd.f32 0.0, %v3633
        %v3635 = vpop.f32.mrf.mxu0
        %v3636 = vadd.f32 0.0, %v3635
        %v3637 = vpop.f32.mrf.mxu0
        %v3638 = vadd.f32 0.0, %v3637
        %3639 = vdwg.mxu0
        %v3640 = vadd.f32 %v2246, %v3383
        %v3641 = vadd.f32 %v2248, %v3385
        %v3642 = vadd.f32 %v2319, %v3456
        %v3643 = vadd.f32 %v2321, %v3458
        %v3644 = vadd.f32 %v2392, %v3529
        %v3645 = vadd.f32 %v2394, %v3531
        %v3646 = vadd.f32 %v2465, %v3602
        %v3647 = vadd.f32 %v2467, %v3604
        %v3648 = vadd.f32 %v2250, %v3387
        %v3649 = vadd.f32 %v2252, %v3389
        %v3650 = vadd.f32 %v2323, %v3460
        %v3651 = vadd.f32 %v2325, %v3462
        %v3652 = vadd.f32 %v2396, %v3533
        %v3653 = vadd.f32 %v2398, %v3535
        %v3654 = vadd.f32 %v2469, %v3606
        %v3655 = vadd.f32 %v2471, %v3608
        %v3656 = vadd.f32 %v2256, %v3393
        %v3657 = vadd.f32 %v2258, %v3395
        %v3658 = vadd.f32 %v2329, %v3466
        %v3659 = vadd.f32 %v2331, %v3468
        %v3660 = vadd.f32 %v2402, %v3539
        %v3661 = vadd.f32 %v2404, %v3541
        %v3662 = vadd.f32 %v2475, %v3612
        %v3663 = vadd.f32 %v2477, %v3614
        %v3664 = vadd.f32 %v2260, %v3397
        %v3665 = vadd.f32 %v2262, %v3399
        %v3666 = vadd.f32 %v2333, %v3470
        %v3667 = vadd.f32 %v2335, %v3472
        %v3668 = vadd.f32 %v2406, %v3543
        %v3669 = vadd.f32 %v2408, %v3545
        %v3670 = vadd.f32 %v2479, %v3616
        %v3671 = vadd.f32 %v2481, %v3618
        %v3672 = vadd.f32 %v2266, %v3403
        %v3673 = vadd.f32 %v2268, %v3405
        %v3674 = vadd.f32 %v2339, %v3476
        %v3675 = vadd.f32 %v2341, %v3478
        %v3676 = vadd.f32 %v2412, %v3549
        %v3677 = vadd.f32 %v2414, %v3551
        %v3678 = vadd.f32 %v2485, %v3622
        %v3679 = vadd.f32 %v2487, %v3624
        %v3680 = vadd.f32 %v2270, %v3407
        %v3681 = vadd.f32 %v2272, %v3409
        %v3682 = vadd.f32 %v2343, %v3480
        %v3683 = vadd.f32 %v2345, %v3482
        %v3684 = vadd.f32 %v2416, %v3553
        %v3685 = vadd.f32 %v2418, %v3555
        %v3686 = vadd.f32 %v2489, %v3626
        %v3687 = vadd.f32 %v2491, %v3628
        %v3688 = vadd.f32 %v2276, %v3413
        %v3689 = vadd.f32 %v2278, %v3415
        %v3690 = vadd.f32 %v2349, %v3486
        %v3691 = vadd.f32 %v2351, %v3488
        %v3692 = vadd.f32 %v2422, %v3559
        %v3693 = vadd.f32 %v2424, %v3561
        %v3694 = vadd.f32 %v2495, %v3632
        %v3695 = vadd.f32 %v2497, %v3634
        %v3696 = vadd.f32 %v2280, %v3417
        %v3697 = vadd.f32 %v2282, %v3419
        %v3698 = vadd.f32 %v2353, %v3490
        %v3699 = vadd.f32 %v2355, %v3492
        %v3700 = vadd.f32 %v2426, %v3563
        %v3701 = vadd.f32 %v2428, %v3565
        %v3702 = vadd.f32 %v2499, %v3636
        %v3703 = vadd.f32 %v2501, %v3638
        %v3704 = vld [vmem:[%s225] sm:$0xf8]
        %v3705 = vld [vmem:[%s225 + $0x8] sm:$0xf8]
        %v3706 = vld [vmem:[%s225 + $0x40] sm:$0x7]
        %v3707 = vld [vmem:[%s225 + $0x48] sm:$0x7]
        %v3708 = vld [vmem:[%s225 + $0x50] sm:$0xf8]
        %v3709 = vld [vmem:[%s225 + $0x58] sm:$0xf8]
        %v3710 = vld [vmem:[%s225 + $0x90] sm:$0x7]
        %v3711 = vld [vmem:[%s225 + $0x98] sm:$0x7]
        %vm3720 = vcmask 1044480
        %v3721 = vrot.slane %v3704, 3
        %v3722 = vrot.slane %v412, 3
        %v3723 = vsel %vm3720, %v3721, %v3722
        %v3724 = vrot.slane %v3705, 3
        %v3725 = vrot.slane %v413, 3
        %v3726 = vsel %vm3720, %v3724, %v3725
        %v3727 = vrot.slane %v414, 3
        %v3728 = vsel %vm3720, %v3722, %v3727
        %v3729 = vrot.slane %v415, 3
        %v3730 = vsel %vm3720, %v3725, %v3729
        %v3731 = vrot.slane %v416, 3
        %v3732 = vsel %vm3720, %v3727, %v3731
        %v3733 = vrot.slane %v417, 3
        %v3734 = vsel %vm3720, %v3729, %v3733
        %v3735 = vrot.slane %v3706, 3
        %v3736 = vsel %vm3720, %v3731, %v3735
        %v3737 = vrot.slane %v3707, 3
        %v3738 = vsel %vm3720, %v3733, %v3737
        %v3739 = vrot.slane %v3708, 3
        %v3740 = vrot.slane %v422, 3
        %v3741 = vsel %vm3720, %v3739, %v3740
        %v3742 = vrot.slane %v3709, 3
        %v3743 = vrot.slane %v423, 3
        %v3744 = vsel %vm3720, %v3742, %v3743
        %v3745 = vrot.slane %v424, 3
        %v3746 = vsel %vm3720, %v3740, %v3745
        %v3747 = vrot.slane %v425, 3
        %v3748 = vsel %vm3720, %v3743, %v3747
        %v3749 = vrot.slane %v426, 3
        %v3750 = vsel %vm3720, %v3745, %v3749
        %v3751 = vrot.slane %v427, 3
        %v3752 = vsel %vm3720, %v3747, %v3751
        %v3753 = vrot.slane %v3710, 3
        %v3754 = vsel %vm3720, %v3749, %v3753
        %v3755 = vrot.slane %v3711, 3
        %v3756 = vsel %vm3720, %v3751, %v3755
        %v3773 = vpack.c.bf16 %v3728, %v3723
        %v3774 = vpack.c.bf16 %v3730, %v3726
        %v3775 = vpack.c.bf16 %v3736, %v3732
        %v3776 = vpack.c.bf16 %v3738, %v3734
        %v3777 = vpack.c.bf16 %v3746, %v3741
        %v3778 = vpack.c.bf16 %v3748, %v3744
        %v3779 = vpack.c.bf16 %v3754, %v3750
        %v3780 = vpack.c.bf16 %v3756, %v3752
        %v3781 = vld [vmem:[#allocation3 + $0xc00] sm:$0xff]
        %v3782 = vld [vmem:[#allocation3 + $0xc08] sm:$0xff]
        %v3783 = vld [vmem:[#allocation3 + $0xc10] sm:$0xff]
        %v3784 = vld [vmem:[#allocation3 + $0xc18] sm:$0xff]
        %v3785 = vld [vmem:[#allocation3 + $0xc20] sm:$0xff]
        %v3786 = vld [vmem:[#allocation3 + $0xc28] sm:$0xff]
        %v3787 = vld [vmem:[#allocation3 + $0xc30] sm:$0xff]
        %v3788 = vld [vmem:[#allocation3 + $0xc38] sm:$0xff]
        %v3789 = vld [vmem:[#allocation3 + $0xc40] sm:$0xff]
        %v3790 = vld [vmem:[#allocation3 + $0xc48] sm:$0xff]
        %v3791 = vld [vmem:[#allocation3 + $0xc50] sm:$0xff]
        %v3792 = vld [vmem:[#allocation3 + $0xc58] sm:$0xff]
        %v3793 = vld [vmem:[#allocation3 + $0xc60] sm:$0xff]
        %v3794 = vld [vmem:[#allocation3 + $0xc68] sm:$0xff]
        %v3795 = vld [vmem:[#allocation3 + $0xc70] sm:$0xff]
        %v3796 = vld [vmem:[#allocation3 + $0xc78] sm:$0xff]
        %v3797 = vld [vmem:[#allocation3 + $0xc80] sm:$0xff]
        %v3798 = vld [vmem:[#allocation3 + $0xc88] sm:$0xff]
        %v3799 = vld [vmem:[#allocation3 + $0xc90] sm:$0xff]
        %v3800 = vld [vmem:[#allocation3 + $0xc98] sm:$0xff]
        %v3801 = vld [vmem:[#allocation3 + $0xca0] sm:$0xff]
        %v3802 = vld [vmem:[#allocation3 + $0xca8] sm:$0xff]
        %v3803 = vld [vmem:[#allocation3 + $0xcb0] sm:$0xff]
        %v3804 = vld [vmem:[#allocation3 + $0xcb8] sm:$0xff]
        %v3805 = vld [vmem:[#allocation3 + $0xcc0] sm:$0xff]
        %v3806 = vld [vmem:[#allocation3 + $0xcc8] sm:$0xff]
        %v3807 = vld [vmem:[#allocation3 + $0xcd0] sm:$0xff]
        %v3808 = vld [vmem:[#allocation3 + $0xcd8] sm:$0xff]
        %v3809 = vld [vmem:[#allocation3 + $0xce0] sm:$0xff]
        %v3810 = vld [vmem:[#allocation3 + $0xce8] sm:$0xff]
        %v3811 = vld [vmem:[#allocation3 + $0xcf0] sm:$0xff]
        %v3812 = vld [vmem:[#allocation3 + $0xcf8] sm:$0xff]
        %v3813 = vld [vmem:[#allocation3 + $0xd00] sm:$0xff]
        %v3814 = vld [vmem:[#allocation3 + $0xd08] sm:$0xff]
        %v3815 = vld [vmem:[#allocation3 + $0xd10] sm:$0xff]
        %v3816 = vld [vmem:[#allocation3 + $0xd18] sm:$0xff]
        %v3817 = vld [vmem:[#allocation3 + $0xd20] sm:$0xff]
        %v3818 = vld [vmem:[#allocation3 + $0xd28] sm:$0xff]
        %v3819 = vld [vmem:[#allocation3 + $0xd30] sm:$0xff]
        %v3820 = vld [vmem:[#allocation3 + $0xd38] sm:$0xff]
        %v3821 = vld [vmem:[#allocation3 + $0xd40] sm:$0xff]
        %v3822 = vld [vmem:[#allocation3 + $0xd48] sm:$0xff]
        %v3823 = vld [vmem:[#allocation3 + $0xd50] sm:$0xff]
        %v3824 = vld [vmem:[#allocation3 + $0xd58] sm:$0xff]
        %v3825 = vld [vmem:[#allocation3 + $0xd60] sm:$0xff]
        %v3826 = vld [vmem:[#allocation3 + $0xd68] sm:$0xff]
        %v3827 = vld [vmem:[#allocation3 + $0xd70] sm:$0xff]
        %v3828 = vld [vmem:[#allocation3 + $0xd78] sm:$0xff]
        %v3829 = vld [vmem:[#allocation3 + $0xd80] sm:$0xff]
        %v3830 = vld [vmem:[#allocation3 + $0xd88] sm:$0xff]
        %v3831 = vld [vmem:[#allocation3 + $0xd90] sm:$0xff]
        %v3832 = vld [vmem:[#allocation3 + $0xd98] sm:$0xff]
        %v3833 = vld [vmem:[#allocation3 + $0xda0] sm:$0xff]
        %v3834 = vld [vmem:[#allocation3 + $0xda8] sm:$0xff]
        %v3835 = vld [vmem:[#allocation3 + $0xdb0] sm:$0xff]
        %v3836 = vld [vmem:[#allocation3 + $0xdb8] sm:$0xff]
        %v3837 = vld [vmem:[#allocation3 + $0xdc0] sm:$0xff]
        %v3838 = vld [vmem:[#allocation3 + $0xdc8] sm:$0xff]
        %v3839 = vld [vmem:[#allocation3 + $0xdd0] sm:$0xff]
        %v3840 = vld [vmem:[#allocation3 + $0xdd8] sm:$0xff]
        %v3841 = vld [vmem:[#allocation3 + $0xde0] sm:$0xff]
        %v3842 = vld [vmem:[#allocation3 + $0xde8] sm:$0xff]
        %v3843 = vld [vmem:[#allocation3 + $0xdf0] sm:$0xff]
        %v3844 = vld [vmem:[#allocation3 + $0xdf8] sm:$0xff]
        %v3845 = vld [vmem:[#allocation3 + $0xe00] sm:$0xff]
        %v3846 = vld [vmem:[#allocation3 + $0xe08] sm:$0xff]
        %v3847 = vld [vmem:[#allocation3 + $0xe10] sm:$0xff]
        %v3848 = vld [vmem:[#allocation3 + $0xe18] sm:$0xff]
        %v3849 = vld [vmem:[#allocation3 + $0xe20] sm:$0xff]
        %v3850 = vld [vmem:[#allocation3 + $0xe28] sm:$0xff]
        %v3851 = vld [vmem:[#allocation3 + $0xe30] sm:$0xff]
        %v3852 = vld [vmem:[#allocation3 + $0xe38] sm:$0xff]
        %v3853 = vld [vmem:[#allocation3 + $0xe40] sm:$0xff]
        %v3854 = vld [vmem:[#allocation3 + $0xe48] sm:$0xff]
        %v3855 = vld [vmem:[#allocation3 + $0xe50] sm:$0xff]
        %v3856 = vld [vmem:[#allocation3 + $0xe58] sm:$0xff]
        %v3857 = vld [vmem:[#allocation3 + $0xe60] sm:$0xff]
        %v3858 = vld [vmem:[#allocation3 + $0xe68] sm:$0xff]
        %v3859 = vld [vmem:[#allocation3 + $0xe70] sm:$0xff]
        %v3860 = vld [vmem:[#allocation3 + $0xe78] sm:$0xff]
        %v3861 = vld [vmem:[#allocation3 + $0xe80] sm:$0xff]
        %v3862 = vld [vmem:[#allocation3 + $0xe88] sm:$0xff]
        %v3863 = vld [vmem:[#allocation3 + $0xe90] sm:$0xff]
        %v3864 = vld [vmem:[#allocation3 + $0xe98] sm:$0xff]
        %v3865 = vld [vmem:[#allocation3 + $0xea0] sm:$0xff]
        %v3866 = vld [vmem:[#allocation3 + $0xea8] sm:$0xff]
        %v3867 = vld [vmem:[#allocation3 + $0xeb0] sm:$0xff]
        %v3868 = vld [vmem:[#allocation3 + $0xeb8] sm:$0xff]
        %v3869 = vld [vmem:[#allocation3 + $0xec0] sm:$0xff]
        %v3870 = vld [vmem:[#allocation3 + $0xec8] sm:$0xff]
        %v3871 = vld [vmem:[#allocation3 + $0xed0] sm:$0xff]
        %v3872 = vld [vmem:[#allocation3 + $0xed8] sm:$0xff]
        %v3873 = vld [vmem:[#allocation3 + $0xee0] sm:$0xff]
        %v3874 = vld [vmem:[#allocation3 + $0xee8] sm:$0xff]
        %v3875 = vld [vmem:[#allocation3 + $0xef0] sm:$0xff]
        %v3876 = vld [vmem:[#allocation3 + $0xef8] sm:$0xff]
        %v3877 = vld [vmem:[#allocation3 + $0xf00] sm:$0xff]
        %v3878 = vld [vmem:[#allocation3 + $0xf08] sm:$0xff]
        %v3879 = vld [vmem:[#allocation3 + $0xf10] sm:$0xff]
        %v3880 = vld [vmem:[#allocation3 + $0xf18] sm:$0xff]
        %v3881 = vld [vmem:[#allocation3 + $0xf20] sm:$0xff]
        %v3882 = vld [vmem:[#allocation3 + $0xf28] sm:$0xff]
        %v3883 = vld [vmem:[#allocation3 + $0xf30] sm:$0xff]
        %v3884 = vld [vmem:[#allocation3 + $0xf38] sm:$0xff]
        %v3885 = vld [vmem:[#allocation3 + $0xf40] sm:$0xff]
        %v3886 = vld [vmem:[#allocation3 + $0xf48] sm:$0xff]
        %v3887 = vld [vmem:[#allocation3 + $0xf50] sm:$0xff]
        %v3888 = vld [vmem:[#allocation3 + $0xf58] sm:$0xff]
        %v3889 = vld [vmem:[#allocation3 + $0xf60] sm:$0xff]
        %v3890 = vld [vmem:[#allocation3 + $0xf68] sm:$0xff]
        %v3891 = vld [vmem:[#allocation3 + $0xf70] sm:$0xff]
        %v3892 = vld [vmem:[#allocation3 + $0xf78] sm:$0xff]
        %v3893 = vld [vmem:[#allocation3 + $0xf80] sm:$0xff]
        %v3894 = vld [vmem:[#allocation3 + $0xf88] sm:$0xff]
        %v3895 = vld [vmem:[#allocation3 + $0xf90] sm:$0xff]
        %v3896 = vld [vmem:[#allocation3 + $0xf98] sm:$0xff]
        %v3897 = vld [vmem:[#allocation3 + $0xfa0] sm:$0xff]
        %v3898 = vld [vmem:[#allocation3 + $0xfa8] sm:$0xff]
        %v3899 = vld [vmem:[#allocation3 + $0xfb0] sm:$0xff]
        %v3900 = vld [vmem:[#allocation3 + $0xfb8] sm:$0xff]
        %v3901 = vld [vmem:[#allocation3 + $0xfc0] sm:$0xff]
        %v3902 = vld [vmem:[#allocation3 + $0xfc8] sm:$0xff]
        %v3903 = vld [vmem:[#allocation3 + $0xfd0] sm:$0xff]
        %v3904 = vld [vmem:[#allocation3 + $0xfd8] sm:$0xff]
        %v3905 = vld [vmem:[#allocation3 + $0xfe0] sm:$0xff]
        %v3906 = vld [vmem:[#allocation3 + $0xfe8] sm:$0xff]
        %v3907 = vld [vmem:[#allocation3 + $0xff0] sm:$0xff]
        %v3908 = vld [vmem:[#allocation3 + $0xff8] sm:$0xff]
        %v4037 = vunpack.c.l.b16 %v3781
        %v4038 = vunpack.c.h.b16 %v3781
        %v4039 = vunpack.c.l.b16 %v3782
        %v4040 = vunpack.c.h.b16 %v3782
        %v4041 = vunpack.c.l.b16 %v3783
        %v4042 = vunpack.c.h.b16 %v3783
        %v4043 = vunpack.c.l.b16 %v3784
        %v4044 = vunpack.c.h.b16 %v3784
        %v4045 = vunpack.c.l.b16 %v3785
        %v4046 = vunpack.c.h.b16 %v3785
        %v4047 = vunpack.c.l.b16 %v3786
        %v4048 = vunpack.c.h.b16 %v3786
        %v4049 = vunpack.c.l.b16 %v3787
        %v4050 = vunpack.c.h.b16 %v3787
        %v4051 = vunpack.c.l.b16 %v3788
        %v4052 = vunpack.c.h.b16 %v3788
        %v4053 = vunpack.c.l.b16 %v3789
        %v4054 = vunpack.c.h.b16 %v3789
        %v4055 = vunpack.c.l.b16 %v3790
        %v4056 = vunpack.c.h.b16 %v3790
        %v4057 = vunpack.c.l.b16 %v3791
        %v4058 = vunpack.c.h.b16 %v3791
        %v4059 = vunpack.c.l.b16 %v3792
        %v4060 = vunpack.c.h.b16 %v3792
        %v4061 = vunpack.c.l.b16 %v3793
        %v4062 = vunpack.c.h.b16 %v3793
        %v4063 = vunpack.c.l.b16 %v3794
        %v4064 = vunpack.c.h.b16 %v3794
        %v4065 = vunpack.c.l.b16 %v3795
        %v4066 = vunpack.c.h.b16 %v3795
        %v4067 = vunpack.c.l.b16 %v3796
        %v4068 = vunpack.c.h.b16 %v3796
        %v4069 = vunpack.c.l.b16 %v3797
        %v4070 = vunpack.c.h.b16 %v3797
        %v4071 = vunpack.c.l.b16 %v3798
        %v4072 = vunpack.c.h.b16 %v3798
        %v4073 = vunpack.c.l.b16 %v3799
        %v4074 = vunpack.c.h.b16 %v3799
        %v4075 = vunpack.c.l.b16 %v3800
        %v4076 = vunpack.c.h.b16 %v3800
        %v4077 = vunpack.c.l.b16 %v3801
        %v4078 = vunpack.c.h.b16 %v3801
        %v4079 = vunpack.c.l.b16 %v3802
        %v4080 = vunpack.c.h.b16 %v3802
        %v4081 = vunpack.c.l.b16 %v3803
        %v4082 = vunpack.c.h.b16 %v3803
        %v4083 = vunpack.c.l.b16 %v3804
        %v4084 = vunpack.c.h.b16 %v3804
        %v4085 = vunpack.c.l.b16 %v3805
        %v4086 = vunpack.c.h.b16 %v3805
        %v4087 = vunpack.c.l.b16 %v3806
        %v4088 = vunpack.c.h.b16 %v3806
        %v4089 = vunpack.c.l.b16 %v3807
        %v4090 = vunpack.c.h.b16 %v3807
        %v4091 = vunpack.c.l.b16 %v3808
        %v4092 = vunpack.c.h.b16 %v3808
        %v4093 = vunpack.c.l.b16 %v3809
        %v4094 = vunpack.c.h.b16 %v3809
        %v4095 = vunpack.c.l.b16 %v3810
        %v4096 = vunpack.c.h.b16 %v3810
        %v4097 = vunpack.c.l.b16 %v3811
        %v4098 = vunpack.c.h.b16 %v3811
        %v4099 = vunpack.c.l.b16 %v3812
        %v4100 = vunpack.c.h.b16 %v3812
        %v4101 = vunpack.c.l.b16 %v3813
        %v4102 = vunpack.c.h.b16 %v3813
        %v4103 = vunpack.c.l.b16 %v3814
        %v4104 = vunpack.c.h.b16 %v3814
        %v4105 = vunpack.c.l.b16 %v3815
        %v4106 = vunpack.c.h.b16 %v3815
        %v4107 = vunpack.c.l.b16 %v3816
        %v4108 = vunpack.c.h.b16 %v3816
        %v4109 = vunpack.c.l.b16 %v3817
        %v4110 = vunpack.c.h.b16 %v3817
        %v4111 = vunpack.c.l.b16 %v3818
        %v4112 = vunpack.c.h.b16 %v3818
        %v4113 = vunpack.c.l.b16 %v3819
        %v4114 = vunpack.c.h.b16 %v3819
        %v4115 = vunpack.c.l.b16 %v3820
        %v4116 = vunpack.c.h.b16 %v3820
        %v4117 = vunpack.c.l.b16 %v3821
        %v4118 = vunpack.c.h.b16 %v3821
        %v4119 = vunpack.c.l.b16 %v3822
        %v4120 = vunpack.c.h.b16 %v3822
        %v4121 = vunpack.c.l.b16 %v3823
        %v4122 = vunpack.c.h.b16 %v3823
        %v4123 = vunpack.c.l.b16 %v3824
        %v4124 = vunpack.c.h.b16 %v3824
        %v4125 = vunpack.c.l.b16 %v3825
        %v4126 = vunpack.c.h.b16 %v3825
        %v4127 = vunpack.c.l.b16 %v3826
        %v4128 = vunpack.c.h.b16 %v3826
        %v4129 = vunpack.c.l.b16 %v3827
        %v4130 = vunpack.c.h.b16 %v3827
        %v4131 = vunpack.c.l.b16 %v3828
        %v4132 = vunpack.c.h.b16 %v3828
        %v4133 = vunpack.c.l.b16 %v3829
        %v4134 = vunpack.c.h.b16 %v3829
        %v4135 = vunpack.c.l.b16 %v3830
        %v4136 = vunpack.c.h.b16 %v3830
        %v4137 = vunpack.c.l.b16 %v3831
        %v4138 = vunpack.c.h.b16 %v3831
        %v4139 = vunpack.c.l.b16 %v3832
        %v4140 = vunpack.c.h.b16 %v3832
        %v4141 = vunpack.c.l.b16 %v3833
        %v4142 = vunpack.c.h.b16 %v3833
        %v4143 = vunpack.c.l.b16 %v3834
        %v4144 = vunpack.c.h.b16 %v3834
        %v4145 = vunpack.c.l.b16 %v3835
        %v4146 = vunpack.c.h.b16 %v3835
        %v4147 = vunpack.c.l.b16 %v3836
        %v4148 = vunpack.c.h.b16 %v3836
        %v4149 = vunpack.c.l.b16 %v3837
        %v4150 = vunpack.c.h.b16 %v3837
        %v4151 = vunpack.c.l.b16 %v3838
        %v4152 = vunpack.c.h.b16 %v3838
        %v4153 = vunpack.c.l.b16 %v3839
        %v4154 = vunpack.c.h.b16 %v3839
        %v4155 = vunpack.c.l.b16 %v3840
        %v4156 = vunpack.c.h.b16 %v3840
        %v4157 = vunpack.c.l.b16 %v3841
        %v4158 = vunpack.c.h.b16 %v3841
        %v4159 = vunpack.c.l.b16 %v3842
        %v4160 = vunpack.c.h.b16 %v3842
        %v4161 = vunpack.c.l.b16 %v3843
        %v4162 = vunpack.c.h.b16 %v3843
        %v4163 = vunpack.c.l.b16 %v3844
        %v4164 = vunpack.c.h.b16 %v3844
        %v4165 = vunpack.c.l.b16 %v3845
        %v4166 = vunpack.c.h.b16 %v3845
        %v4167 = vunpack.c.l.b16 %v3846
        %v4168 = vunpack.c.h.b16 %v3846
        %v4169 = vunpack.c.l.b16 %v3847
        %v4170 = vunpack.c.h.b16 %v3847
        %v4171 = vunpack.c.l.b16 %v3848
        %v4172 = vunpack.c.h.b16 %v3848
        %v4173 = vunpack.c.l.b16 %v3849
        %v4174 = vunpack.c.h.b16 %v3849
        %v4175 = vunpack.c.l.b16 %v3850
        %v4176 = vunpack.c.h.b16 %v3850
        %v4177 = vunpack.c.l.b16 %v3851
        %v4178 = vunpack.c.h.b16 %v3851
        %v4179 = vunpack.c.l.b16 %v3852
        %v4180 = vunpack.c.h.b16 %v3852
        %v4181 = vunpack.c.l.b16 %v3853
        %v4182 = vunpack.c.h.b16 %v3853
        %v4183 = vunpack.c.l.b16 %v3854
        %v4184 = vunpack.c.h.b16 %v3854
        %v4185 = vunpack.c.l.b16 %v3855
        %v4186 = vunpack.c.h.b16 %v3855
        %v4187 = vunpack.c.l.b16 %v3856
        %v4188 = vunpack.c.h.b16 %v3856
        %v4189 = vunpack.c.l.b16 %v3857
        %v4190 = vunpack.c.h.b16 %v3857
        %v4191 = vunpack.c.l.b16 %v3858
        %v4192 = vunpack.c.h.b16 %v3858
        %v4193 = vunpack.c.l.b16 %v3859
        %v4194 = vunpack.c.h.b16 %v3859
        %v4195 = vunpack.c.l.b16 %v3860
        %v4196 = vunpack.c.h.b16 %v3860
        %v4197 = vunpack.c.l.b16 %v3861
        %v4198 = vunpack.c.h.b16 %v3861
        %v4199 = vunpack.c.l.b16 %v3862
        %v4200 = vunpack.c.h.b16 %v3862
        %v4201 = vunpack.c.l.b16 %v3863
        %v4202 = vunpack.c.h.b16 %v3863
        %v4203 = vunpack.c.l.b16 %v3864
        %v4204 = vunpack.c.h.b16 %v3864
        %v4205 = vunpack.c.l.b16 %v3865
        %v4206 = vunpack.c.h.b16 %v3865
        %v4207 = vunpack.c.l.b16 %v3866
        %v4208 = vunpack.c.h.b16 %v3866
        %v4209 = vunpack.c.l.b16 %v3867
        %v4210 = vunpack.c.h.b16 %v3867
        %v4211 = vunpack.c.l.b16 %v3868
        %v4212 = vunpack.c.h.b16 %v3868
        %v4213 = vunpack.c.l.b16 %v3869
        %v4214 = vunpack.c.h.b16 %v3869
        %v4215 = vunpack.c.l.b16 %v3870
        %v4216 = vunpack.c.h.b16 %v3870
        %v4217 = vunpack.c.l.b16 %v3871
        %v4218 = vunpack.c.h.b16 %v3871
        %v4219 = vunpack.c.l.b16 %v3872
        %v4220 = vunpack.c.h.b16 %v3872
        %v4221 = vunpack.c.l.b16 %v3873
        %v4222 = vunpack.c.h.b16 %v3873
        %v4223 = vunpack.c.l.b16 %v3874
        %v4224 = vunpack.c.h.b16 %v3874
        %v4225 = vunpack.c.l.b16 %v3875
        %v4226 = vunpack.c.h.b16 %v3875
        %v4227 = vunpack.c.l.b16 %v3876
        %v4228 = vunpack.c.h.b16 %v3876
        %v4229 = vunpack.c.l.b16 %v3877
        %v4230 = vunpack.c.h.b16 %v3877
        %v4231 = vunpack.c.l.b16 %v3878
        %v4232 = vunpack.c.h.b16 %v3878
        %v4233 = vunpack.c.l.b16 %v3879
        %v4234 = vunpack.c.h.b16 %v3879
        %v4235 = vunpack.c.l.b16 %v3880
        %v4236 = vunpack.c.h.b16 %v3880
        %v4237 = vunpack.c.l.b16 %v3881
        %v4238 = vunpack.c.h.b16 %v3881
        %v4239 = vunpack.c.l.b16 %v3882
        %v4240 = vunpack.c.h.b16 %v3882
        %v4241 = vunpack.c.l.b16 %v3883
        %v4242 = vunpack.c.h.b16 %v3883
        %v4243 = vunpack.c.l.b16 %v3884
        %v4244 = vunpack.c.h.b16 %v3884
        %v4245 = vunpack.c.l.b16 %v3885
        %v4246 = vunpack.c.h.b16 %v3885
        %v4247 = vunpack.c.l.b16 %v3886
        %v4248 = vunpack.c.h.b16 %v3886
        %v4249 = vunpack.c.l.b16 %v3887
        %v4250 = vunpack.c.h.b16 %v3887
        %v4251 = vunpack.c.l.b16 %v3888
        %v4252 = vunpack.c.h.b16 %v3888
        %v4253 = vunpack.c.l.b16 %v3889
        %v4254 = vunpack.c.h.b16 %v3889
        %v4255 = vunpack.c.l.b16 %v3890
        %v4256 = vunpack.c.h.b16 %v3890
        %v4257 = vunpack.c.l.b16 %v3891
        %v4258 = vunpack.c.h.b16 %v3891
        %v4259 = vunpack.c.l.b16 %v3892
        %v4260 = vunpack.c.h.b16 %v3892
        %v4261 = vunpack.c.l.b16 %v3893
        %v4262 = vunpack.c.h.b16 %v3893
        %v4263 = vunpack.c.l.b16 %v3894
        %v4264 = vunpack.c.h.b16 %v3894
        %v4265 = vunpack.c.l.b16 %v3895
        %v4266 = vunpack.c.h.b16 %v3895
        %v4267 = vunpack.c.l.b16 %v3896
        %v4268 = vunpack.c.h.b16 %v3896
        %v4269 = vunpack.c.l.b16 %v3897
        %v4270 = vunpack.c.h.b16 %v3897
        %v4271 = vunpack.c.l.b16 %v3898
        %v4272 = vunpack.c.h.b16 %v3898
        %v4273 = vunpack.c.l.b16 %v3899
        %v4274 = vunpack.c.h.b16 %v3899
        %v4275 = vunpack.c.l.b16 %v3900
        %v4276 = vunpack.c.h.b16 %v3900
        %v4277 = vunpack.c.l.b16 %v3901
        %v4278 = vunpack.c.h.b16 %v3901
        %v4279 = vunpack.c.l.b16 %v3902
        %v4280 = vunpack.c.h.b16 %v3902
        %v4281 = vunpack.c.l.b16 %v3903
        %v4282 = vunpack.c.h.b16 %v3903
        %v4283 = vunpack.c.l.b16 %v3904
        %v4284 = vunpack.c.h.b16 %v3904
        %v4285 = vunpack.c.l.b16 %v3905
        %v4286 = vunpack.c.h.b16 %v3905
        %v4287 = vunpack.c.l.b16 %v3906
        %v4288 = vunpack.c.h.b16 %v3906
        %v4289 = vunpack.c.l.b16 %v3907
        %v4290 = vunpack.c.h.b16 %v3907
        %v4291 = vunpack.c.l.b16 %v3908
        %v4292 = vunpack.c.h.b16 %v3908
        %v4293 = vpack.c.b16 %v4045, %v4037
        %v4294 = vpack.c.b16 %v4046, %v4038
        %v4295 = vpack.c.b16 %v4047, %v4039
        %v4296 = vpack.c.b16 %v4048, %v4040
        %v4297 = vpack.c.b16 %v4049, %v4041
        %v4298 = vpack.c.b16 %v4050, %v4042
        %v4299 = vpack.c.b16 %v4051, %v4043
        %v4300 = vpack.c.b16 %v4052, %v4044
        %v4301 = vpack.c.b16 %v4061, %v4053
        %v4302 = vpack.c.b16 %v4062, %v4054
        %v4303 = vpack.c.b16 %v4063, %v4055
        %v4304 = vpack.c.b16 %v4064, %v4056
        %v4305 = vpack.c.b16 %v4065, %v4057
        %v4306 = vpack.c.b16 %v4066, %v4058
        %v4307 = vpack.c.b16 %v4067, %v4059
        %v4308 = vpack.c.b16 %v4068, %v4060
        %v4309 = vpack.c.b16 %v4077, %v4069
        %v4310 = vpack.c.b16 %v4078, %v4070
        %v4311 = vpack.c.b16 %v4079, %v4071
        %v4312 = vpack.c.b16 %v4080, %v4072
        %v4313 = vpack.c.b16 %v4081, %v4073
        %v4314 = vpack.c.b16 %v4082, %v4074
        %v4315 = vpack.c.b16 %v4083, %v4075
        %v4316 = vpack.c.b16 %v4084, %v4076
        %v4317 = vpack.c.b16 %v4093, %v4085
        %v4318 = vpack.c.b16 %v4094, %v4086
        %v4319 = vpack.c.b16 %v4095, %v4087
        %v4320 = vpack.c.b16 %v4096, %v4088
        %v4321 = vpack.c.b16 %v4097, %v4089
        %v4322 = vpack.c.b16 %v4098, %v4090
        %v4323 = vpack.c.b16 %v4099, %v4091
        %v4324 = vpack.c.b16 %v4100, %v4092
        %v4325 = vpack.c.b16 %v4109, %v4101
        %v4326 = vpack.c.b16 %v4110, %v4102
        %v4327 = vpack.c.b16 %v4111, %v4103
        %v4328 = vpack.c.b16 %v4112, %v4104
        %v4329 = vpack.c.b16 %v4113, %v4105
        %v4330 = vpack.c.b16 %v4114, %v4106
        %v4331 = vpack.c.b16 %v4115, %v4107
        %v4332 = vpack.c.b16 %v4116, %v4108
        %v4333 = vpack.c.b16 %v4125, %v4117
        %v4334 = vpack.c.b16 %v4126, %v4118
        %v4335 = vpack.c.b16 %v4127, %v4119
        %v4336 = vpack.c.b16 %v4128, %v4120
        %v4337 = vpack.c.b16 %v4129, %v4121
        %v4338 = vpack.c.b16 %v4130, %v4122
        %v4339 = vpack.c.b16 %v4131, %v4123
        %v4340 = vpack.c.b16 %v4132, %v4124
        %v4341 = vpack.c.b16 %v4141, %v4133
        %v4342 = vpack.c.b16 %v4142, %v4134
        %v4343 = vpack.c.b16 %v4143, %v4135
        %v4344 = vpack.c.b16 %v4144, %v4136
        %v4345 = vpack.c.b16 %v4145, %v4137
        %v4346 = vpack.c.b16 %v4146, %v4138
        %v4347 = vpack.c.b16 %v4147, %v4139
        %v4348 = vpack.c.b16 %v4148, %v4140
        %v4349 = vpack.c.b16 %v4157, %v4149
        %v4350 = vpack.c.b16 %v4158, %v4150
        %v4351 = vpack.c.b16 %v4159, %v4151
        %v4352 = vpack.c.b16 %v4160, %v4152
        %v4353 = vpack.c.b16 %v4161, %v4153
        %v4354 = vpack.c.b16 %v4162, %v4154
        %v4355 = vpack.c.b16 %v4163, %v4155
        %v4356 = vpack.c.b16 %v4164, %v4156
        %v4357 = vpack.c.b16 %v4173, %v4165
        %v4358 = vpack.c.b16 %v4174, %v4166
        %v4359 = vpack.c.b16 %v4175, %v4167
        %v4360 = vpack.c.b16 %v4176, %v4168
        %v4361 = vpack.c.b16 %v4177, %v4169
        %v4362 = vpack.c.b16 %v4178, %v4170
        %v4363 = vpack.c.b16 %v4179, %v4171
        %v4364 = vpack.c.b16 %v4180, %v4172
        %v4365 = vpack.c.b16 %v4189, %v4181
        %v4366 = vpack.c.b16 %v4190, %v4182
        %v4367 = vpack.c.b16 %v4191, %v4183
        %v4368 = vpack.c.b16 %v4192, %v4184
        %v4369 = vpack.c.b16 %v4193, %v4185
        %v4370 = vpack.c.b16 %v4194, %v4186
        %v4371 = vpack.c.b16 %v4195, %v4187
        %v4372 = vpack.c.b16 %v4196, %v4188
        %v4373 = vpack.c.b16 %v4205, %v4197
        %v4374 = vpack.c.b16 %v4206, %v4198
        %v4375 = vpack.c.b16 %v4207, %v4199
        %v4376 = vpack.c.b16 %v4208, %v4200
        %v4377 = vpack.c.b16 %v4209, %v4201
        %v4378 = vpack.c.b16 %v4210, %v4202
        %v4379 = vpack.c.b16 %v4211, %v4203
        %v4380 = vpack.c.b16 %v4212, %v4204
        %v4381 = vpack.c.b16 %v4221, %v4213
        %v4382 = vpack.c.b16 %v4222, %v4214
        %v4383 = vpack.c.b16 %v4223, %v4215
        %v4384 = vpack.c.b16 %v4224, %v4216
        %v4385 = vpack.c.b16 %v4225, %v4217
        %v4386 = vpack.c.b16 %v4226, %v4218
        %v4387 = vpack.c.b16 %v4227, %v4219
        %v4388 = vpack.c.b16 %v4228, %v4220
        %v4389 = vpack.c.b16 %v4237, %v4229
        %v4390 = vpack.c.b16 %v4238, %v4230
        %v4391 = vpack.c.b16 %v4239, %v4231
        %v4392 = vpack.c.b16 %v4240, %v4232
        %v4393 = vpack.c.b16 %v4241, %v4233
        %v4394 = vpack.c.b16 %v4242, %v4234
        %v4395 = vpack.c.b16 %v4243, %v4235
        %v4396 = vpack.c.b16 %v4244, %v4236
        %v4397 = vpack.c.b16 %v4253, %v4245
        %v4398 = vpack.c.b16 %v4254, %v4246
        %v4399 = vpack.c.b16 %v4255, %v4247
        %v4400 = vpack.c.b16 %v4256, %v4248
        %v4401 = vpack.c.b16 %v4257, %v4249
        %v4402 = vpack.c.b16 %v4258, %v4250
        %v4403 = vpack.c.b16 %v4259, %v4251
        %v4404 = vpack.c.b16 %v4260, %v4252
        %v4405 = vpack.c.b16 %v4269, %v4261
        %v4406 = vpack.c.b16 %v4270, %v4262
        %v4407 = vpack.c.b16 %v4271, %v4263
        %v4408 = vpack.c.b16 %v4272, %v4264
        %v4409 = vpack.c.b16 %v4273, %v4265
        %v4410 = vpack.c.b16 %v4274, %v4266
        %v4411 = vpack.c.b16 %v4275, %v4267
        %v4412 = vpack.c.b16 %v4276, %v4268
        %v4413 = vpack.c.b16 %v4285, %v4277
        %v4414 = vpack.c.b16 %v4286, %v4278
        %v4415 = vpack.c.b16 %v4287, %v4279
        %v4416 = vpack.c.b16 %v4288, %v4280
        %v4417 = vpack.c.b16 %v4289, %v4281
        %v4418 = vpack.c.b16 %v4290, %v4282
        %v4419 = vpack.c.b16 %v4291, %v4283
        %v4420 = vpack.c.b16 %v4292, %v4284
        %4549 = vmatprep.subr.bf16.mxu0 %v4350
        %4550 = vmatpush1.bf16.msra.mxu0 %v4349
        %4551 = vmatprep.subr.bf16.mxu0 %v4342
        %4552 = vmatpush1.bf16.msra.mxu0 %v4341
        %4553 = vmatprep.subr.bf16.mxu0 %v4334
        %4554 = vmatpush1.bf16.msra.mxu0 %v4333
        %4555 = vmatprep.subr.bf16.mxu0 %v4326
        %4556 = vmatpush1.bf16.msra.mxu0 %v4325
        %4557 = vmatprep.subr.bf16.mxu0 %v4318
        %4558 = vmatpush1.bf16.msra.mxu0 %v4317
        %4559 = vmatprep.subr.bf16.mxu0 %v4310
        %4560 = vmatpush1.bf16.msra.mxu0 %v4309
        %4561 = vmatprep.subr.bf16.mxu0 %v4302
        %4562 = vmatpush1.bf16.msra.mxu0 %v4301
        %4563 = vmatprep.subr.bf16.mxu0 %v4294
        %4564 = vmatpush1.bf16.msra.mxu0 %v4293
        %4565 = vmatprep.subr.bf16.mxu0 %v4414
        %4566 = vmatpush2.bf16.msra.mxu0 %v4413
        %4567 = vmatprep.subr.bf16.mxu0 %v4406
        %4568 = vmatpush2.bf16.msra.mxu0 %v4405
        %4569 = vmatprep.subr.bf16.mxu0 %v4398
        %4570 = vmatpush2.bf16.msra.mxu0 %v4397
        %4571 = vmatprep.subr.bf16.mxu0 %v4390
        %4572 = vmatpush2.bf16.msra.mxu0 %v4389
        %4573 = vmatprep.subr.bf16.mxu0 %v4382
        %4574 = vmatpush2.bf16.msra.mxu0 %v4381
        %4575 = vmatprep.subr.bf16.mxu0 %v4374
        %4576 = vmatpush2.bf16.msra.mxu0 %v4373
        %4577 = vmatprep.subr.bf16.mxu0 %v4366
        %4578 = vmatpush2.bf16.msra.mxu0 %v4365
        %4579 = vmatprep.subr.bf16.mxu0 %v4358
        %4580 = vmatpush2.bf16.msra.mxu0 %v4357
        %4581 = vmatprep.mubr.bf16.mxu0 %v3774
        %4582 = vmatmul.mubr.bf16.gmra.mxu0 %v3773
        %v4583 = vpop.f32.mrf.mxu0
        %v4584 = vadd.f32 0.0, %v4583
        %v4585 = vpop.f32.mrf.mxu0
        %v4586 = vadd.f32 0.0, %v4585
        %v4587 = vpop.f32.mrf.mxu0
        %v4588 = vadd.f32 0.0, %v4587
        %v4589 = vpop.f32.mrf.mxu0
        %v4590 = vadd.f32 0.0, %v4589
        %4591 = vmatprep.mubr.bf16.mxu0 %v3776
        %4592 = vmatmul.mubr.bf16.gmra.mxu0 %v3775
        %v4593 = vpop.f32.mrf.mxu0
        %v4594 = vadd.f32 0.0, %v4593
        %v4595 = vpop.f32.mrf.mxu0
        %v4596 = vadd.f32 0.0, %v4595
        %v4597 = vpop.f32.mrf.mxu0
        %v4598 = vadd.f32 0.0, %v4597
        %v4599 = vpop.f32.mrf.mxu0
        %v4600 = vadd.f32 0.0, %v4599
        %4601 = vmatprep.mubr.bf16.mxu0 %v3778
        %4602 = vmatmul.mubr.bf16.gmra.mxu0 %v3777
        %v4603 = vpop.f32.mrf.mxu0
        %v4604 = vadd.f32 0.0, %v4603
        %v4605 = vpop.f32.mrf.mxu0
        %v4606 = vadd.f32 0.0, %v4605
        %v4607 = vpop.f32.mrf.mxu0
        %v4608 = vadd.f32 0.0, %v4607
        %v4609 = vpop.f32.mrf.mxu0
        %v4610 = vadd.f32 0.0, %v4609
        %4611 = vmatprep.mubr.bf16.mxu0 %v3780
        %4612 = vmatmul.mubr.bf16.gmra.mxu0 %v3779
        %v4613 = vpop.f32.mrf.mxu0
        %v4614 = vadd.f32 0.0, %v4613
        %v4615 = vpop.f32.mrf.mxu0
        %v4616 = vadd.f32 0.0, %v4615
        %v4617 = vpop.f32.mrf.mxu0
        %v4618 = vadd.f32 0.0, %v4617
        %v4619 = vpop.f32.mrf.mxu0
        %v4620 = vadd.f32 0.0, %v4619
        %4621 = vdwg.mxu0
        %4622 = vmatprep.subr.bf16.mxu0 %v4352
        %4623 = vmatpush1.bf16.msra.mxu0 %v4351
        %4624 = vmatprep.subr.bf16.mxu0 %v4344
        %4625 = vmatpush1.bf16.msra.mxu0 %v4343
        %4626 = vmatprep.subr.bf16.mxu0 %v4336
        %4627 = vmatpush1.bf16.msra.mxu0 %v4335
        %4628 = vmatprep.subr.bf16.mxu0 %v4328
        %4629 = vmatpush1.bf16.msra.mxu0 %v4327
        %4630 = vmatprep.subr.bf16.mxu0 %v4320
        %4631 = vmatpush1.bf16.msra.mxu0 %v4319
        %4632 = vmatprep.subr.bf16.mxu0 %v4312
        %4633 = vmatpush1.bf16.msra.mxu0 %v4311
        %4634 = vmatprep.subr.bf16.mxu0 %v4304
        %4635 = vmatpush1.bf16.msra.mxu0 %v4303
        %4636 = vmatprep.subr.bf16.mxu0 %v4296
        %4637 = vmatpush1.bf16.msra.mxu0 %v4295
        %4638 = vmatprep.subr.bf16.mxu0 %v4416
        %4639 = vmatpush2.bf16.msra.mxu0 %v4415
        %4640 = vmatprep.subr.bf16.mxu0 %v4408
        %4641 = vmatpush2.bf16.msra.mxu0 %v4407
        %4642 = vmatprep.subr.bf16.mxu0 %v4400
        %4643 = vmatpush2.bf16.msra.mxu0 %v4399
        %4644 = vmatprep.subr.bf16.mxu0 %v4392
        %4645 = vmatpush2.bf16.msra.mxu0 %v4391
        %4646 = vmatprep.subr.bf16.mxu0 %v4384
        %4647 = vmatpush2.bf16.msra.mxu0 %v4383
        %4648 = vmatprep.subr.bf16.mxu0 %v4376
        %4649 = vmatpush2.bf16.msra.mxu0 %v4375
        %4650 = vmatprep.subr.bf16.mxu0 %v4368
        %4651 = vmatpush2.bf16.msra.mxu0 %v4367
        %4652 = vmatprep.subr.bf16.mxu0 %v4360
        %4653 = vmatpush2.bf16.msra.mxu0 %v4359
        %4654 = vmatprep.mubr.bf16.mxu0 %v3774
        %4655 = vmatmul.mubr.bf16.gmra.mxu0 %v3773
        %v4656 = vpop.f32.mrf.mxu0
        %v4657 = vadd.f32 0.0, %v4656
        %v4658 = vpop.f32.mrf.mxu0
        %v4659 = vadd.f32 0.0, %v4658
        %v4660 = vpop.f32.mrf.mxu0
        %v4661 = vadd.f32 0.0, %v4660
        %v4662 = vpop.f32.mrf.mxu0
        %v4663 = vadd.f32 0.0, %v4662
        %4664 = vmatprep.mubr.bf16.mxu0 %v3776
        %4665 = vmatmul.mubr.bf16.gmra.mxu0 %v3775
        %v4666 = vpop.f32.mrf.mxu0
        %v4667 = vadd.f32 0.0, %v4666
        %v4668 = vpop.f32.mrf.mxu0
        %v4669 = vadd.f32 0.0, %v4668
        %v4670 = vpop.f32.mrf.mxu0
        %v4671 = vadd.f32 0.0, %v4670
        %v4672 = vpop.f32.mrf.mxu0
        %v4673 = vadd.f32 0.0, %v4672
        %4674 = vmatprep.mubr.bf16.mxu0 %v3778
        %4675 = vmatmul.mubr.bf16.gmra.mxu0 %v3777
        %v4676 = vpop.f32.mrf.mxu0
        %v4677 = vadd.f32 0.0, %v4676
        %v4678 = vpop.f32.mrf.mxu0
        %v4679 = vadd.f32 0.0, %v4678
        %v4680 = vpop.f32.mrf.mxu0
        %v4681 = vadd.f32 0.0, %v4680
        %v4682 = vpop.f32.mrf.mxu0
        %v4683 = vadd.f32 0.0, %v4682
        %4684 = vmatprep.mubr.bf16.mxu0 %v3780
        %4685 = vmatmul.mubr.bf16.gmra.mxu0 %v3779
        %v4686 = vpop.f32.mrf.mxu0
        %v4687 = vadd.f32 0.0, %v4686
        %v4688 = vpop.f32.mrf.mxu0
        %v4689 = vadd.f32 0.0, %v4688
        %v4690 = vpop.f32.mrf.mxu0
        %v4691 = vadd.f32 0.0, %v4690
        %v4692 = vpop.f32.mrf.mxu0
        %v4693 = vadd.f32 0.0, %v4692
        %4694 = vdwg.mxu0
        %4695 = vmatprep.subr.bf16.mxu0 %v4354
        %4696 = vmatpush1.bf16.msra.mxu0 %v4353
        %4697 = vmatprep.subr.bf16.mxu0 %v4346
        %4698 = vmatpush1.bf16.msra.mxu0 %v4345
        %4699 = vmatprep.subr.bf16.mxu0 %v4338
        %4700 = vmatpush1.bf16.msra.mxu0 %v4337
        %4701 = vmatprep.subr.bf16.mxu0 %v4330
        %4702 = vmatpush1.bf16.msra.mxu0 %v4329
        %4703 = vmatprep.subr.bf16.mxu0 %v4322
        %4704 = vmatpush1.bf16.msra.mxu0 %v4321
        %4705 = vmatprep.subr.bf16.mxu0 %v4314
        %4706 = vmatpush1.bf16.msra.mxu0 %v4313
        %4707 = vmatprep.subr.bf16.mxu0 %v4306
        %4708 = vmatpush1.bf16.msra.mxu0 %v4305
        %4709 = vmatprep.subr.bf16.mxu0 %v4298
        %4710 = vmatpush1.bf16.msra.mxu0 %v4297
        %4711 = vmatprep.subr.bf16.mxu0 %v4418
        %4712 = vmatpush2.bf16.msra.mxu0 %v4417
        %4713 = vmatprep.subr.bf16.mxu0 %v4410
        %4714 = vmatpush2.bf16.msra.mxu0 %v4409
        %4715 = vmatprep.subr.bf16.mxu0 %v4402
        %4716 = vmatpush2.bf16.msra.mxu0 %v4401
        %4717 = vmatprep.subr.bf16.mxu0 %v4394
        %4718 = vmatpush2.bf16.msra.mxu0 %v4393
        %4719 = vmatprep.subr.bf16.mxu0 %v4386
        %4720 = vmatpush2.bf16.msra.mxu0 %v4385
        %4721 = vmatprep.subr.bf16.mxu0 %v4378
        %4722 = vmatpush2.bf16.msra.mxu0 %v4377
        %4723 = vmatprep.subr.bf16.mxu0 %v4370
        %4724 = vmatpush2.bf16.msra.mxu0 %v4369
        %4725 = vmatprep.subr.bf16.mxu0 %v4362
        %4726 = vmatpush2.bf16.msra.mxu0 %v4361
        %4727 = vmatprep.mubr.bf16.mxu0 %v3774
        %4728 = vmatmul.mubr.bf16.gmra.mxu0 %v3773
        %v4729 = vpop.f32.mrf.mxu0
        %v4730 = vadd.f32 0.0, %v4729
        %v4731 = vpop.f32.mrf.mxu0
        %v4732 = vadd.f32 0.0, %v4731
        %v4733 = vpop.f32.mrf.mxu0
        %v4734 = vadd.f32 0.0, %v4733
        %v4735 = vpop.f32.mrf.mxu0
        %v4736 = vadd.f32 0.0, %v4735
        %4737 = vmatprep.mubr.bf16.mxu0 %v3776
        %4738 = vmatmul.mubr.bf16.gmra.mxu0 %v3775
        %v4739 = vpop.f32.mrf.mxu0
        %v4740 = vadd.f32 0.0, %v4739
        %v4741 = vpop.f32.mrf.mxu0
        %v4742 = vadd.f32 0.0, %v4741
        %v4743 = vpop.f32.mrf.mxu0
        %v4744 = vadd.f32 0.0, %v4743
        %v4745 = vpop.f32.mrf.mxu0
        %v4746 = vadd.f32 0.0, %v4745
        %4747 = vmatprep.mubr.bf16.mxu0 %v3778
        %4748 = vmatmul.mubr.bf16.gmra.mxu0 %v3777
        %v4749 = vpop.f32.mrf.mxu0
        %v4750 = vadd.f32 0.0, %v4749
        %v4751 = vpop.f32.mrf.mxu0
        %v4752 = vadd.f32 0.0, %v4751
        %v4753 = vpop.f32.mrf.mxu0
        %v4754 = vadd.f32 0.0, %v4753
        %v4755 = vpop.f32.mrf.mxu0
        %v4756 = vadd.f32 0.0, %v4755
        %4757 = vmatprep.mubr.bf16.mxu0 %v3780
        %4758 = vmatmul.mubr.bf16.gmra.mxu0 %v3779
        %v4759 = vpop.f32.mrf.mxu0
        %v4760 = vadd.f32 0.0, %v4759
        %v4761 = vpop.f32.mrf.mxu0
        %v4762 = vadd.f32 0.0, %v4761
        %v4763 = vpop.f32.mrf.mxu0
        %v4764 = vadd.f32 0.0, %v4763
        %v4765 = vpop.f32.mrf.mxu0
        %v4766 = vadd.f32 0.0, %v4765
        %4767 = vdwg.mxu0
        %4768 = vmatprep.subr.bf16.mxu0 %v4356
        %4769 = vmatpush1.bf16.msra.mxu0 %v4355
        %4770 = vmatprep.subr.bf16.mxu0 %v4348
        %4771 = vmatpush1.bf16.msra.mxu0 %v4347
        %4772 = vmatprep.subr.bf16.mxu0 %v4340
        %4773 = vmatpush1.bf16.msra.mxu0 %v4339
        %4774 = vmatprep.subr.bf16.mxu0 %v4332
        %4775 = vmatpush1.bf16.msra.mxu0 %v4331
        %4776 = vmatprep.subr.bf16.mxu0 %v4324
        %4777 = vmatpush1.bf16.msra.mxu0 %v4323
        %4778 = vmatprep.subr.bf16.mxu0 %v4316
        %4779 = vmatpush1.bf16.msra.mxu0 %v4315
        %4780 = vmatprep.subr.bf16.mxu0 %v4308
        %4781 = vmatpush1.bf16.msra.mxu0 %v4307
        %4782 = vmatprep.subr.bf16.mxu0 %v4300
        %4783 = vmatpush1.bf16.msra.mxu0 %v4299
        %4784 = vmatprep.subr.bf16.mxu0 %v4420
        %4785 = vmatpush2.bf16.msra.mxu0 %v4419
        %4786 = vmatprep.subr.bf16.mxu0 %v4412
        %4787 = vmatpush2.bf16.msra.mxu0 %v4411
        %4788 = vmatprep.subr.bf16.mxu0 %v4404
        %4789 = vmatpush2.bf16.msra.mxu0 %v4403
        %4790 = vmatprep.subr.bf16.mxu0 %v4396
        %4791 = vmatpush2.bf16.msra.mxu0 %v4395
        %4792 = vmatprep.subr.bf16.mxu0 %v4388
        %4793 = vmatpush2.bf16.msra.mxu0 %v4387
        %4794 = vmatprep.subr.bf16.mxu0 %v4380
        %4795 = vmatpush2.bf16.msra.mxu0 %v4379
        %4796 = vmatprep.subr.bf16.mxu0 %v4372
        %4797 = vmatpush2.bf16.msra.mxu0 %v4371
        %4798 = vmatprep.subr.bf16.mxu0 %v4364
        %4799 = vmatpush2.bf16.msra.mxu0 %v4363
        %4800 = vmatprep.mubr.bf16.mxu0 %v3774
        %4801 = vmatmul.mubr.bf16.gmra.mxu0 %v3773
        %v4802 = vpop.f32.mrf.mxu0
        %v4803 = vadd.f32 0.0, %v4802
        %v4804 = vpop.f32.mrf.mxu0
        %v4805 = vadd.f32 0.0, %v4804
        %v4806 = vpop.f32.mrf.mxu0
        %v4807 = vadd.f32 0.0, %v4806
        %v4808 = vpop.f32.mrf.mxu0
        %v4809 = vadd.f32 0.0, %v4808
        %4810 = vmatprep.mubr.bf16.mxu0 %v3776
        %4811 = vmatmul.mubr.bf16.gmra.mxu0 %v3775
        %v4812 = vpop.f32.mrf.mxu0
        %v4813 = vadd.f32 0.0, %v4812
        %v4814 = vpop.f32.mrf.mxu0
        %v4815 = vadd.f32 0.0, %v4814
        %v4816 = vpop.f32.mrf.mxu0
        %v4817 = vadd.f32 0.0, %v4816
        %v4818 = vpop.f32.mrf.mxu0
        %v4819 = vadd.f32 0.0, %v4818
        %4820 = vmatprep.mubr.bf16.mxu0 %v3778
        %4821 = vmatmul.mubr.bf16.gmra.mxu0 %v3777
        %v4822 = vpop.f32.mrf.mxu0
        %v4823 = vadd.f32 0.0, %v4822
        %v4824 = vpop.f32.mrf.mxu0
        %v4825 = vadd.f32 0.0, %v4824
        %v4826 = vpop.f32.mrf.mxu0
        %v4827 = vadd.f32 0.0, %v4826
        %v4828 = vpop.f32.mrf.mxu0
        %v4829 = vadd.f32 0.0, %v4828
        %4830 = vmatprep.mubr.bf16.mxu0 %v3780
        %4831 = vmatmul.mubr.bf16.gmra.mxu0 %v3779
        %v4832 = vpop.f32.mrf.mxu0
        %v4833 = vadd.f32 0.0, %v4832
        %v4834 = vpop.f32.mrf.mxu0
        %v4835 = vadd.f32 0.0, %v4834
        %v4836 = vpop.f32.mrf.mxu0
        %v4837 = vadd.f32 0.0, %v4836
        %v4838 = vpop.f32.mrf.mxu0
        %v4839 = vadd.f32 0.0, %v4838
        %4840 = vdwg.mxu0
        %v4841 = vadd.f32 %v3640, %v4584
        %v4842 = vadd.f32 %v3641, %v4586
        %v4843 = vadd.f32 %v3642, %v4657
        %v4844 = vadd.f32 %v3643, %v4659
        %v4845 = vadd.f32 %v3644, %v4730
        %v4846 = vadd.f32 %v3645, %v4732
        %v4847 = vadd.f32 %v3646, %v4803
        %v4848 = vadd.f32 %v3647, %v4805
        %v4849 = vadd.f32 %v3648, %v4588
        %v4850 = vadd.f32 %v3649, %v4590
        %v4851 = vadd.f32 %v3650, %v4661
        %v4852 = vadd.f32 %v3651, %v4663
        %v4853 = vadd.f32 %v3652, %v4734
        %v4854 = vadd.f32 %v3653, %v4736
        %v4855 = vadd.f32 %v3654, %v4807
        %v4856 = vadd.f32 %v3655, %v4809
        %v4857 = vadd.f32 %v3656, %v4594
        %v4858 = vadd.f32 %v3657, %v4596
        %v4859 = vadd.f32 %v3658, %v4667
        %v4860 = vadd.f32 %v3659, %v4669
        %v4861 = vadd.f32 %v3660, %v4740
        %v4862 = vadd.f32 %v3661, %v4742
        %v4863 = vadd.f32 %v3662, %v4813
        %v4864 = vadd.f32 %v3663, %v4815
        %v4865 = vadd.f32 %v3664, %v4598
        %v4866 = vadd.f32 %v3665, %v4600
        %v4867 = vadd.f32 %v3666, %v4671
        %v4868 = vadd.f32 %v3667, %v4673
        %v4869 = vadd.f32 %v3668, %v4744
        %v4870 = vadd.f32 %v3669, %v4746
        %v4871 = vadd.f32 %v3670, %v4817
        %v4872 = vadd.f32 %v3671, %v4819
        %v4873 = vadd.f32 %v3672, %v4604
        %v4874 = vadd.f32 %v3673, %v4606
        %v4875 = vadd.f32 %v3674, %v4677
        %v4876 = vadd.f32 %v3675, %v4679
        %v4877 = vadd.f32 %v3676, %v4750
        %v4878 = vadd.f32 %v3677, %v4752
        %v4879 = vadd.f32 %v3678, %v4823
        %v4880 = vadd.f32 %v3679, %v4825
        %v4881 = vadd.f32 %v3680, %v4608
        %v4882 = vadd.f32 %v3681, %v4610
        %v4883 = vadd.f32 %v3682, %v4681
        %v4884 = vadd.f32 %v3683, %v4683
        %v4885 = vadd.f32 %v3684, %v4754
        %v4886 = vadd.f32 %v3685, %v4756
        %v4887 = vadd.f32 %v3686, %v4827
        %v4888 = vadd.f32 %v3687, %v4829
        %v4889 = vadd.f32 %v3688, %v4614
        %v4890 = vadd.f32 %v3689, %v4616
        %v4891 = vadd.f32 %v3690, %v4687
        %v4892 = vadd.f32 %v3691, %v4689
        %v4893 = vadd.f32 %v3692, %v4760
        %v4894 = vadd.f32 %v3693, %v4762
        %v4895 = vadd.f32 %v3694, %v4833
        %v4896 = vadd.f32 %v3695, %v4835
        %v4897 = vadd.f32 %v3696, %v4618
        %v4898 = vadd.f32 %v3697, %v4620
        %v4899 = vadd.f32 %v3698, %v4691
        %v4900 = vadd.f32 %v3699, %v4693
        %v4901 = vadd.f32 %v3700, %v4764
        %v4902 = vadd.f32 %v3701, %v4766
        %v4903 = vadd.f32 %v3702, %v4837
        %v4904 = vadd.f32 %v3703, %v4839
        %v4905 = vmul.f32 %v4841, %v4841
        %v4906 = vmul.f32 %v4842, %v4842
        %v4907 = vmul.f32 %v4843, %v4843
        %v4908 = vmul.f32 %v4844, %v4844
        %v4909 = vmul.f32 %v4849, %v4849
        %v4910 = vmul.f32 %v4850, %v4850
        %v4911 = vmul.f32 %v4851, %v4851
        %v4912 = vmul.f32 %v4852, %v4852
        %v4913 = vmul.f32 %v4857, %v4857
        %v4914 = vmul.f32 %v4858, %v4858
        %v4915 = vmul.f32 %v4859, %v4859
        %v4916 = vmul.f32 %v4860, %v4860
        %v4917 = vmul.f32 %v4865, %v4865
        %v4918 = vmul.f32 %v4866, %v4866
        %v4919 = vmul.f32 %v4867, %v4867
        %v4920 = vmul.f32 %v4868, %v4868
        %v4921 = vmul.f32 %v4873, %v4873
        %v4922 = vmul.f32 %v4874, %v4874
        %v4923 = vmul.f32 %v4875, %v4875
        %v4924 = vmul.f32 %v4876, %v4876
        %v4925 = vmul.f32 %v4881, %v4881
        %v4926 = vmul.f32 %v4882, %v4882
        %v4927 = vmul.f32 %v4883, %v4883
        %v4928 = vmul.f32 %v4884, %v4884
        %v4929 = vmul.f32 %v4889, %v4889
        %v4930 = vmul.f32 %v4890, %v4890
        %v4931 = vmul.f32 %v4891, %v4891
        %v4932 = vmul.f32 %v4892, %v4892
        %v4933 = vmul.f32 %v4897, %v4897
        %v4934 = vmul.f32 %v4898, %v4898
        %v4935 = vmul.f32 %v4899, %v4899
        %v4936 = vmul.f32 %v4900, %v4900
        %v4937 = vmul.f32 %v4845, %v4845
        %v4938 = vmul.f32 %v4846, %v4846
        %v4939 = vmul.f32 %v4847, %v4847
        %v4940 = vmul.f32 %v4848, %v4848
        %v4941 = vmul.f32 %v4853, %v4853
        %v4942 = vmul.f32 %v4854, %v4854
        %v4943 = vmul.f32 %v4855, %v4855
        %v4944 = vmul.f32 %v4856, %v4856
        %v4945 = vmul.f32 %v4861, %v4861
        %v4946 = vmul.f32 %v4862, %v4862
        %v4947 = vmul.f32 %v4863, %v4863
        %v4948 = vmul.f32 %v4864, %v4864
        %v4949 = vmul.f32 %v4869, %v4869
        %v4950 = vmul.f32 %v4870, %v4870
        %v4951 = vmul.f32 %v4871, %v4871
        %v4952 = vmul.f32 %v4872, %v4872
        %v4953 = vmul.f32 %v4877, %v4877
        %v4954 = vmul.f32 %v4878, %v4878
        %v4955 = vmul.f32 %v4879, %v4879
        %v4956 = vmul.f32 %v4880, %v4880
        %v4957 = vmul.f32 %v4885, %v4885
        %v4958 = vmul.f32 %v4886, %v4886
        %v4959 = vmul.f32 %v4887, %v4887
        %v4960 = vmul.f32 %v4888, %v4888
        %v4961 = vmul.f32 %v4893, %v4893
        %v4962 = vmul.f32 %v4894, %v4894
        %v4963 = vmul.f32 %v4895, %v4895
        %v4964 = vmul.f32 %v4896, %v4896
        %v4965 = vmul.f32 %v4901, %v4901
        %v4966 = vmul.f32 %v4902, %v4902
        %v4967 = vmul.f32 %v4903, %v4903
        %v4968 = vmul.f32 %v4904, %v4904
        %v4969 = vadd.f32 %v4905, %v4937
        %v4970 = vadd.f32 %v4906, %v4938
        %v4971 = vadd.f32 %v4907, %v4939
        %v4972 = vadd.f32 %v4908, %v4940
        %v4973 = vadd.f32 %v4909, %v4941
        %v4974 = vadd.f32 %v4910, %v4942
        %v4975 = vadd.f32 %v4911, %v4943
        %v4976 = vadd.f32 %v4912, %v4944
        %v4977 = vadd.f32 %v4913, %v4945
        %v4978 = vadd.f32 %v4914, %v4946
        %v4979 = vadd.f32 %v4915, %v4947
        %v4980 = vadd.f32 %v4916, %v4948
        %v4981 = vadd.f32 %v4917, %v4949
        %v4982 = vadd.f32 %v4918, %v4950
        %v4983 = vadd.f32 %v4919, %v4951
        %v4984 = vadd.f32 %v4920, %v4952
        %v4985 = vadd.f32 %v4921, %v4953
        %v4986 = vadd.f32 %v4922, %v4954
        %v4987 = vadd.f32 %v4923, %v4955
        %v4988 = vadd.f32 %v4924, %v4956
        %v4989 = vadd.f32 %v4925, %v4957
        %v4990 = vadd.f32 %v4926, %v4958
        %v4991 = vadd.f32 %v4927, %v4959
        %v4992 = vadd.f32 %v4928, %v4960
        %v4993 = vadd.f32 %v4929, %v4961
        %v4994 = vadd.f32 %v4930, %v4962
        %v4995 = vadd.f32 %v4931, %v4963
        %v4996 = vadd.f32 %v4932, %v4964
        %v4997 = vadd.f32 %v4933, %v4965
        %v4998 = vadd.f32 %v4934, %v4966
        %v4999 = vadd.f32 %v4935, %v4967
        %v5000 = vadd.f32 %v4936, %v4968
        %v5001 = vrsqrt.pop %v4969
        %v5002 = vmul.f32 %v4969, %v5001
        %vm5003 = vcmp.eq.f32.partialorder %v4969, inf
        %v5004 = vsel %vm5003, %v4969, %v5002
        %vm5005 = vcmp.eq.f32.partialorder %v4969, 0.0
        %v5006 = vand.u32 %v4969, 2147483648
        %v5007 = vsel %vm5005, %v5006, %v5004
        %v5008 = vrsqrt.pop %v4970
        %v5009 = vmul.f32 %v4970, %v5008
        %vm5010 = vcmp.eq.f32.partialorder %v4970, inf
        %v5011 = vsel %vm5010, %v4970, %v5009
        %vm5012 = vcmp.eq.f32.partialorder %v4970, 0.0
        %v5013 = vand.u32 %v4970, 2147483648
        %v5014 = vsel %vm5012, %v5013, %v5011
        %v5015 = vrsqrt.pop %v4971
        %v5016 = vmul.f32 %v4971, %v5015
        %vm5017 = vcmp.eq.f32.partialorder %v4971, inf
        %v5018 = vsel %vm5017, %v4971, %v5016
        %vm5019 = vcmp.eq.f32.partialorder %v4971, 0.0
        %v5020 = vand.u32 %v4971, 2147483648
        %v5021 = vsel %vm5019, %v5020, %v5018
        %v5022 = vrsqrt.pop %v4972
        %v5023 = vmul.f32 %v4972, %v5022
        %vm5024 = vcmp.eq.f32.partialorder %v4972, inf
        %v5025 = vsel %vm5024, %v4972, %v5023
        %vm5026 = vcmp.eq.f32.partialorder %v4972, 0.0
        %v5027 = vand.u32 %v4972, 2147483648
        %v5028 = vsel %vm5026, %v5027, %v5025
        %v5029 = vrsqrt.pop %v4973
        %v5030 = vmul.f32 %v4973, %v5029
        %vm5031 = vcmp.eq.f32.partialorder %v4973, inf
        %v5032 = vsel %vm5031, %v4973, %v5030
        %vm5033 = vcmp.eq.f32.partialorder %v4973, 0.0
        %v5034 = vand.u32 %v4973, 2147483648
        %v5035 = vsel %vm5033, %v5034, %v5032
        %v5036 = vrsqrt.pop %v4974
        %v5037 = vmul.f32 %v4974, %v5036
        %vm5038 = vcmp.eq.f32.partialorder %v4974, inf
        %v5039 = vsel %vm5038, %v4974, %v5037
        %vm5040 = vcmp.eq.f32.partialorder %v4974, 0.0
        %v5041 = vand.u32 %v4974, 2147483648
        %v5042 = vsel %vm5040, %v5041, %v5039
        %v5043 = vrsqrt.pop %v4975
        %v5044 = vmul.f32 %v4975, %v5043
        %vm5045 = vcmp.eq.f32.partialorder %v4975, inf
        %v5046 = vsel %vm5045, %v4975, %v5044
        %vm5047 = vcmp.eq.f32.partialorder %v4975, 0.0
        %v5048 = vand.u32 %v4975, 2147483648
        %v5049 = vsel %vm5047, %v5048, %v5046
        %v5050 = vrsqrt.pop %v4976
        %v5051 = vmul.f32 %v4976, %v5050
        %vm5052 = vcmp.eq.f32.partialorder %v4976, inf
        %v5053 = vsel %vm5052, %v4976, %v5051
        %vm5054 = vcmp.eq.f32.partialorder %v4976, 0.0
        %v5055 = vand.u32 %v4976, 2147483648
        %v5056 = vsel %vm5054, %v5055, %v5053
        %v5057 = vrsqrt.pop %v4977
        %v5058 = vmul.f32 %v4977, %v5057
        %vm5059 = vcmp.eq.f32.partialorder %v4977, inf
        %v5060 = vsel %vm5059, %v4977, %v5058
        %vm5061 = vcmp.eq.f32.partialorder %v4977, 0.0
        %v5062 = vand.u32 %v4977, 2147483648
        %v5063 = vsel %vm5061, %v5062, %v5060
        %v5064 = vrsqrt.pop %v4978
        %v5065 = vmul.f32 %v4978, %v5064
        %vm5066 = vcmp.eq.f32.partialorder %v4978, inf
        %v5067 = vsel %vm5066, %v4978, %v5065
        %vm5068 = vcmp.eq.f32.partialorder %v4978, 0.0
        %v5069 = vand.u32 %v4978, 2147483648
        %v5070 = vsel %vm5068, %v5069, %v5067
        %v5071 = vrsqrt.pop %v4979
        %v5072 = vmul.f32 %v4979, %v5071
        %vm5073 = vcmp.eq.f32.partialorder %v4979, inf
        %v5074 = vsel %vm5073, %v4979, %v5072
        %vm5075 = vcmp.eq.f32.partialorder %v4979, 0.0
        %v5076 = vand.u32 %v4979, 2147483648
        %v5077 = vsel %vm5075, %v5076, %v5074
        %v5078 = vrsqrt.pop %v4980
        %v5079 = vmul.f32 %v4980, %v5078
        %vm5080 = vcmp.eq.f32.partialorder %v4980, inf
        %v5081 = vsel %vm5080, %v4980, %v5079
        %vm5082 = vcmp.eq.f32.partialorder %v4980, 0.0
        %v5083 = vand.u32 %v4980, 2147483648
        %v5084 = vsel %vm5082, %v5083, %v5081
        %v5085 = vrsqrt.pop %v4981
        %v5086 = vmul.f32 %v4981, %v5085
        %vm5087 = vcmp.eq.f32.partialorder %v4981, inf
        %v5088 = vsel %vm5087, %v4981, %v5086
        %vm5089 = vcmp.eq.f32.partialorder %v4981, 0.0
        %v5090 = vand.u32 %v4981, 2147483648
        %v5091 = vsel %vm5089, %v5090, %v5088
        %v5092 = vrsqrt.pop %v4982
        %v5093 = vmul.f32 %v4982, %v5092
        %vm5094 = vcmp.eq.f32.partialorder %v4982, inf
        %v5095 = vsel %vm5094, %v4982, %v5093
        %vm5096 = vcmp.eq.f32.partialorder %v4982, 0.0
        %v5097 = vand.u32 %v4982, 2147483648
        %v5098 = vsel %vm5096, %v5097, %v5095
        %v5099 = vrsqrt.pop %v4983
        %v5100 = vmul.f32 %v4983, %v5099
        %vm5101 = vcmp.eq.f32.partialorder %v4983, inf
        %v5102 = vsel %vm5101, %v4983, %v5100
        %vm5103 = vcmp.eq.f32.partialorder %v4983, 0.0
        %v5104 = vand.u32 %v4983, 2147483648
        %v5105 = vsel %vm5103, %v5104, %v5102
        %v5106 = vrsqrt.pop %v4984
        %v5107 = vmul.f32 %v4984, %v5106
        %vm5108 = vcmp.eq.f32.partialorder %v4984, inf
        %v5109 = vsel %vm5108, %v4984, %v5107
        %vm5110 = vcmp.eq.f32.partialorder %v4984, 0.0
        %v5111 = vand.u32 %v4984, 2147483648
        %v5112 = vsel %vm5110, %v5111, %v5109
        %v5113 = vrsqrt.pop %v4985
        %v5114 = vmul.f32 %v4985, %v5113
        %vm5115 = vcmp.eq.f32.partialorder %v4985, inf
        %v5116 = vsel %vm5115, %v4985, %v5114
        %vm5117 = vcmp.eq.f32.partialorder %v4985, 0.0
        %v5118 = vand.u32 %v4985, 2147483648
        %v5119 = vsel %vm5117, %v5118, %v5116
        %v5120 = vrsqrt.pop %v4986
        %v5121 = vmul.f32 %v4986, %v5120
        %vm5122 = vcmp.eq.f32.partialorder %v4986, inf
        %v5123 = vsel %vm5122, %v4986, %v5121
        %vm5124 = vcmp.eq.f32.partialorder %v4986, 0.0
        %v5125 = vand.u32 %v4986, 2147483648
        %v5126 = vsel %vm5124, %v5125, %v5123
        %v5127 = vrsqrt.pop %v4987
        %v5128 = vmul.f32 %v4987, %v5127
        %vm5129 = vcmp.eq.f32.partialorder %v4987, inf
        %v5130 = vsel %vm5129, %v4987, %v5128
        %vm5131 = vcmp.eq.f32.partialorder %v4987, 0.0
        %v5132 = vand.u32 %v4987, 2147483648
        %v5133 = vsel %vm5131, %v5132, %v5130
        %v5134 = vrsqrt.pop %v4988
        %v5135 = vmul.f32 %v4988, %v5134
        %vm5136 = vcmp.eq.f32.partialorder %v4988, inf
        %v5137 = vsel %vm5136, %v4988, %v5135
        %vm5138 = vcmp.eq.f32.partialorder %v4988, 0.0
        %v5139 = vand.u32 %v4988, 2147483648
        %v5140 = vsel %vm5138, %v5139, %v5137
        %v5141 = vrsqrt.pop %v4989
        %v5142 = vmul.f32 %v4989, %v5141
        %vm5143 = vcmp.eq.f32.partialorder %v4989, inf
        %v5144 = vsel %vm5143, %v4989, %v5142
        %vm5145 = vcmp.eq.f32.partialorder %v4989, 0.0
        %v5146 = vand.u32 %v4989, 2147483648
        %v5147 = vsel %vm5145, %v5146, %v5144
        %v5148 = vrsqrt.pop %v4990
        %v5149 = vmul.f32 %v4990, %v5148
        %vm5150 = vcmp.eq.f32.partialorder %v4990, inf
        %v5151 = vsel %vm5150, %v4990, %v5149
        %vm5152 = vcmp.eq.f32.partialorder %v4990, 0.0
        %v5153 = vand.u32 %v4990, 2147483648
        %v5154 = vsel %vm5152, %v5153, %v5151
        %v5155 = vrsqrt.pop %v4991
        %v5156 = vmul.f32 %v4991, %v5155
        %vm5157 = vcmp.eq.f32.partialorder %v4991, inf
        %v5158 = vsel %vm5157, %v4991, %v5156
        %vm5159 = vcmp.eq.f32.partialorder %v4991, 0.0
        %v5160 = vand.u32 %v4991, 2147483648
        %v5161 = vsel %vm5159, %v5160, %v5158
        %v5162 = vrsqrt.pop %v4992
        %v5163 = vmul.f32 %v4992, %v5162
        %vm5164 = vcmp.eq.f32.partialorder %v4992, inf
        %v5165 = vsel %vm5164, %v4992, %v5163
        %vm5166 = vcmp.eq.f32.partialorder %v4992, 0.0
        %v5167 = vand.u32 %v4992, 2147483648
        %v5168 = vsel %vm5166, %v5167, %v5165
        %v5169 = vrsqrt.pop %v4993
        %v5170 = vmul.f32 %v4993, %v5169
        %vm5171 = vcmp.eq.f32.partialorder %v4993, inf
        %v5172 = vsel %vm5171, %v4993, %v5170
        %vm5173 = vcmp.eq.f32.partialorder %v4993, 0.0
        %v5174 = vand.u32 %v4993, 2147483648
        %v5175 = vsel %vm5173, %v5174, %v5172
        %v5176 = vrsqrt.pop %v4994
        %v5177 = vmul.f32 %v4994, %v5176
        %vm5178 = vcmp.eq.f32.partialorder %v4994, inf
        %v5179 = vsel %vm5178, %v4994, %v5177
        %vm5180 = vcmp.eq.f32.partialorder %v4994, 0.0
        %v5181 = vand.u32 %v4994, 2147483648
        %v5182 = vsel %vm5180, %v5181, %v5179
        %v5183 = vrsqrt.pop %v4995
        %v5184 = vmul.f32 %v4995, %v5183
        %vm5185 = vcmp.eq.f32.partialorder %v4995, inf
        %v5186 = vsel %vm5185, %v4995, %v5184
        %vm5187 = vcmp.eq.f32.partialorder %v4995, 0.0
        %v5188 = vand.u32 %v4995, 2147483648
        %v5189 = vsel %vm5187, %v5188, %v5186
        %v5190 = vrsqrt.pop %v4996
        %v5191 = vmul.f32 %v4996, %v5190
        %vm5192 = vcmp.eq.f32.partialorder %v4996, inf
        %v5193 = vsel %vm5192, %v4996, %v5191
        %vm5194 = vcmp.eq.f32.partialorder %v4996, 0.0
        %v5195 = vand.u32 %v4996, 2147483648
        %v5196 = vsel %vm5194, %v5195, %v5193
        %v5197 = vrsqrt.pop %v4997
        %v5198 = vmul.f32 %v4997, %v5197
        %vm5199 = vcmp.eq.f32.partialorder %v4997, inf
        %v5200 = vsel %vm5199, %v4997, %v5198
        %vm5201 = vcmp.eq.f32.partialorder %v4997, 0.0
        %v5202 = vand.u32 %v4997, 2147483648
        %v5203 = vsel %vm5201, %v5202, %v5200
        %v5204 = vrsqrt.pop %v4998
        %v5205 = vmul.f32 %v4998, %v5204
        %vm5206 = vcmp.eq.f32.partialorder %v4998, inf
        %v5207 = vsel %vm5206, %v4998, %v5205
        %vm5208 = vcmp.eq.f32.partialorder %v4998, 0.0
        %v5209 = vand.u32 %v4998, 2147483648
        %v5210 = vsel %vm5208, %v5209, %v5207
        %v5211 = vrsqrt.pop %v4999
        %v5212 = vmul.f32 %v4999, %v5211
        %vm5213 = vcmp.eq.f32.partialorder %v4999, inf
        %v5214 = vsel %vm5213, %v4999, %v5212
        %vm5215 = vcmp.eq.f32.partialorder %v4999, 0.0
        %v5216 = vand.u32 %v4999, 2147483648
        %v5217 = vsel %vm5215, %v5216, %v5214
        %v5218 = vrsqrt.pop %v5000
        %v5219 = vmul.f32 %v5000, %v5218
        %vm5220 = vcmp.eq.f32.partialorder %v5000, inf
        %v5221 = vsel %vm5220, %v5000, %v5219
        %vm5222 = vcmp.eq.f32.partialorder %v5000, 0.0
        %v5223 = vand.u32 %v5000, 2147483648
        %v5224 = vsel %vm5222, %v5223, %v5221
        %v5225 = vpack.c.bf16 %v5035, %v5007
        %v5226 = vpack.c.bf16 %v5042, %v5014
        %v5227 = vpack.c.bf16 %v5049, %v5021
        %v5228 = vpack.c.bf16 %v5056, %v5028
        %v5229 = vpack.c.bf16 %v5091, %v5063
        %v5230 = vpack.c.bf16 %v5098, %v5070
        %v5231 = vpack.c.bf16 %v5105, %v5077
        %v5232 = vpack.c.bf16 %v5112, %v5084
        %v5233 = vpack.c.bf16 %v5147, %v5119
        %v5234 = vpack.c.bf16 %v5154, %v5126
        %v5235 = vpack.c.bf16 %v5161, %v5133
        %v5236 = vpack.c.bf16 %v5168, %v5140
        %v5237 = vpack.c.bf16 %v5203, %v5175
        %v5238 = vpack.c.bf16 %v5210, %v5182
        %v5239 = vpack.c.bf16 %v5217, %v5189
        %v5240 = vpack.c.bf16 %v5224, %v5196
        %v5241 = vld [vmem:[#allocation5] sm:$0xf]
        %v5242 = vld [vmem:[#allocation5 + $0x4] sm:$0xf]
        %v5243 = vld [vmem:[#allocation5 + $0x8] sm:$0xf]
        %v5244 = vld [vmem:[#allocation5 + $0xc] sm:$0xf]
        %v5245 = vld [vmem:[#allocation5 + $0x10] sm:$0xf]
        %v5246 = vld [vmem:[#allocation5 + $0x14] sm:$0xf]
        %v5247 = vld [vmem:[#allocation5 + $0x18] sm:$0xf]
        %v5248 = vld [vmem:[#allocation5 + $0x1c] sm:$0xf]
        %v5249 = vld [vmem:[#allocation5 + $0x20] sm:$0xf]
        %v5250 = vld [vmem:[#allocation5 + $0x24] sm:$0xf]
        %v5251 = vld [vmem:[#allocation5 + $0x28] sm:$0xf]
        %v5252 = vld [vmem:[#allocation5 + $0x2c] sm:$0xf]
        %v5253 = vld [vmem:[#allocation5 + $0x30] sm:$0xf]
        %v5254 = vld [vmem:[#allocation5 + $0x34] sm:$0xf]
        %v5255 = vld [vmem:[#allocation5 + $0x38] sm:$0xf]
        %v5256 = vld [vmem:[#allocation5 + $0x3c] sm:$0xf]
        %v5257 = vld [vmem:[#allocation5 + $0x40] sm:$0xf]
        %v5258 = vld [vmem:[#allocation5 + $0x44] sm:$0xf]
        %v5259 = vld [vmem:[#allocation5 + $0x48] sm:$0xf]
        %v5260 = vld [vmem:[#allocation5 + $0x4c] sm:$0xf]
        %v5261 = vld [vmem:[#allocation5 + $0x50] sm:$0xf]
        %v5262 = vld [vmem:[#allocation5 + $0x54] sm:$0xf]
        %v5263 = vld [vmem:[#allocation5 + $0x58] sm:$0xf]
        %v5264 = vld [vmem:[#allocation5 + $0x5c] sm:$0xf]
        %v5265 = vld [vmem:[#allocation5 + $0x60] sm:$0xf]
        %v5266 = vld [vmem:[#allocation5 + $0x64] sm:$0xf]
        %v5267 = vld [vmem:[#allocation5 + $0x68] sm:$0xf]
        %v5268 = vld [vmem:[#allocation5 + $0x6c] sm:$0xf]
        %v5269 = vld [vmem:[#allocation5 + $0x70] sm:$0xf]
        %v5270 = vld [vmem:[#allocation5 + $0x74] sm:$0xf]
        %v5271 = vld [vmem:[#allocation5 + $0x78] sm:$0xf]
        %v5272 = vld [vmem:[#allocation5 + $0x7c] sm:$0xf]
        %v5273 = vld [vmem:[#allocation5 + $0x80] sm:$0xf]
        %v5274 = vld [vmem:[#allocation5 + $0x84] sm:$0xf]
        %v5275 = vld [vmem:[#allocation5 + $0x88] sm:$0xf]
        %v5276 = vld [vmem:[#allocation5 + $0x8c] sm:$0xf]
        %v5277 = vld [vmem:[#allocation5 + $0x90] sm:$0xf]
        %v5278 = vld [vmem:[#allocation5 + $0x94] sm:$0xf]
        %v5279 = vld [vmem:[#allocation5 + $0x98] sm:$0xf]
        %v5280 = vld [vmem:[#allocation5 + $0x9c] sm:$0xf]
        %v5281 = vld [vmem:[#allocation5 + $0xa0] sm:$0xf]
        %v5282 = vld [vmem:[#allocation5 + $0xa4] sm:$0xf]
        %v5283 = vld [vmem:[#allocation5 + $0xa8] sm:$0xf]
        %v5284 = vld [vmem:[#allocation5 + $0xac] sm:$0xf]
        %v5285 = vld [vmem:[#allocation5 + $0xb0] sm:$0xf]
        %v5286 = vld [vmem:[#allocation5 + $0xb4] sm:$0xf]
        %v5287 = vld [vmem:[#allocation5 + $0xb8] sm:$0xf]
        %v5288 = vld [vmem:[#allocation5 + $0xbc] sm:$0xf]
        %v5289 = vld [vmem:[#allocation5 + $0xc0] sm:$0xf]
        %v5290 = vld [vmem:[#allocation5 + $0xc4] sm:$0xf]
        %v5291 = vld [vmem:[#allocation5 + $0xc8] sm:$0xf]
        %v5292 = vld [vmem:[#allocation5 + $0xcc] sm:$0xf]
        %v5293 = vld [vmem:[#allocation5 + $0xd0] sm:$0xf]
        %v5294 = vld [vmem:[#allocation5 + $0xd4] sm:$0xf]
        %v5295 = vld [vmem:[#allocation5 + $0xd8] sm:$0xf]
        %v5296 = vld [vmem:[#allocation5 + $0xdc] sm:$0xf]
        %v5297 = vld [vmem:[#allocation5 + $0xe0] sm:$0xf]
        %v5298 = vld [vmem:[#allocation5 + $0xe4] sm:$0xf]
        %v5299 = vld [vmem:[#allocation5 + $0xe8] sm:$0xf]
        %v5300 = vld [vmem:[#allocation5 + $0xec] sm:$0xf]
        %v5301 = vld [vmem:[#allocation5 + $0xf0] sm:$0xf]
        %v5302 = vld [vmem:[#allocation5 + $0xf4] sm:$0xf]
        %v5303 = vld [vmem:[#allocation5 + $0xf8] sm:$0xf]
        %v5304 = vld [vmem:[#allocation5 + $0xfc] sm:$0xf]
        %v5369 = vunpack.c.l.b16 %v5241
        %v5370 = vunpack.c.l.b16 %v5242
        %v5371 = vunpack.c.l.b16 %v5243
        %v5372 = vunpack.c.l.b16 %v5244
        %v5373 = vunpack.c.l.b16 %v5245
        %v5374 = vunpack.c.l.b16 %v5246
        %v5375 = vunpack.c.l.b16 %v5247
        %v5376 = vunpack.c.l.b16 %v5248
        %v5377 = vunpack.c.l.b16 %v5249
        %v5378 = vunpack.c.l.b16 %v5250
        %v5379 = vunpack.c.l.b16 %v5251
        %v5380 = vunpack.c.l.b16 %v5252
        %v5381 = vunpack.c.l.b16 %v5253
        %v5382 = vunpack.c.l.b16 %v5254
        %v5383 = vunpack.c.l.b16 %v5255
        %v5384 = vunpack.c.l.b16 %v5256
        %v5385 = vunpack.c.l.b16 %v5257
        %v5386 = vunpack.c.l.b16 %v5258
        %v5387 = vunpack.c.l.b16 %v5259
        %v5388 = vunpack.c.l.b16 %v5260
        %v5389 = vunpack.c.l.b16 %v5261
        %v5390 = vunpack.c.l.b16 %v5262
        %v5391 = vunpack.c.l.b16 %v5263
        %v5392 = vunpack.c.l.b16 %v5264
        %v5393 = vunpack.c.l.b16 %v5265
        %v5394 = vunpack.c.l.b16 %v5266
        %v5395 = vunpack.c.l.b16 %v5267
        %v5396 = vunpack.c.l.b16 %v5268
        %v5397 = vunpack.c.l.b16 %v5269
        %v5398 = vunpack.c.l.b16 %v5270
        %v5399 = vunpack.c.l.b16 %v5271
        %v5400 = vunpack.c.l.b16 %v5272
        %v5401 = vunpack.c.l.b16 %v5273
        %v5402 = vunpack.c.l.b16 %v5274
        %v5403 = vunpack.c.l.b16 %v5275
        %v5404 = vunpack.c.l.b16 %v5276
        %v5405 = vunpack.c.l.b16 %v5277
        %v5406 = vunpack.c.l.b16 %v5278
        %v5407 = vunpack.c.l.b16 %v5279
        %v5408 = vunpack.c.l.b16 %v5280
        %v5409 = vunpack.c.l.b16 %v5281
        %v5410 = vunpack.c.l.b16 %v5282
        %v5411 = vunpack.c.l.b16 %v5283
        %v5412 = vunpack.c.l.b16 %v5284
        %v5413 = vunpack.c.l.b16 %v5285
        %v5414 = vunpack.c.l.b16 %v5286
        %v5415 = vunpack.c.l.b16 %v5287
        %v5416 = vunpack.c.l.b16 %v5288
        %v5417 = vunpack.c.l.b16 %v5289
        %v5418 = vunpack.c.l.b16 %v5290
        %v5419 = vunpack.c.l.b16 %v5291
        %v5420 = vunpack.c.l.b16 %v5292
        %v5421 = vunpack.c.l.b16 %v5293
        %v5422 = vunpack.c.l.b16 %v5294
        %v5423 = vunpack.c.l.b16 %v5295
        %v5424 = vunpack.c.l.b16 %v5296
        %v5425 = vunpack.c.l.b16 %v5297
        %v5426 = vunpack.c.l.b16 %v5298
        %v5427 = vunpack.c.l.b16 %v5299
        %v5428 = vunpack.c.l.b16 %v5300
        %v5429 = vunpack.c.l.b16 %v5301
        %v5430 = vunpack.c.l.b16 %v5302
        %v5431 = vunpack.c.l.b16 %v5303
        %v5432 = vunpack.c.l.b16 %v5304
        %v5433 = vpack.c.b16 %v5370, %v5369
        %v5434 = vpack.c.b16 %v5372, %v5371
        %v5435 = vpack.c.b16 %v5374, %v5373
        %v5436 = vpack.c.b16 %v5376, %v5375
        %v5437 = vpack.c.b16 %v5378, %v5377
        %v5438 = vpack.c.b16 %v5380, %v5379
        %v5439 = vpack.c.b16 %v5382, %v5381
        %v5440 = vpack.c.b16 %v5384, %v5383
        %v5441 = vpack.c.b16 %v5386, %v5385
        %v5442 = vpack.c.b16 %v5388, %v5387
        %v5443 = vpack.c.b16 %v5390, %v5389
        %v5444 = vpack.c.b16 %v5392, %v5391
        %v5445 = vpack.c.b16 %v5394, %v5393
        %v5446 = vpack.c.b16 %v5396, %v5395
        %v5447 = vpack.c.b16 %v5398, %v5397
        %v5448 = vpack.c.b16 %v5400, %v5399
        %v5449 = vpack.c.b16 %v5402, %v5401
        %v5450 = vpack.c.b16 %v5404, %v5403
        %v5451 = vpack.c.b16 %v5406, %v5405
        %v5452 = vpack.c.b16 %v5408, %v5407
        %v5453 = vpack.c.b16 %v5410, %v5409
        %v5454 = vpack.c.b16 %v5412, %v5411
        %v5455 = vpack.c.b16 %v5414, %v5413
        %v5456 = vpack.c.b16 %v5416, %v5415
        %v5457 = vpack.c.b16 %v5418, %v5417
        %v5458 = vpack.c.b16 %v5420, %v5419
        %v5459 = vpack.c.b16 %v5422, %v5421
        %v5460 = vpack.c.b16 %v5424, %v5423
        %v5461 = vpack.c.b16 %v5426, %v5425
        %v5462 = vpack.c.b16 %v5428, %v5427
        %v5463 = vpack.c.b16 %v5430, %v5429
        %v5464 = vpack.c.b16 %v5432, %v5431
        %5497 = vmatprep.subr.bf16.mxu0 0
        %5498 = vmatpush1.bf16.msra.mxu0 %v5440
        %5499 = vmatprep.subr.bf16.mxu0 0
        %5500 = vmatpush1.bf16.msra.mxu0 %v5439
        %5501 = vmatprep.subr.bf16.mxu0 0
        %5502 = vmatpush1.bf16.msra.mxu0 %v5438
        %5503 = vmatprep.subr.bf16.mxu0 0
        %5504 = vmatpush1.bf16.msra.mxu0 %v5437
        %5505 = vmatprep.subr.bf16.mxu0 0
        %5506 = vmatpush1.bf16.msra.mxu0 %v5436
        %5507 = vmatprep.subr.bf16.mxu0 0
        %5508 = vmatpush1.bf16.msra.mxu0 %v5435
        %5509 = vmatprep.subr.bf16.mxu0 0
        %5510 = vmatpush1.bf16.msra.mxu0 %v5434
        %5511 = vmatprep.subr.bf16.mxu0 0
        %5512 = vmatpush1.bf16.msra.mxu0 %v5433
        %5513 = vmatprep.subr.bf16.mxu0 0
        %5514 = vmatpush2.bf16.msra.mxu0 %v5448
        %5515 = vmatprep.subr.bf16.mxu0 0
        %5516 = vmatpush2.bf16.msra.mxu0 %v5447
        %5517 = vmatprep.subr.bf16.mxu0 0
        %5518 = vmatpush2.bf16.msra.mxu0 %v5446
        %5519 = vmatprep.subr.bf16.mxu0 0
        %5520 = vmatpush2.bf16.msra.mxu0 %v5445
        %5521 = vmatprep.subr.bf16.mxu0 0
        %5522 = vmatpush2.bf16.msra.mxu0 %v5444
        %5523 = vmatprep.subr.bf16.mxu0 0
        %5524 = vmatpush2.bf16.msra.mxu0 %v5443
        %5525 = vmatprep.subr.bf16.mxu0 0
        %5526 = vmatpush2.bf16.msra.mxu0 %v5442
        %5527 = vmatprep.subr.bf16.mxu0 0
        %5528 = vmatpush2.bf16.msra.mxu0 %v5441
        %5529 = vmatprep.mubr.bf16.mxu0 %v5226
        %5530 = vmatmul.mubr.bf16.gmra.mxu0 %v5225
        %v5531 = vpop.f32.mrf.mxu0
        %v5532 = vadd.f32 0.0, %v5531
        %v5533 = vpop.f32.mrf.mxu0
        %v5534 = vpop.f32.mrf.mxu0
        %v5535 = vadd.f32 0.0, %v5534
        %v5536 = vpop.f32.mrf.mxu0
        %5537 = vmatprep.mubr.bf16.mxu0 %v5230
        %5538 = vmatmul.mubr.bf16.gmra.mxu0 %v5229
        %v5539 = vpop.f32.mrf.mxu0
        %v5540 = vadd.f32 0.0, %v5539
        %v5541 = vpop.f32.mrf.mxu0
        %v5542 = vpop.f32.mrf.mxu0
        %v5543 = vadd.f32 0.0, %v5542
        %v5544 = vpop.f32.mrf.mxu0
        %5545 = vmatprep.mubr.bf16.mxu0 %v5234
        %5546 = vmatmul.mubr.bf16.gmra.mxu0 %v5233
        %v5547 = vpop.f32.mrf.mxu0
        %v5548 = vadd.f32 0.0, %v5547
        %v5549 = vpop.f32.mrf.mxu0
        %v5550 = vpop.f32.mrf.mxu0
        %v5551 = vadd.f32 0.0, %v5550
        %v5552 = vpop.f32.mrf.mxu0
        %5553 = vmatprep.mubr.bf16.mxu0 %v5238
        %5554 = vmatmul.mubr.bf16.gmra.mxu0 %v5237
        %v5555 = vpop.f32.mrf.mxu0
        %v5556 = vadd.f32 0.0, %v5555
        %v5557 = vpop.f32.mrf.mxu0
        %v5558 = vpop.f32.mrf.mxu0
        %v5559 = vadd.f32 0.0, %v5558
        %v5560 = vpop.f32.mrf.mxu0
        %5561 = vdwg.mxu0
        %5562 = vmatprep.subr.bf16.mxu0 0
        %5563 = vmatpush1.bf16.msra.mxu0 %v5456
        %5564 = vmatprep.subr.bf16.mxu0 0
        %5565 = vmatpush1.bf16.msra.mxu0 %v5455
        %5566 = vmatprep.subr.bf16.mxu0 0
        %5567 = vmatpush1.bf16.msra.mxu0 %v5454
        %5568 = vmatprep.subr.bf16.mxu0 0
        %5569 = vmatpush1.bf16.msra.mxu0 %v5453
        %5570 = vmatprep.subr.bf16.mxu0 0
        %5571 = vmatpush1.bf16.msra.mxu0 %v5452
        %5572 = vmatprep.subr.bf16.mxu0 0
        %5573 = vmatpush1.bf16.msra.mxu0 %v5451
        %5574 = vmatprep.subr.bf16.mxu0 0
        %5575 = vmatpush1.bf16.msra.mxu0 %v5450
        %5576 = vmatprep.subr.bf16.mxu0 0
        %5577 = vmatpush1.bf16.msra.mxu0 %v5449
        %5578 = vmatprep.subr.bf16.mxu0 0
        %5579 = vmatpush2.bf16.msra.mxu0 %v5464
        %5580 = vmatprep.subr.bf16.mxu0 0
        %5581 = vmatpush2.bf16.msra.mxu0 %v5463
        %5582 = vmatprep.subr.bf16.mxu0 0
        %5583 = vmatpush2.bf16.msra.mxu0 %v5462
        %5584 = vmatprep.subr.bf16.mxu0 0
        %5585 = vmatpush2.bf16.msra.mxu0 %v5461
        %5586 = vmatprep.subr.bf16.mxu0 0
        %5587 = vmatpush2.bf16.msra.mxu0 %v5460
        %5588 = vmatprep.subr.bf16.mxu0 0
        %5589 = vmatpush2.bf16.msra.mxu0 %v5459
        %5590 = vmatprep.subr.bf16.mxu0 0
        %5591 = vmatpush2.bf16.msra.mxu0 %v5458
        %5592 = vmatprep.subr.bf16.mxu0 0
        %5593 = vmatpush2.bf16.msra.mxu0 %v5457
        %5594 = vmatprep.mubr.bf16.mxu0 %v5228
        %5595 = vmatmul.mubr.bf16.gmra.mxu0 %v5227
        %v5596 = vpop.f32.mrf.mxu0
        %v5597 = vadd.f32 %v5532, %v5596
        %v5598 = vpop.f32.mrf.mxu0
        %v5599 = vpop.f32.mrf.mxu0
        %v5600 = vadd.f32 %v5535, %v5599
        %v5601 = vpop.f32.mrf.mxu0
        %5602 = vmatprep.mubr.bf16.mxu0 %v5232
        %5603 = vmatmul.mubr.bf16.gmra.mxu0 %v5231
        %v5604 = vpop.f32.mrf.mxu0
        %v5605 = vadd.f32 %v5540, %v5604
        %v5606 = vpop.f32.mrf.mxu0
        %v5607 = vpop.f32.mrf.mxu0
        %v5608 = vadd.f32 %v5543, %v5607
        %v5609 = vpop.f32.mrf.mxu0
        %5610 = vmatprep.mubr.bf16.mxu0 %v5236
        %5611 = vmatmul.mubr.bf16.gmra.mxu0 %v5235
        %v5612 = vpop.f32.mrf.mxu0
        %v5613 = vadd.f32 %v5548, %v5612
        %v5614 = vpop.f32.mrf.mxu0
        %v5615 = vpop.f32.mrf.mxu0
        %v5616 = vadd.f32 %v5551, %v5615
        %v5617 = vpop.f32.mrf.mxu0
        %5618 = vmatprep.mubr.bf16.mxu0 %v5240
        %5619 = vmatmul.mubr.bf16.gmra.mxu0 %v5239
        %v5620 = vpop.f32.mrf.mxu0
        %v5621 = vadd.f32 %v5556, %v5620
        %v5622 = vpop.f32.mrf.mxu0
        %v5623 = vpop.f32.mrf.mxu0
        %v5624 = vadd.f32 %v5559, %v5623
        %v5625 = vpop.f32.mrf.mxu0
        %5626 = vdwg.mxu0
        %v5627 = vmax.f32 %v5597, 1e-07
        %v5628 = vmax.f32 %v5600, 1e-07
        %v5629 = vmax.f32 %v5605, 1e-07
        %v5630 = vmax.f32 %v5608, 1e-07
        %v5631 = vmax.f32 %v5613, 1e-07
        %v5632 = vmax.f32 %v5616, 1e-07
        %v5633 = vmax.f32 %v5621, 1e-07
        %v5634 = vmax.f32 %v5624, 1e-07
        %v5635 = vlog2.pop %v5627
        %v5636 = vmul.f32 %v5635, 0.6931472
        %v5637 = vlog2.pop %v5628
        %v5638 = vmul.f32 %v5637, 0.6931472
        %v5639 = vlog2.pop %v5629
        %v5640 = vmul.f32 %v5639, 0.6931472
        %v5641 = vlog2.pop %v5630
        %v5642 = vmul.f32 %v5641, 0.6931472
        %v5643 = vlog2.pop %v5631
        %v5644 = vmul.f32 %v5643, 0.6931472
        %v5645 = vlog2.pop %v5632
        %v5646 = vmul.f32 %v5645, 0.6931472
        %v5647 = vlog2.pop %v5633
        %v5648 = vmul.f32 %v5647, 0.6931472
        %v5649 = vlog2.pop %v5634
        %v5650 = vmul.f32 %v5649, 0.6931472
        %v5651 = vsub.f32 %v5636, %v5644
        %v5652 = vsub.f32 %v5638, %v5646
        %v5653 = vsub.f32 %v5640, %v5648
        %v5654 = vsub.f32 %v5642, %v5650
        %v5655 = vand.u32 2147483647, %v5651
        %v5656 = vand.u32 2147483647, %v5652
        %v5657 = vand.u32 2147483647, %v5653
        %v5658 = vand.u32 2147483647, %v5654
        %v5659 = vlaneseq
        %v5660 = vshrl.u32 %v5659, 7
        %v5661 = vadd.s32 %v5660, 8
        %v5662 = vadd.s32 %v5660, 16
        %v5663 = vadd.s32 %v5660, 24
        %vm5664 = vcmp.lt.s32.totalorder %v5660, 17
        %vm5665 = vcmp.lt.s32.totalorder %v5661, 17
        %vm5666 = vcmp.lt.s32.totalorder %v5662, 17
        %vm5667 = vcmp.lt.s32.totalorder %v5663, 17
        %v5668 = vsel %vm5664, %v5655, 0.0
        %v5669 = vsel %vm5665, %v5656, 0.0
        %v5670 = vsel %vm5666, %v5657, 0.0
        %v5671 = vsel %vm5667, %v5658, 0.0
        %v5672 = vadd.f32 %v5668, %v5669
        %v5673 = vadd.f32 %v5672, %v5670
        %v5674 = vadd.f32 %v5673, %v5671
        %5675 = vst [vmem:[%s256] sm:$0xff] %v5674
        %p5676 = scmp.lt.s32.totalorder %s16, 1
        %s5677 = scalar_select %p5676, %s16, 1
        %s5678 = smul.addr %s5677, 8
        %s5679 = scalar_lea.vmem %s3, %s5678
        // Predicated region
        $region64: #{mel_spec_reconstruction_loss.1} parent=50 // pred_check
          %p5680 = pneg %p102
        $region65: #{mel_spec_reconstruction_loss.1} parent=50 // pred_check_branch
          %5682 = sbr.rel (%p5680) target = $region67
        $region66: #{mel_spec_reconstruction_loss.1} parent=50 // pred_region
          _
        $region67: #{mel_spec_reconstruction_loss.1} parent=50 // pred_fallthru
          _
      $region51: #{mel_spec_reconstruction_loss.1} parent=5 // pred_fallthru
        _
      %p5683 = scmp.le.s32.totalorder 2, %s11
      // Predicated region
      $region68: #{mel_spec_reconstruction_loss.1} parent=5 // pred_check
        %p5684 = pneg %p5683
      $region69: #{mel_spec_reconstruction_loss.1} parent=5 // pred_check_branch
        %5686 = sbr.rel (%p5684) target = $region71
      $region70: #{mel_spec_reconstruction_loss.1} parent=5 // pred_region
        %s5687 = ssub.s32 %s11, 2
        // Predicated region
        $region72: #{mel_spec_reconstruction_loss.1} parent=70 // pred_check
          %p5688 = pneg %p108
        $region73: #{mel_spec_reconstruction_loss.1} parent=70 // pred_check_branch
          %5690 = sbr.rel (%p5688) target = $region75
        $region74: #{mel_spec_reconstruction_loss.1} parent=70 // pred_region
          %p5691 = scmp.lt.s32.totalorder %s17, 1
          %s5692 = scalar_select %p5691, %s17, 1
          %s5693 = smul.addr %s5692, 8
          %s5694 = scalar_lea.vmem %s3, %s5693
        $region75: #{mel_spec_reconstruction_loss.1} parent=70 // pred_fallthru
          _
      $region71: #{mel_spec_reconstruction_loss.1} parent=5 // pred_fallthru
        _
    $region6: #{mel_spec_reconstruction_loss.1} parent=1 // loop_footer
      %s15 = sadd.s32 1, %s11
    $region7: #{mel_spec_reconstruction_loss.1} parent=1 // loop_footer_branch
      %10 = sbr.rel target = $region3
    $region8: #{mel_spec_reconstruction_loss.1} parent=1 // loop_exit
      _
    %5695 = vsyncpa [#allocation4], 1
    %s5696 = scalar_lea.sflag [#allocation4], 1
    %5697 = vsyncpa %s5696, 1
    %5698 = vsyncpa [#allocation6], 1

</llo_original>
